<compile_context>
chip_gen: v7x
topology: tpu7x:2x2x1
jax: 0.10.0
libtpu: 0.0.40
codegen_flags: <defaults>
</compile_context>

<pallas_src>
import functools
import math

import jax
import jax.numpy as jnp
from jax import lax
from jax.experimental import pallas as pl
from jax.experimental.pallas import tpu as pltpu


CONFIG = dict(
    image_size=16,
    patch_size=4,
    classes=10,
    dim=32,
    depth=2,
    heads=4,
    mlp_dim=64,
    dropout=0.0,
    emb_dropout=0.0,
)
CHANNELS = 3
UP_CHANNELS = 100  # Conv1d(in_channels=(image_size//patch)**2, out_channels=100, k=1)


# ----------------------------- fused forward kernel --------------------------
def _fused_vit_kernel(xp_ref, emb_ref, wmat_ref, wff2_ref, vecs_ref, conv_w_ref,
                      o_ref, *, depth, heads, dh, dim, mlp_dim, S, S_pad, G, eps):
    f32 = jnp.float32
    scale = 1.0 / math.sqrt(dh)

    def ln(x, g, b):
        mu = jnp.mean(x, axis=-1, keepdims=True)
        xc = x - mu
        var = jnp.mean(xc * xc, axis=-1, keepdims=True)   # biased, like torch LayerNorm
        return xc * lax.rsqrt(var + eps) * g + b

    # Patch embedding + cls token + positional embedding for every image of
    # this grid step in ONE matmul: the input slab carries identity indicator
    # columns, matched by the bias rows appended to the embedding matrix.
    tok = jnp.dot(xp_ref[0], emb_ref[...], preferred_element_type=f32)   # (G*S_pad, dim)

    for l in range(depth):
        wm = wmat_ref[l]                      # (dim, 3*dim + dim + mlp_dim)
        vv = vecs_ref[l]                      # (8, 128) LN scales/shifts and biases
        ln1_g, ln1_b = vv[0:1, 0:dim], vv[1:2, 0:dim]
        ln2_g, ln2_b = vv[2:3, 0:dim], vv[3:4, 0:dim]
        b_out, b_ff2 = vv[4:5, 0:dim], vv[5:6, 0:dim]
        b_ff1 = vv[6:7, 0:mlp_dim]

        # --- PreNorm multi-head self-attention + residual ---------------------
        y = ln(tok, ln1_g, ln1_b)
        # one fat qkv projection for all images / heads of this step
        qkv = jnp.dot(y, wm[:, 0:3 * dim], preferred_element_type=f32)   # (G*S_pad, 3*dim)

        ctx_rows = []
        for g in range(G):                    # static, small
            r0 = g * S_pad                    # 8-aligned per-image row offset
            heads_ctx = []
            for h in range(heads):
                q = qkv[r0:r0 + S_pad, h * dh:(h + 1) * dh]                     # (S_pad, dh)
                k = qkv[r0:r0 + S, dim + h * dh:dim + (h + 1) * dh]             # (S, dh)
                v = qkv[r0:r0 + S, 2 * dim + h * dh:2 * dim + (h + 1) * dh]     # (S, dh)
                s = jnp.dot(q, k.T, preferred_element_type=f32) * scale         # (S_pad, S)
                m = jnp.max(s, axis=-1, keepdims=True)
                p = jnp.exp(s - m)
                p = p / jnp.sum(p, axis=-1, keepdims=True)      # exact softmax (torch parity)
                heads_ctx.append(jnp.dot(p, v, preferred_element_type=f32))     # (S_pad, dh)
            ctx_rows.append(jnp.concatenate(heads_ctx, axis=-1))                # (S_pad, dim)
        ctx = ctx_rows[0] if G == 1 else jnp.concatenate(ctx_rows, axis=0)      # (G*S_pad, dim)

        # concat-over-heads + out-projection == one (R,dim)x(dim,dim) matmul
        tok = tok + jnp.dot(ctx, wm[:, 3 * dim:4 * dim],
                            preferred_element_type=f32) + b_out

        # --- PreNorm MLP (exact erf GELU, matches torch.nn.GELU) + residual ---
        y = ln(tok, ln2_g, ln2_b)
        h1 = jnp.dot(y, wm[:, 4 * dim:4 * dim + mlp_dim],
                     preferred_element_type=f32) + b_ff1
        h1 = 0.5 * h1 * (1.0 + lax.erf(h1 * 0.7071067811865476))
        tok = tok + jnp.dot(h1, wff2_ref[l], preferred_element_type=f32) + b_ff2

    # up_conv1d: Conv1d(N -> 100, kernel=1) over the patch tokens, then
    # LayerNorm(dim), per image.  The conv-weight columns for the cls row and
    # the pad rows are zero, and the Conv1d bias (constant along the normalized
    # axis) is exactly absorbed by the LayerNorm, so it is omitted.
    vfin = vecs_ref[depth]
    lnc_g, lnc_b = vfin[0:1, 0:dim], vfin[1:2, 0:dim]
    for g in range(G):
        tok_g = tok[g * S_pad:(g + 1) * S_pad, :]                         # (S_pad, dim)
        yc = jnp.dot(conv_w_ref[...], tok_g, preferred_element_type=f32)  # (100, dim)
        o_ref[g] = ln(yc, lnc_g, lnc_b)


# ----------------------------- parameter preparation --------------------------
def _prepare_weights(params, *, depth, dim, mlp_dim, S, S_pad):
    """Exact algebraic re-layout of the PyTorch-style parameters into 5 slabs."""
    L = params["layers"]

    # Embedding matrix: rows [0:patch_dim] = patch projection, rows [patch_dim:]
    # = per-position additive bias (row 0: cls + pos[0]; rows 1..: patch_b + pos).
    tok_bias = jnp.concatenate(
        [params["cls_token"][0] + params["pos_embedding"][0, 0:1],
         params["patch_b"][None, :] + params["pos_embedding"][0, 1:S]],
        axis=0)                                                           # (S, dim)
    emb_w = jnp.concatenate([params["patch_w"], tok_bias], axis=0)        # (patch_dim+S, dim)

    # One per-layer matrix slab sharing K=dim rows: [w_qkv | w_out | w_ff1].
    wcols = 4 * dim + mlp_dim
    wmat = jnp.zeros((depth, dim, wcols), jnp.float32)
    wff2 = jnp.zeros((depth, mlp_dim, dim), jnp.float32)
    for l, lyr in enumerate(L):
        wmat = wmat.at[l, :, 0:3 * dim].set(lyr["w_qkv"])
        wmat = wmat.at[l, :, 3 * dim:4 * dim].set(lyr["w_out"])
        wmat = wmat.at[l, :, 4 * dim:4 * dim + mlp_dim].set(lyr["w_ff1"])
        wff2 = wff2.at[l].set(lyr["w_ff2"])

    # All LayerNorm scales/shifts and biases packed into one lane-dense slab.
    # Per layer rows: [ln1_g, ln1_b, ln2_g, ln2_b, b_out, b_ff2, b_ff1];
    # slab row `depth` carries the final (post-conv) LayerNorm params.
    vecs = jnp.zeros((depth + 1, 8, 128), jnp.float32)
    for l, lyr in enumerate(L):
        vecs = vecs.at[l, 0, :dim].set(lyr["ln1_g"])
        vecs = vecs.at[l, 1, :dim].set(lyr["ln1_b"])
        vecs = vecs.at[l, 2, :dim].set(lyr["ln2_g"])
        vecs = vecs.at[l, 3, :dim].set(lyr["ln2_b"])
        vecs = vecs.at[l, 4, :dim].set(lyr["b_out"])
        vecs = vecs.at[l, 5, :dim].set(lyr["b_ff2"])
        vecs = vecs.at[l, 6, :mlp_dim].set(lyr["b_ff1"])
    vecs = vecs.at[depth, 0, :dim].set(params["ln_c_g"])
    vecs = vecs.at[depth, 1, :dim].set(params["ln_c_b"])

    # Fold "drop cls token" and the per-image row padding into zero columns of
    # the 1x1 conv weight.  (Conv1d bias is exactly absorbed by the LayerNorm.)
    conv_w = jnp.zeros((UP_CHANNELS, S_pad), jnp.float32)
    conv_w = conv_w.at[:, 1:S].set(params["conv_w"])

    return emb_w, wmat, wff2, vecs, conv_w


def init_params(key):
    cfg = CONFIG
    dim, heads, depth, mlp_dim = cfg["dim"], cfg["heads"], cfg["depth"], cfg["mlp_dim"]
    p = cfg["patch_size"]
    n_patches = (cfg["image_size"] // p) ** 2
    patch_dim = CHANNELS * p * p

    def nrm(k, shape, scale=0.02):
        return scale * jax.random.normal(k, shape, dtype=jnp.float32)

    keys = iter(jax.random.split(key, 8 + 10 * depth))
    params = {
        "patch_w": nrm(next(keys), (patch_dim, dim)),
        "patch_b": jnp.zeros((dim,), jnp.float32),
        "cls_token": nrm(next(keys), (1, 1, dim)),
        "pos_embedding": nrm(next(keys), (1, n_patches + 1, dim)),
        "conv_w": nrm(next(keys), (UP_CHANNELS, n_patches)),
        "conv_b": jnp.zeros((UP_CHANNELS,), jnp.float32),  # absorbed by LayerNorm (exact)
        "ln_c_g": jnp.ones((dim,), jnp.float32),
        "ln_c_b": jnp.zeros((dim,), jnp.float32),
        "layers": [],
    }
    for _ in range(depth):
        params["layers"].append({
            "ln1_g": jnp.ones((dim,), jnp.float32),
            "ln1_b": jnp.zeros((dim,), jnp.float32),
            "w_qkv": nrm(next(keys), (dim, 3 * dim)),        # no bias (lucidrains ViT)
            "w_out": nrm(next(keys), (dim, dim)),
            "b_out": jnp.zeros((dim,), jnp.float32),
            "ln2_g": jnp.ones((dim,), jnp.float32),
            "ln2_b": jnp.zeros((dim,), jnp.float32),
            "w_ff1": nrm(next(keys), (dim, mlp_dim)),
            "b_ff1": jnp.zeros((mlp_dim,), jnp.float32),
            "w_ff2": nrm(next(keys), (mlp_dim, dim)),
            "b_ff2": jnp.zeros((dim,), jnp.float32),
        })
    return params


# ----------------------------- forward pass -----------------------------------
def vit_extracter_forward(params, x):
    cfg = CONFIG
    B, C, H, W = x.shape
    p = cfg["patch_size"]
    dim, heads, depth, mlp_dim = cfg["dim"], cfg["heads"], cfg["depth"], cfg["mlp_dim"]
    dh = dim // heads
    hp, wp = H // p, W // p
    N = hp * wp
    S = N + 1
    S_pad = ((S + 7) // 8) * 8          # 8-aligned per-image row stride in the fused slab
    patch_dim = C * p * p
    pd_ext = patch_dim + S

    # Images per grid step: keep >=2 grid steps when possible so both v7x
    # TensorCores get work (dimension_semantics=("parallel",)); otherwise a
    # single step. Within a step all G images share the fat matmuls.
    num_steps = 2 if B >= 2 else 1
    G = pl.cdiv(B, num_steps)
    B_pad = num_steps * G

    # patchify 'b c (h p1) (w p2) -> b (h w) (p1 p2 c)', prepend one zero row
    # per image (cls-token slot), append S identity-indicator columns (folds
    # the per-row cls/pos/patch-bias add into the embedding matmul), pad rows
    # to S_pad and batch to B_pad, then flatten G images per grid step.
    xp = x.reshape(B, C, hp, p, wp, p).transpose(0, 2, 4, 3, 5, 1).reshape(B, N, patch_dim)
    xp = jnp.pad(xp, ((0, 0), (1, 0), (0, 0)))                       # (B, S, patch_dim)
    eye = jnp.broadcast_to(jnp.eye(S, dtype=xp.dtype), (B, S, S))
    xp = jnp.concatenate([xp, eye], axis=-1)                         # (B, S, pd_ext)
    xp = jnp.pad(xp, ((0, B_pad - B), (0, S_pad - S), (0, 0)))       # (B_pad, S_pad, pd_ext)
    xp = xp.reshape(num_steps, G * S_pad, pd_ext)

    weights = _prepare_weights(params, depth=depth, dim=dim, mlp_dim=mlp_dim,
                               S=S, S_pad=S_pad)

    def _const_spec(a):
        nd = a.ndim
        return pl.BlockSpec(a.shape, lambda s, _nd=nd: (0,) * _nd)

    # TODO(synk): the ViT classification-head output is discarded by the module
    # (`_, x = self.backbone(x)`), so it is intentionally not computed.
    out = pl.pallas_call(
        functools.partial(_fused_vit_kernel, depth=depth, heads=heads, dh=dh,
                          dim=dim, mlp_dim=mlp_dim, S=S, S_pad=S_pad, G=G, eps=1e-5),
        out_shape=jax.ShapeDtypeStruct((B_pad, UP_CHANNELS, dim), jnp.float32),
        grid=(num_steps,),
        in_specs=[pl.BlockSpec((1, G * S_pad, pd_ext), lambda s: (s, 0, 0))]
                 + [_const_spec(a) for a in weights],
        out_specs=pl.BlockSpec((G, UP_CHANNELS, dim), lambda s: (s, 0, 0)),
        compiler_params=pltpu.CompilerParams(dimension_semantics=("parallel",)),
    )(xp, *weights)
    return out[:B]


if __name__ == "__main__":
    root = jax.random.PRNGKey(0)
    k_params, k_x = jax.random.split(root)
    params = init_params(k_params)
    x = jax.random.normal(k_x, (2, CHANNELS, CONFIG["image_size"], CONFIG["image_size"]),
                          dtype=jnp.float32)

    fwd = jax.jit(lambda inp: vit_extracter_forward(params, inp))
    out = jax.block_until_ready(fwd(x))

    assert out.shape == (2, UP_CHANNELS, CONFIG["dim"]), out.shape
    assert bool(jnp.all(jnp.isfinite(out)))
    print("KERNEL_OK")
</pallas_src>

<mosaic_0001>
module attributes {stable_mosaic.version = 11 : i64} {
  func.func @_fused_vit_kernel(%arg0: i32, %arg1: memref<1x24x65xf32, #tpu.memory_space<vmem>>, %arg2: memref<65x32xf32, #tpu.memory_space<vmem>>, %arg3: memref<2x32x192xf32, #tpu.memory_space<vmem>>, %arg4: memref<2x64x32xf32, #tpu.memory_space<vmem>>, %arg5: memref<3x8x128xf32, #tpu.memory_space<vmem>>, %arg6: memref<100x24xf32, #tpu.memory_space<vmem>>, %arg7: memref<1x100x32xf32, #tpu.memory_space<vmem>>) attributes {dimension_semantics = [#tpu.dimension_semantics<parallel>], iteration_bounds = array<i64: 2>, scalar_prefetch = 0 : i64, scratch_operands = 0 : i64, tpu.core_type = #tpu.core_type<tc>, window_params = [{transform_indices = @transform_0, window_bounds = array<i64: 1, 24, 65>}, {pipeline_mode = #tpu.pipeline_mode<synchronous>, transform_indices = @transform_1, window_bounds = array<i64: 65, 32>}, {pipeline_mode = #tpu.pipeline_mode<synchronous>, transform_indices = @transform_2, window_bounds = array<i64: 2, 32, 192>}, {pipeline_mode = #tpu.pipeline_mode<synchronous>, transform_indices = @transform_3, window_bounds = array<i64: 2, 64, 32>}, {pipeline_mode = #tpu.pipeline_mode<synchronous>, transform_indices = @transform_4, window_bounds = array<i64: 3, 8, 128>}, {pipeline_mode = #tpu.pipeline_mode<synchronous>, transform_indices = @transform_5, window_bounds = array<i64: 100, 24>}, {transform_indices = @transform_6, window_bounds = array<i64: 1, 100, 32>}]} {
    %c0 = arith.constant 0 : index
    %c0_0 = arith.constant 0 : index
    %c0_1 = arith.constant 0 : index
    %0 = vector.load %arg1[%c0, %c0_0, %c0_1] : memref<1x24x65xf32, #tpu.memory_space<vmem>>, vector<1x24x65xf32>
    %1 = vector.shape_cast %0 : vector<1x24x65xf32> to vector<24x65xf32>
    %c0_2 = arith.constant 0 : index
    %c0_3 = arith.constant 0 : index
    %2 = vector.load %arg2[%c0_2, %c0_3] : memref<65x32xf32, #tpu.memory_space<vmem>>, vector<65x32xf32>
    %cst = arith.constant dense<0.000000e+00> : vector<24x32xf32>
    %3 = tpu.matmul %1, %2, %cst {dimension_numbers = #tpu.dot_dimension_numbers<[1], [0], [0], [1], [0, 0, 1, 1], [], []>} : vector<24x65xf32>, vector<65x32xf32>, vector<24x32xf32> -> vector<24x32xf32>
    %c0_4 = arith.constant 0 : index
    %c0_5 = arith.constant 0 : index
    %c0_6 = arith.constant 0 : index
    %4 = vector.load %arg3[%c0_4, %c0_5, %c0_6] : memref<2x32x192xf32, #tpu.memory_space<vmem>>, vector<1x32x192xf32>
    %5 = vector.shape_cast %4 : vector<1x32x192xf32> to vector<32x192xf32>
    %c0_7 = arith.constant 0 : index
    %c0_8 = arith.constant 0 : index
    %c0_9 = arith.constant 0 : index
    %6 = vector.load %arg5[%c0_7, %c0_8, %c0_9] : memref<3x8x128xf32, #tpu.memory_space<vmem>>, vector<1x8x128xf32>
    %7 = vector.shape_cast %6 : vector<1x8x128xf32> to vector<8x128xf32>
    %8 = vector.extract_strided_slice %7 {offsets = [0, 0], sizes = [1, 32], strides = [1, 1]} : vector<8x128xf32> to vector<1x32xf32>
    %9 = vector.extract_strided_slice %7 {offsets = [1, 0], sizes = [1, 32], strides = [1, 1]} : vector<8x128xf32> to vector<1x32xf32>
    %10 = vector.extract_strided_slice %7 {offsets = [2, 0], sizes = [1, 32], strides = [1, 1]} : vector<8x128xf32> to vector<1x32xf32>
    %11 = vector.extract_strided_slice %7 {offsets = [3, 0], sizes = [1, 32], strides = [1, 1]} : vector<8x128xf32> to vector<1x32xf32>
    %12 = vector.extract_strided_slice %7 {offsets = [4, 0], sizes = [1, 32], strides = [1, 1]} : vector<8x128xf32> to vector<1x32xf32>
    %13 = vector.extract_strided_slice %7 {offsets = [5, 0], sizes = [1, 32], strides = [1, 1]} : vector<8x128xf32> to vector<1x32xf32>
    %14 = vector.extract_strided_slice %7 {offsets = [6, 0], sizes = [1, 64], strides = [1, 1]} : vector<8x128xf32> to vector<1x64xf32>
    %cst_10 = arith.constant dense<0.000000e+00> : vector<24xf32>
    %15 = vector.multi_reduction <add>, %3, %cst_10 [1] : vector<24x32xf32> to vector<24xf32>
    %16 = vector.shape_cast %15 : vector<24xf32> to vector<24x1xf32>
    %cst_11 = arith.constant 3.200000e+01 : f32
    %17 = vector.broadcast %cst_11 : f32 to vector<24x1xf32>
    %18 = arith.divf %16, %17 : vector<24x1xf32>
    %19 = vector.broadcast %18 : vector<24x1xf32> to vector<24x32xf32>
    %20 = arith.subf %3, %19 : vector<24x32xf32>
    %21 = arith.mulf %20, %20 : vector<24x32xf32>
    %cst_12 = arith.constant dense<0.000000e+00> : vector<24xf32>
    %22 = vector.multi_reduction <add>, %21, %cst_12 [1] : vector<24x32xf32> to vector<24xf32>
    %23 = vector.shape_cast %22 : vector<24xf32> to vector<24x1xf32>
    %cst_13 = arith.constant 3.200000e+01 : f32
    %24 = vector.broadcast %cst_13 : f32 to vector<24x1xf32>
    %25 = arith.divf %23, %24 : vector<24x1xf32>
    %cst_14 = arith.constant 9.99999974E-6 : f32
    %26 = vector.broadcast %cst_14 : f32 to vector<24x1xf32>
    %27 = arith.addf %25, %26 : vector<24x1xf32>
    %28 = math.rsqrt %27 : vector<24x1xf32>
    %29 = vector.broadcast %28 : vector<24x1xf32> to vector<24x32xf32>
    %30 = arith.mulf %20, %29 : vector<24x32xf32>
    %31 = vector.broadcast %8 : vector<1x32xf32> to vector<24x32xf32>
    %32 = arith.mulf %30, %31 : vector<24x32xf32>
    %33 = vector.broadcast %9 : vector<1x32xf32> to vector<24x32xf32>
    %34 = arith.addf %32, %33 : vector<24x32xf32>
    %35 = vector.extract_strided_slice %5 {offsets = [0, 0], sizes = [32, 96], strides = [1, 1]} : vector<32x192xf32> to vector<32x96xf32>
    %cst_15 = arith.constant dense<0.000000e+00> : vector<24x96xf32>
    %36 = tpu.matmul %34, %35, %cst_15 {dimension_numbers = #tpu.dot_dimension_numbers<[1], [0], [0], [1], [0, 0, 1, 1], [], []>} : vector<24x32xf32>, vector<32x96xf32>, vector<24x96xf32> -> vector<24x96xf32>
    %37 = vector.extract_strided_slice %36 {offsets = [0, 0], sizes = [24, 8], strides = [1, 1]} : vector<24x96xf32> to vector<24x8xf32>
    %38 = vector.extract_strided_slice %36 {offsets = [0, 32], sizes = [17, 8], strides = [1, 1]} : vector<24x96xf32> to vector<17x8xf32>
    %39 = vector.extract_strided_slice %36 {offsets = [0, 64], sizes = [17, 8], strides = [1, 1]} : vector<24x96xf32> to vector<17x8xf32>
    %40 = tpu.transpose %38, [1, 0] : vector<17x8xf32> -> vector<8x17xf32>
    %cst_16 = arith.constant dense<0.000000e+00> : vector<24x17xf32>
    %41 = tpu.matmul %37, %40, %cst_16 {dimension_numbers = #tpu.dot_dimension_numbers<[1], [0], [0], [1], [0, 0, 1, 1], [], []>} : vector<24x8xf32>, vector<8x17xf32>, vector<24x17xf32> -> vector<24x17xf32>
    %cst_17 = arith.constant 0.353553385 : f32
    %42 = vector.broadcast %cst_17 : f32 to vector<24x17xf32>
    %43 = arith.mulf %41, %42 : vector<24x17xf32>
    %cst_18 = arith.constant dense<0xFF800000> : vector<24xf32>
    %44 = vector.multi_reduction <maximumf>, %43, %cst_18 [1] : vector<24x17xf32> to vector<24xf32>
    %45 = vector.shape_cast %44 : vector<24xf32> to vector<24x1xf32>
    %46 = vector.broadcast %45 : vector<24x1xf32> to vector<24x17xf32>
    %47 = arith.subf %43, %46 : vector<24x17xf32>
    %48 = math.exp %47 : vector<24x17xf32>
    %cst_19 = arith.constant dense<0.000000e+00> : vector<24xf32>
    %49 = vector.multi_reduction <add>, %48, %cst_19 [1] : vector<24x17xf32> to vector<24xf32>
    %50 = vector.shape_cast %49 : vector<24xf32> to vector<24x1xf32>
    %51 = vector.broadcast %50 : vector<24x1xf32> to vector<24x17xf32>
    %52 = arith.divf %48, %51 : vector<24x17xf32>
    %cst_20 = arith.constant dense<0.000000e+00> : vector<24x8xf32>
    %53 = tpu.matmul %52, %39, %cst_20 {dimension_numbers = #tpu.dot_dimension_numbers<[1], [0], [0], [1], [0, 0, 1, 1], [], []>} : vector<24x17xf32>, vector<17x8xf32>, vector<24x8xf32> -> vector<24x8xf32>
    %54 = vector.extract_strided_slice %36 {offsets = [0, 8], sizes = [24, 8], strides = [1, 1]} : vector<24x96xf32> to vector<24x8xf32>
    %55 = vector.extract_strided_slice %36 {offsets = [0, 40], sizes = [17, 8], strides = [1, 1]} : vector<24x96xf32> to vector<17x8xf32>
    %56 = vector.extract_strided_slice %36 {offsets = [0, 72], sizes = [17, 8], strides = [1, 1]} : vector<24x96xf32> to vector<17x8xf32>
    %57 = tpu.transpose %55, [1, 0] : vector<17x8xf32> -> vector<8x17xf32>
    %cst_21 = arith.constant dense<0.000000e+00> : vector<24x17xf32>
    %58 = tpu.matmul %54, %57, %cst_21 {dimension_numbers = #tpu.dot_dimension_numbers<[1], [0], [0], [1], [0, 0, 1, 1], [], []>} : vector<24x8xf32>, vector<8x17xf32>, vector<24x17xf32> -> vector<24x17xf32>
    %cst_22 = arith.constant 0.353553385 : f32
    %59 = vector.broadcast %cst_22 : f32 to vector<24x17xf32>
    %60 = arith.mulf %58, %59 : vector<24x17xf32>
    %cst_23 = arith.constant dense<0xFF800000> : vector<24xf32>
    %61 = vector.multi_reduction <maximumf>, %60, %cst_23 [1] : vector<24x17xf32> to vector<24xf32>
    %62 = vector.shape_cast %61 : vector<24xf32> to vector<24x1xf32>
    %63 = vector.broadcast %62 : vector<24x1xf32> to vector<24x17xf32>
    %64 = arith.subf %60, %63 : vector<24x17xf32>
    %65 = math.exp %64 : vector<24x17xf32>
    %cst_24 = arith.constant dense<0.000000e+00> : vector<24xf32>
    %66 = vector.multi_reduction <add>, %65, %cst_24 [1] : vector<24x17xf32> to vector<24xf32>
    %67 = vector.shape_cast %66 : vector<24xf32> to vector<24x1xf32>
    %68 = vector.broadcast %67 : vector<24x1xf32> to vector<24x17xf32>
    %69 = arith.divf %65, %68 : vector<24x17xf32>
    %cst_25 = arith.constant dense<0.000000e+00> : vector<24x8xf32>
    %70 = tpu.matmul %69, %56, %cst_25 {dimension_numbers = #tpu.dot_dimension_numbers<[1], [0], [0], [1], [0, 0, 1, 1], [], []>} : vector<24x17xf32>, vector<17x8xf32>, vector<24x8xf32> -> vector<24x8xf32>
    %71 = vector.extract_strided_slice %36 {offsets = [0, 16], sizes = [24, 8], strides = [1, 1]} : vector<24x96xf32> to vector<24x8xf32>
    %72 = vector.extract_strided_slice %36 {offsets = [0, 48], sizes = [17, 8], strides = [1, 1]} : vector<24x96xf32> to vector<17x8xf32>
    %73 = vector.extract_strided_slice %36 {offsets = [0, 80], sizes = [17, 8], strides = [1, 1]} : vector<24x96xf32> to vector<17x8xf32>
    %74 = tpu.transpose %72, [1, 0] : vector<17x8xf32> -> vector<8x17xf32>
    %cst_26 = arith.constant dense<0.000000e+00> : vector<24x17xf32>
    %75 = tpu.matmul %71, %74, %cst_26 {dimension_numbers = #tpu.dot_dimension_numbers<[1], [0], [0], [1], [0, 0, 1, 1], [], []>} : vector<24x8xf32>, vector<8x17xf32>, vector<24x17xf32> -> vector<24x17xf32>
    %cst_27 = arith.constant 0.353553385 : f32
    %76 = vector.broadcast %cst_27 : f32 to vector<24x17xf32>
    %77 = arith.mulf %75, %76 : vector<24x17xf32>
    %cst_28 = arith.constant dense<0xFF800000> : vector<24xf32>
    %78 = vector.multi_reduction <maximumf>, %77, %cst_28 [1] : vector<24x17xf32> to vector<24xf32>
    %79 = vector.shape_cast %78 : vector<24xf32> to vector<24x1xf32>
    %80 = vector.broadcast %79 : vector<24x1xf32> to vector<24x17xf32>
    %81 = arith.subf %77, %80 : vector<24x17xf32>
    %82 = math.exp %81 : vector<24x17xf32>
    %cst_29 = arith.constant dense<0.000000e+00> : vector<24xf32>
    %83 = vector.multi_reduction <add>, %82, %cst_29 [1] : vector<24x17xf32> to vector<24xf32>
    %84 = vector.shape_cast %83 : vector<24xf32> to vector<24x1xf32>
    %85 = vector.broadcast %84 : vector<24x1xf32> to vector<24x17xf32>
    %86 = arith.divf %82, %85 : vector<24x17xf32>
    %cst_30 = arith.constant dense<0.000000e+00> : vector<24x8xf32>
    %87 = tpu.matmul %86, %73, %cst_30 {dimension_numbers = #tpu.dot_dimension_numbers<[1], [0], [0], [1], [0, 0, 1, 1], [], []>} : vector<24x17xf32>, vector<17x8xf32>, vector<24x8xf32> -> vector<24x8xf32>
    %88 = vector.extract_strided_slice %36 {offsets = [0, 24], sizes = [24, 8], strides = [1, 1]} : vector<24x96xf32> to vector<24x8xf32>
    %89 = vector.extract_strided_slice %36 {offsets = [0, 56], sizes = [17, 8], strides = [1, 1]} : vector<24x96xf32> to vector<17x8xf32>
    %90 = vector.extract_strided_slice %36 {offsets = [0, 88], sizes = [17, 8], strides = [1, 1]} : vector<24x96xf32> to vector<17x8xf32>
    %91 = tpu.transpose %89, [1, 0] : vector<17x8xf32> -> vector<8x17xf32>
    %cst_31 = arith.constant dense<0.000000e+00> : vector<24x17xf32>
    %92 = tpu.matmul %88, %91, %cst_31 {dimension_numbers = #tpu.dot_dimension_numbers<[1], [0], [0], [1], [0, 0, 1, 1], [], []>} : vector<24x8xf32>, vector<8x17xf32>, vector<24x17xf32> -> vector<24x17xf32>
    %cst_32 = arith.constant 0.353553385 : f32
    %93 = vector.broadcast %cst_32 : f32 to vector<24x17xf32>
    %94 = arith.mulf %92, %93 : vector<24x17xf32>
    %cst_33 = arith.constant dense<0xFF800000> : vector<24xf32>
    %95 = vector.multi_reduction <maximumf>, %94, %cst_33 [1] : vector<24x17xf32> to vector<24xf32>
    %96 = vector.shape_cast %95 : vector<24xf32> to vector<24x1xf32>
    %97 = vector.broadcast %96 : vector<24x1xf32> to vector<24x17xf32>
    %98 = arith.subf %94, %97 : vector<24x17xf32>
    %99 = math.exp %98 : vector<24x17xf32>
    %cst_34 = arith.constant dense<0.000000e+00> : vector<24xf32>
    %100 = vector.multi_reduction <add>, %99, %cst_34 [1] : vector<24x17xf32> to vector<24xf32>
    %101 = vector.shape_cast %100 : vector<24xf32> to vector<24x1xf32>
    %102 = vector.broadcast %101 : vector<24x1xf32> to vector<24x17xf32>
    %103 = arith.divf %99, %102 : vector<24x17xf32>
    %cst_35 = arith.constant dense<0.000000e+00> : vector<24x8xf32>
    %104 = tpu.matmul %103, %90, %cst_35 {dimension_numbers = #tpu.dot_dimension_numbers<[1], [0], [0], [1], [0, 0, 1, 1], [], []>} : vector<24x17xf32>, vector<17x8xf32>, vector<24x8xf32> -> vector<24x8xf32>
    %105 = tpu.concatenate %53, %70, %87, %104 in 1 : vector<24x8xf32>, vector<24x8xf32>, vector<24x8xf32>, vector<24x8xf32> -> vector<24x32xf32>
    %106 = vector.extract_strided_slice %5 {offsets = [0, 96], sizes = [32, 32], strides = [1, 1]} : vector<32x192xf32> to vector<32x32xf32>
    %cst_36 = arith.constant dense<0.000000e+00> : vector<24x32xf32>
    %107 = tpu.matmul %105, %106, %cst_36 {dimension_numbers = #tpu.dot_dimension_numbers<[1], [0], [0], [1], [0, 0, 1, 1], [], []>} : vector<24x32xf32>, vector<32x32xf32>, vector<24x32xf32> -> vector<24x32xf32>
    %108 = arith.addf %3, %107 : vector<24x32xf32>
    %109 = vector.broadcast %12 : vector<1x32xf32> to vector<24x32xf32>
    %110 = arith.addf %108, %109 : vector<24x32xf32>
    %cst_37 = arith.constant dense<0.000000e+00> : vector<24xf32>
    %111 = vector.multi_reduction <add>, %110, %cst_37 [1] : vector<24x32xf32> to vector<24xf32>
    %112 = vector.shape_cast %111 : vector<24xf32> to vector<24x1xf32>
    %cst_38 = arith.constant 3.200000e+01 : f32
    %113 = vector.broadcast %cst_38 : f32 to vector<24x1xf32>
    %114 = arith.divf %112, %113 : vector<24x1xf32>
    %115 = vector.broadcast %114 : vector<24x1xf32> to vector<24x32xf32>
    %116 = arith.subf %110, %115 : vector<24x32xf32>
    %117 = arith.mulf %116, %116 : vector<24x32xf32>
    %cst_39 = arith.constant dense<0.000000e+00> : vector<24xf32>
    %118 = vector.multi_reduction <add>, %117, %cst_39 [1] : vector<24x32xf32> to vector<24xf32>
    %119 = vector.shape_cast %118 : vector<24xf32> to vector<24x1xf32>
    %cst_40 = arith.constant 3.200000e+01 : f32
    %120 = vector.broadcast %cst_40 : f32 to vector<24x1xf32>
    %121 = arith.divf %119, %120 : vector<24x1xf32>
    %cst_41 = arith.constant 9.99999974E-6 : f32
    %122 = vector.broadcast %cst_41 : f32 to vector<24x1xf32>
    %123 = arith.addf %121, %122 : vector<24x1xf32>
    %124 = math.rsqrt %123 : vector<24x1xf32>
    %125 = vector.broadcast %124 : vector<24x1xf32> to vector<24x32xf32>
    %126 = arith.mulf %116, %125 : vector<24x32xf32>
    %127 = vector.broadcast %10 : vector<1x32xf32> to vector<24x32xf32>
    %128 = arith.mulf %126, %127 : vector<24x32xf32>
    %129 = vector.broadcast %11 : vector<1x32xf32> to vector<24x32xf32>
    %130 = arith.addf %128, %129 : vector<24x32xf32>
    %131 = vector.extract_strided_slice %5 {offsets = [0, 128], sizes = [32, 64], strides = [1, 1]} : vector<32x192xf32> to vector<32x64xf32>
    %cst_42 = arith.constant dense<0.000000e+00> : vector<24x64xf32>
    %132 = tpu.matmul %130, %131, %cst_42 {dimension_numbers = #tpu.dot_dimension_numbers<[1], [0], [0], [1], [0, 0, 1, 1], [], []>} : vector<24x32xf32>, vector<32x64xf32>, vector<24x64xf32> -> vector<24x64xf32>
    %133 = vector.broadcast %14 : vector<1x64xf32> to vector<24x64xf32>
    %134 = arith.addf %132, %133 : vector<24x64xf32>
    %cst_43 = arith.constant 5.000000e-01 : f32
    %135 = vector.broadcast %cst_43 : f32 to vector<24x64xf32>
    %136 = arith.mulf %135, %134 : vector<24x64xf32>
    %cst_44 = arith.constant 0.707106769 : f32
    %137 = vector.broadcast %cst_44 : f32 to vector<24x64xf32>
    %138 = arith.mulf %134, %137 : vector<24x64xf32>
    %139 = math.erf %138 : vector<24x64xf32>
    %cst_45 = arith.constant 1.000000e+00 : f32
    %140 = vector.broadcast %cst_45 : f32 to vector<24x64xf32>
    %141 = arith.addf %140, %139 : vector<24x64xf32>
    %142 = arith.mulf %136, %141 : vector<24x64xf32>
    %c0_46 = arith.constant 0 : index
    %c0_47 = arith.constant 0 : index
    %c0_48 = arith.constant 0 : index
    %143 = vector.load %arg4[%c0_46, %c0_47, %c0_48] : memref<2x64x32xf32, #tpu.memory_space<vmem>>, vector<1x64x32xf32>
    %144 = vector.shape_cast %143 : vector<1x64x32xf32> to vector<64x32xf32>
    %cst_49 = arith.constant dense<0.000000e+00> : vector<24x32xf32>
    %145 = tpu.matmul %142, %144, %cst_49 {dimension_numbers = #tpu.dot_dimension_numbers<[1], [0], [0], [1], [0, 0, 1, 1], [], []>} : vector<24x64xf32>, vector<64x32xf32>, vector<24x32xf32> -> vector<24x32xf32>
    %146 = arith.addf %110, %145 : vector<24x32xf32>
    %147 = vector.broadcast %13 : vector<1x32xf32> to vector<24x32xf32>
    %148 = arith.addf %146, %147 : vector<24x32xf32>
    %c1 = arith.constant 1 : index
    %c0_50 = arith.constant 0 : index
    %c0_51 = arith.constant 0 : index
    %149 = vector.load %arg3[%c1, %c0_50, %c0_51] : memref<2x32x192xf32, #tpu.memory_space<vmem>>, vector<1x32x192xf32>
    %150 = vector.shape_cast %149 : vector<1x32x192xf32> to vector<32x192xf32>
    %c1_52 = arith.constant 1 : index
    %c0_53 = arith.constant 0 : index
    %c0_54 = arith.constant 0 : index
    %151 = vector.load %arg5[%c1_52, %c0_53, %c0_54] : memref<3x8x128xf32, #tpu.memory_space<vmem>>, vector<1x8x128xf32>
    %152 = vector.shape_cast %151 : vector<1x8x128xf32> to vector<8x128xf32>
    %153 = vector.extract_strided_slice %152 {offsets = [0, 0], sizes = [1, 32], strides = [1, 1]} : vector<8x128xf32> to vector<1x32xf32>
    %154 = vector.extract_strided_slice %152 {offsets = [1, 0], sizes = [1, 32], strides = [1, 1]} : vector<8x128xf32> to vector<1x32xf32>
    %155 = vector.extract_strided_slice %152 {offsets = [2, 0], sizes = [1, 32], strides = [1, 1]} : vector<8x128xf32> to vector<1x32xf32>
    %156 = vector.extract_strided_slice %152 {offsets = [3, 0], sizes = [1, 32], strides = [1, 1]} : vector<8x128xf32> to vector<1x32xf32>
    %157 = vector.extract_strided_slice %152 {offsets = [4, 0], sizes = [1, 32], strides = [1, 1]} : vector<8x128xf32> to vector<1x32xf32>
    %158 = vector.extract_strided_slice %152 {offsets = [5, 0], sizes = [1, 32], strides = [1, 1]} : vector<8x128xf32> to vector<1x32xf32>
    %159 = vector.extract_strided_slice %152 {offsets = [6, 0], sizes = [1, 64], strides = [1, 1]} : vector<8x128xf32> to vector<1x64xf32>
    %cst_55 = arith.constant dense<0.000000e+00> : vector<24xf32>
    %160 = vector.multi_reduction <add>, %148, %cst_55 [1] : vector<24x32xf32> to vector<24xf32>
    %161 = vector.shape_cast %160 : vector<24xf32> to vector<24x1xf32>
    %cst_56 = arith.constant 3.200000e+01 : f32
    %162 = vector.broadcast %cst_56 : f32 to vector<24x1xf32>
    %163 = arith.divf %161, %162 : vector<24x1xf32>
    %164 = vector.broadcast %163 : vector<24x1xf32> to vector<24x32xf32>
    %165 = arith.subf %148, %164 : vector<24x32xf32>
    %166 = arith.mulf %165, %165 : vector<24x32xf32>
    %cst_57 = arith.constant dense<0.000000e+00> : vector<24xf32>
    %167 = vector.multi_reduction <add>, %166, %cst_57 [1] : vector<24x32xf32> to vector<24xf32>
    %168 = vector.shape_cast %167 : vector<24xf32> to vector<24x1xf32>
    %cst_58 = arith.constant 3.200000e+01 : f32
    %169 = vector.broadcast %cst_58 : f32 to vector<24x1xf32>
    %170 = arith.divf %168, %169 : vector<24x1xf32>
    %cst_59 = arith.constant 9.99999974E-6 : f32
    %171 = vector.broadcast %cst_59 : f32 to vector<24x1xf32>
    %172 = arith.addf %170, %171 : vector<24x1xf32>
    %173 = math.rsqrt %172 : vector<24x1xf32>
    %174 = vector.broadcast %173 : vector<24x1xf32> to vector<24x32xf32>
    %175 = arith.mulf %165, %174 : vector<24x32xf32>
    %176 = vector.broadcast %153 : vector<1x32xf32> to vector<24x32xf32>
    %177 = arith.mulf %175, %176 : vector<24x32xf32>
    %178 = vector.broadcast %154 : vector<1x32xf32> to vector<24x32xf32>
    %179 = arith.addf %177, %178 : vector<24x32xf32>
    %180 = vector.extract_strided_slice %150 {offsets = [0, 0], sizes = [32, 96], strides = [1, 1]} : vector<32x192xf32> to vector<32x96xf32>
    %cst_60 = arith.constant dense<0.000000e+00> : vector<24x96xf32>
    %181 = tpu.matmul %179, %180, %cst_60 {dimension_numbers = #tpu.dot_dimension_numbers<[1], [0], [0], [1], [0, 0, 1, 1], [], []>} : vector<24x32xf32>, vector<32x96xf32>, vector<24x96xf32> -> vector<24x96xf32>
    %182 = vector.extract_strided_slice %181 {offsets = [0, 0], sizes = [24, 8], strides = [1, 1]} : vector<24x96xf32> to vector<24x8xf32>
    %183 = vector.extract_strided_slice %181 {offsets = [0, 32], sizes = [17, 8], strides = [1, 1]} : vector<24x96xf32> to vector<17x8xf32>
    %184 = vector.extract_strided_slice %181 {offsets = [0, 64], sizes = [17, 8], strides = [1, 1]} : vector<24x96xf32> to vector<17x8xf32>
    %185 = tpu.transpose %183, [1, 0] : vector<17x8xf32> -> vector<8x17xf32>
    %cst_61 = arith.constant dense<0.000000e+00> : vector<24x17xf32>
    %186 = tpu.matmul %182, %185, %cst_61 {dimension_numbers = #tpu.dot_dimension_numbers<[1], [0], [0], [1], [0, 0, 1, 1], [], []>} : vector<24x8xf32>, vector<8x17xf32>, vector<24x17xf32> -> vector<24x17xf32>
    %cst_62 = arith.constant 0.353553385 : f32
    %187 = vector.broadcast %cst_62 : f32 to vector<24x17xf32>
    %188 = arith.mulf %186, %187 : vector<24x17xf32>
    %cst_63 = arith.constant dense<0xFF800000> : vector<24xf32>
    %189 = vector.multi_reduction <maximumf>, %188, %cst_63 [1] : vector<24x17xf32> to vector<24xf32>
    %190 = vector.shape_cast %189 : vector<24xf32> to vector<24x1xf32>
    %191 = vector.broadcast %190 : vector<24x1xf32> to vector<24x17xf32>
    %192 = arith.subf %188, %191 : vector<24x17xf32>
    %193 = math.exp %192 : vector<24x17xf32>
    %cst_64 = arith.constant dense<0.000000e+00> : vector<24xf32>
    %194 = vector.multi_reduction <add>, %193, %cst_64 [1] : vector<24x17xf32> to vector<24xf32>
    %195 = vector.shape_cast %194 : vector<24xf32> to vector<24x1xf32>
    %196 = vector.broadcast %195 : vector<24x1xf32> to vector<24x17xf32>
    %197 = arith.divf %193, %196 : vector<24x17xf32>
    %cst_65 = arith.constant dense<0.000000e+00> : vector<24x8xf32>
    %198 = tpu.matmul %197, %184, %cst_65 {dimension_numbers = #tpu.dot_dimension_numbers<[1], [0], [0], [1], [0, 0, 1, 1], [], []>} : vector<24x17xf32>, vector<17x8xf32>, vector<24x8xf32> -> vector<24x8xf32>
    %199 = vector.extract_strided_slice %181 {offsets = [0, 8], sizes = [24, 8], strides = [1, 1]} : vector<24x96xf32> to vector<24x8xf32>
    %200 = vector.extract_strided_slice %181 {offsets = [0, 40], sizes = [17, 8], strides = [1, 1]} : vector<24x96xf32> to vector<17x8xf32>
    %201 = vector.extract_strided_slice %181 {offsets = [0, 72], sizes = [17, 8], strides = [1, 1]} : vector<24x96xf32> to vector<17x8xf32>
    %202 = tpu.transpose %200, [1, 0] : vector<17x8xf32> -> vector<8x17xf32>
    %cst_66 = arith.constant dense<0.000000e+00> : vector<24x17xf32>
    %203 = tpu.matmul %199, %202, %cst_66 {dimension_numbers = #tpu.dot_dimension_numbers<[1], [0], [0], [1], [0, 0, 1, 1], [], []>} : vector<24x8xf32>, vector<8x17xf32>, vector<24x17xf32> -> vector<24x17xf32>
    %cst_67 = arith.constant 0.353553385 : f32
    %204 = vector.broadcast %cst_67 : f32 to vector<24x17xf32>
    %205 = arith.mulf %203, %204 : vector<24x17xf32>
    %cst_68 = arith.constant dense<0xFF800000> : vector<24xf32>
    %206 = vector.multi_reduction <maximumf>, %205, %cst_68 [1] : vector<24x17xf32> to vector<24xf32>
    %207 = vector.shape_cast %206 : vector<24xf32> to vector<24x1xf32>
    %208 = vector.broadcast %207 : vector<24x1xf32> to vector<24x17xf32>
    %209 = arith.subf %205, %208 : vector<24x17xf32>
    %210 = math.exp %209 : vector<24x17xf32>
    %cst_69 = arith.constant dense<0.000000e+00> : vector<24xf32>
    %211 = vector.multi_reduction <add>, %210, %cst_69 [1] : vector<24x17xf32> to vector<24xf32>
    %212 = vector.shape_cast %211 : vector<24xf32> to vector<24x1xf32>
    %213 = vector.broadcast %212 : vector<24x1xf32> to vector<24x17xf32>
    %214 = arith.divf %210, %213 : vector<24x17xf32>
    %cst_70 = arith.constant dense<0.000000e+00> : vector<24x8xf32>
    %215 = tpu.matmul %214, %201, %cst_70 {dimension_numbers = #tpu.dot_dimension_numbers<[1], [0], [0], [1], [0, 0, 1, 1], [], []>} : vector<24x17xf32>, vector<17x8xf32>, vector<24x8xf32> -> vector<24x8xf32>
    %216 = vector.extract_strided_slice %181 {offsets = [0, 16], sizes = [24, 8], strides = [1, 1]} : vector<24x96xf32> to vector<24x8xf32>
    %217 = vector.extract_strided_slice %181 {offsets = [0, 48], sizes = [17, 8], strides = [1, 1]} : vector<24x96xf32> to vector<17x8xf32>
    %218 = vector.extract_strided_slice %181 {offsets = [0, 80], sizes = [17, 8], strides = [1, 1]} : vector<24x96xf32> to vector<17x8xf32>
    %219 = tpu.transpose %217, [1, 0] : vector<17x8xf32> -> vector<8x17xf32>
    %cst_71 = arith.constant dense<0.000000e+00> : vector<24x17xf32>
    %220 = tpu.matmul %216, %219, %cst_71 {dimension_numbers = #tpu.dot_dimension_numbers<[1], [0], [0], [1], [0, 0, 1, 1], [], []>} : vector<24x8xf32>, vector<8x17xf32>, vector<24x17xf32> -> vector<24x17xf32>
    %cst_72 = arith.constant 0.353553385 : f32
    %221 = vector.broadcast %cst_72 : f32 to vector<24x17xf32>
    %222 = arith.mulf %220, %221 : vector<24x17xf32>
    %cst_73 = arith.constant dense<0xFF800000> : vector<24xf32>
    %223 = vector.multi_reduction <maximumf>, %222, %cst_73 [1] : vector<24x17xf32> to vector<24xf32>
    %224 = vector.shape_cast %223 : vector<24xf32> to vector<24x1xf32>
    %225 = vector.broadcast %224 : vector<24x1xf32> to vector<24x17xf32>
    %226 = arith.subf %222, %225 : vector<24x17xf32>
    %227 = math.exp %226 : vector<24x17xf32>
    %cst_74 = arith.constant dense<0.000000e+00> : vector<24xf32>
    %228 = vector.multi_reduction <add>, %227, %cst_74 [1] : vector<24x17xf32> to vector<24xf32>
    %229 = vector.shape_cast %228 : vector<24xf32> to vector<24x1xf32>
    %230 = vector.broadcast %229 : vector<24x1xf32> to vector<24x17xf32>
    %231 = arith.divf %227, %230 : vector<24x17xf32>
    %cst_75 = arith.constant dense<0.000000e+00> : vector<24x8xf32>
    %232 = tpu.matmul %231, %218, %cst_75 {dimension_numbers = #tpu.dot_dimension_numbers<[1], [0], [0], [1], [0, 0, 1, 1], [], []>} : vector<24x17xf32>, vector<17x8xf32>, vector<24x8xf32> -> vector<24x8xf32>
    %233 = vector.extract_strided_slice %181 {offsets = [0, 24], sizes = [24, 8], strides = [1, 1]} : vector<24x96xf32> to vector<24x8xf32>
    %234 = vector.extract_strided_slice %181 {offsets = [0, 56], sizes = [17, 8], strides = [1, 1]} : vector<24x96xf32> to vector<17x8xf32>
    %235 = vector.extract_strided_slice %181 {offsets = [0, 88], sizes = [17, 8], strides = [1, 1]} : vector<24x96xf32> to vector<17x8xf32>
    %236 = tpu.transpose %234, [1, 0] : vector<17x8xf32> -> vector<8x17xf32>
    %cst_76 = arith.constant dense<0.000000e+00> : vector<24x17xf32>
    %237 = tpu.matmul %233, %236, %cst_76 {dimension_numbers = #tpu.dot_dimension_numbers<[1], [0], [0], [1], [0, 0, 1, 1], [], []>} : vector<24x8xf32>, vector<8x17xf32>, vector<24x17xf32> -> vector<24x17xf32>
    %cst_77 = arith.constant 0.353553385 : f32
    %238 = vector.broadcast %cst_77 : f32 to vector<24x17xf32>
    %239 = arith.mulf %237, %238 : vector<24x17xf32>
    %cst_78 = arith.constant dense<0xFF800000> : vector<24xf32>
    %240 = vector.multi_reduction <maximumf>, %239, %cst_78 [1] : vector<24x17xf32> to vector<24xf32>
    %241 = vector.shape_cast %240 : vector<24xf32> to vector<24x1xf32>
    %242 = vector.broadcast %241 : vector<24x1xf32> to vector<24x17xf32>
    %243 = arith.subf %239, %242 : vector<24x17xf32>
    %244 = math.exp %243 : vector<24x17xf32>
    %cst_79 = arith.constant dense<0.000000e+00> : vector<24xf32>
    %245 = vector.multi_reduction <add>, %244, %cst_79 [1] : vector<24x17xf32> to vector<24xf32>
    %246 = vector.shape_cast %245 : vector<24xf32> to vector<24x1xf32>
    %247 = vector.broadcast %246 : vector<24x1xf32> to vector<24x17xf32>
    %248 = arith.divf %244, %247 : vector<24x17xf32>
    %cst_80 = arith.constant dense<0.000000e+00> : vector<24x8xf32>
    %249 = tpu.matmul %248, %235, %cst_80 {dimension_numbers = #tpu.dot_dimension_numbers<[1], [0], [0], [1], [0, 0, 1, 1], [], []>} : vector<24x17xf32>, vector<17x8xf32>, vector<24x8xf32> -> vector<24x8xf32>
    %250 = tpu.concatenate %198, %215, %232, %249 in 1 : vector<24x8xf32>, vector<24x8xf32>, vector<24x8xf32>, vector<24x8xf32> -> vector<24x32xf32>
    %251 = vector.extract_strided_slice %150 {offsets = [0, 96], sizes = [32, 32], strides = [1, 1]} : vector<32x192xf32> to vector<32x32xf32>
    %cst_81 = arith.constant dense<0.000000e+00> : vector<24x32xf32>
    %252 = tpu.matmul %250, %251, %cst_81 {dimension_numbers = #tpu.dot_dimension_numbers<[1], [0], [0], [1], [0, 0, 1, 1], [], []>} : vector<24x32xf32>, vector<32x32xf32>, vector<24x32xf32> -> vector<24x32xf32>
    %253 = arith.addf %148, %252 : vector<24x32xf32>
    %254 = vector.broadcast %157 : vector<1x32xf32> to vector<24x32xf32>
    %255 = arith.addf %253, %254 : vector<24x32xf32>
    %cst_82 = arith.constant dense<0.000000e+00> : vector<24xf32>
    %256 = vector.multi_reduction <add>, %255, %cst_82 [1] : vector<24x32xf32> to vector<24xf32>
    %257 = vector.shape_cast %256 : vector<24xf32> to vector<24x1xf32>
    %cst_83 = arith.constant 3.200000e+01 : f32
    %258 = vector.broadcast %cst_83 : f32 to vector<24x1xf32>
    %259 = arith.divf %257, %258 : vector<24x1xf32>
    %260 = vector.broadcast %259 : vector<24x1xf32> to vector<24x32xf32>
    %261 = arith.subf %255, %260 : vector<24x32xf32>
    %262 = arith.mulf %261, %261 : vector<24x32xf32>
    %cst_84 = arith.constant dense<0.000000e+00> : vector<24xf32>
    %263 = vector.multi_reduction <add>, %262, %cst_84 [1] : vector<24x32xf32> to vector<24xf32>
    %264 = vector.shape_cast %263 : vector<24xf32> to vector<24x1xf32>
    %cst_85 = arith.constant 3.200000e+01 : f32
    %265 = vector.broadcast %cst_85 : f32 to vector<24x1xf32>
    %266 = arith.divf %264, %265 : vector<24x1xf32>
    %cst_86 = arith.constant 9.99999974E-6 : f32
    %267 = vector.broadcast %cst_86 : f32 to vector<24x1xf32>
    %268 = arith.addf %266, %267 : vector<24x1xf32>
    %269 = math.rsqrt %268 : vector<24x1xf32>
    %270 = vector.broadcast %269 : vector<24x1xf32> to vector<24x32xf32>
    %271 = arith.mulf %261, %270 : vector<24x32xf32>
    %272 = vector.broadcast %155 : vector<1x32xf32> to vector<24x32xf32>
    %273 = arith.mulf %271, %272 : vector<24x32xf32>
    %274 = vector.broadcast %156 : vector<1x32xf32> to vector<24x32xf32>
    %275 = arith.addf %273, %274 : vector<24x32xf32>
    %276 = vector.extract_strided_slice %150 {offsets = [0, 128], sizes = [32, 64], strides = [1, 1]} : vector<32x192xf32> to vector<32x64xf32>
    %cst_87 = arith.constant dense<0.000000e+00> : vector<24x64xf32>
    %277 = tpu.matmul %275, %276, %cst_87 {dimension_numbers = #tpu.dot_dimension_numbers<[1], [0], [0], [1], [0, 0, 1, 1], [], []>} : vector<24x32xf32>, vector<32x64xf32>, vector<24x64xf32> -> vector<24x64xf32>
    %278 = vector.broadcast %159 : vector<1x64xf32> to vector<24x64xf32>
    %279 = arith.addf %277, %278 : vector<24x64xf32>
    %cst_88 = arith.constant 5.000000e-01 : f32
    %280 = vector.broadcast %cst_88 : f32 to vector<24x64xf32>
    %281 = arith.mulf %280, %279 : vector<24x64xf32>
    %cst_89 = arith.constant 0.707106769 : f32
    %282 = vector.broadcast %cst_89 : f32 to vector<24x64xf32>
    %283 = arith.mulf %279, %282 : vector<24x64xf32>
    %284 = math.erf %283 : vector<24x64xf32>
    %cst_90 = arith.constant 1.000000e+00 : f32
    %285 = vector.broadcast %cst_90 : f32 to vector<24x64xf32>
    %286 = arith.addf %285, %284 : vector<24x64xf32>
    %287 = arith.mulf %281, %286 : vector<24x64xf32>
    %c1_91 = arith.constant 1 : index
    %c0_92 = arith.constant 0 : index
    %c0_93 = arith.constant 0 : index
    %288 = vector.load %arg4[%c1_91, %c0_92, %c0_93] : memref<2x64x32xf32, #tpu.memory_space<vmem>>, vector<1x64x32xf32>
    %289 = vector.shape_cast %288 : vector<1x64x32xf32> to vector<64x32xf32>
    %cst_94 = arith.constant dense<0.000000e+00> : vector<24x32xf32>
    %290 = tpu.matmul %287, %289, %cst_94 {dimension_numbers = #tpu.dot_dimension_numbers<[1], [0], [0], [1], [0, 0, 1, 1], [], []>} : vector<24x64xf32>, vector<64x32xf32>, vector<24x32xf32> -> vector<24x32xf32>
    %291 = arith.addf %255, %290 : vector<24x32xf32>
    %292 = vector.broadcast %158 : vector<1x32xf32> to vector<24x32xf32>
    %293 = arith.addf %291, %292 : vector<24x32xf32>
    %c2 = arith.constant 2 : index
    %c0_95 = arith.constant 0 : index
    %c0_96 = arith.constant 0 : index
    %294 = vector.load %arg5[%c2, %c0_95, %c0_96] : memref<3x8x128xf32, #tpu.memory_space<vmem>>, vector<1x8x128xf32>
    %295 = vector.shape_cast %294 : vector<1x8x128xf32> to vector<8x128xf32>
    %296 = vector.extract_strided_slice %295 {offsets = [0, 0], sizes = [1, 32], strides = [1, 1]} : vector<8x128xf32> to vector<1x32xf32>
    %297 = vector.extract_strided_slice %295 {offsets = [1, 0], sizes = [1, 32], strides = [1, 1]} : vector<8x128xf32> to vector<1x32xf32>
    %c0_97 = arith.constant 0 : index
    %c0_98 = arith.constant 0 : index
    %298 = vector.load %arg6[%c0_97, %c0_98] : memref<100x24xf32, #tpu.memory_space<vmem>>, vector<100x24xf32>
    %cst_99 = arith.constant dense<0.000000e+00> : vector<100x32xf32>
    %299 = tpu.matmul %298, %293, %cst_99 {dimension_numbers = #tpu.dot_dimension_numbers<[1], [0], [0], [1], [0, 0, 1, 1], [], []>} : vector<100x24xf32>, vector<24x32xf32>, vector<100x32xf32> -> vector<100x32xf32>
    %cst_100 = arith.constant dense<0.000000e+00> : vector<100xf32>
    %300 = vector.multi_reduction <add>, %299, %cst_100 [1] : vector<100x32xf32> to vector<100xf32>
    %301 = vector.shape_cast %300 : vector<100xf32> to vector<100x1xf32>
    %cst_101 = arith.constant 3.200000e+01 : f32
    %302 = vector.broadcast %cst_101 : f32 to vector<100x1xf32>
    %303 = arith.divf %301, %302 : vector<100x1xf32>
    %304 = vector.broadcast %303 : vector<100x1xf32> to vector<100x32xf32>
    %305 = arith.subf %299, %304 : vector<100x32xf32>
    %306 = arith.mulf %305, %305 : vector<100x32xf32>
    %cst_102 = arith.constant dense<0.000000e+00> : vector<100xf32>
    %307 = vector.multi_reduction <add>, %306, %cst_102 [1] : vector<100x32xf32> to vector<100xf32>
    %308 = vector.shape_cast %307 : vector<100xf32> to vector<100x1xf32>
    %cst_103 = arith.constant 3.200000e+01 : f32
    %309 = vector.broadcast %cst_103 : f32 to vector<100x1xf32>
    %310 = arith.divf %308, %309 : vector<100x1xf32>
    %cst_104 = arith.constant 9.99999974E-6 : f32
    %311 = vector.broadcast %cst_104 : f32 to vector<100x1xf32>
    %312 = arith.addf %310, %311 : vector<100x1xf32>
    %313 = math.rsqrt %312 : vector<100x1xf32>
    %314 = vector.broadcast %313 : vector<100x1xf32> to vector<100x32xf32>
    %315 = arith.mulf %305, %314 : vector<100x32xf32>
    %316 = vector.broadcast %296 : vector<1x32xf32> to vector<100x32xf32>
    %317 = arith.mulf %315, %316 : vector<100x32xf32>
    %318 = vector.broadcast %297 : vector<1x32xf32> to vector<100x32xf32>
    %319 = arith.addf %317, %318 : vector<100x32xf32>
    %c0_105 = arith.constant 0 : index
    %c0_106 = arith.constant 0 : index
    %c0_107 = arith.constant 0 : index
    %320 = vector.load %arg7[%c0_105, %c0_106, %c0_107] : memref<1x100x32xf32, #tpu.memory_space<vmem>>, vector<1x100x32xf32>
    %321 = vector.shape_cast %320 : vector<1x100x32xf32> to vector<100x32xf32>
    %322 = vector.shape_cast %319 : vector<100x32xf32> to vector<1x100x32xf32>
    tpu.vector_store %arg7[%c0_105, %c0_106, %c0_107], %322 {strides = array<i32>} : memref<1x100x32xf32, #tpu.memory_space<vmem>>, vector<1x100x32xf32>,
    return
  }
  func.func @transform_0(%arg0: i32) -> (i32, i32, i32) {
    %c0_i32 = arith.constant 0 : i32
    %c0_i32_0 = arith.constant 0 : i32
    %c0_i32_1 = arith.constant 0 : i32
    return %arg0, %c0_i32, %c0_i32_0 : i32, i32, i32
  }
  func.func @transform_1(%arg0: i32) -> (i32, i32) {
    %c0_i32 = arith.constant 0 : i32
    %c0_i32_0 = arith.constant 0 : i32
    %c0_i32_1 = arith.constant 0 : i32
    return %c0_i32, %c0_i32_0 : i32, i32
  }
  func.func @transform_2(%arg0: i32) -> (i32, i32, i32) {
    %c0_i32 = arith.constant 0 : i32
    %c0_i32_0 = arith.constant 0 : i32
    %c0_i32_1 = arith.constant 0 : i32
    %c0_i32_2 = arith.constant 0 : i32
    return %c0_i32, %c0_i32_0, %c0_i32_1 : i32, i32, i32
  }
  func.func @transform_3(%arg0: i32) -> (i32, i32, i32) {
    %c0_i32 = arith.constant 0 : i32
    %c0_i32_0 = arith.constant 0 : i32
    %c0_i32_1 = arith.constant 0 : i32
    %c0_i32_2 = arith.constant 0 : i32
    return %c0_i32, %c0_i32_0, %c0_i32_1 : i32, i32, i32
  }
  func.func @transform_4(%arg0: i32) -> (i32, i32, i32) {
    %c0_i32 = arith.constant 0 : i32
    %c0_i32_0 = arith.constant 0 : i32
    %c0_i32_1 = arith.constant 0 : i32
    %c0_i32_2 = arith.constant 0 : i32
    return %c0_i32, %c0_i32_0, %c0_i32_1 : i32, i32, i32
  }
  func.func @transform_5(%arg0: i32) -> (i32, i32) {
    %c0_i32 = arith.constant 0 : i32
    %c0_i32_0 = arith.constant 0 : i32
    %c0_i32_1 = arith.constant 0 : i32
    return %c0_i32, %c0_i32_0 : i32, i32
  }
  func.func @transform_6(%arg0: i32) -> (i32, i32, i32) {
    %c0_i32 = arith.constant 0 : i32
    %c0_i32_0 = arith.constant 0 : i32
    %c0_i32_1 = arith.constant 0 : i32
    return %arg0, %c0_i32, %c0_i32_0 : i32, i32, i32
  }
}

</mosaic_0001>

<llo_original>
// kernel: _lambda_.1
$region0: #{_lambda_.1}
  #allocation0 [shape = 'u32[]', space=smem, size = 0x4, offset = 0x4, fixed_abs, tag = 'smem constant byte address 0x4 - core index']
  #allocation1 [shape = 'u32[144,128]{1,0:T(1,128)}', space=vmem, size = 0x12000, scoped, tag = 'internal scratch']
  %s0 = inlined_call_operand.vmem [shape: f32[2,24,65], index: 0, kind: input, shape index: {}]
  %s1 = inlined_call_operand.vmem [shape: f32[65,32], index: 1, kind: input, shape index: {}]
  %s2 = inlined_call_operand.vmem [shape: f32[2,32,192], index: 2, kind: input, shape index: {}]
  %s3 = inlined_call_operand.vmem [shape: f32[2,64,32], index: 3, kind: input, shape index: {}]
  %s4 = inlined_call_operand.vmem [shape: f32[3,8,128], index: 4, kind: input, shape index: {}]
  %s5 = inlined_call_operand.vmem [shape: f32[100,24], index: 5, kind: input, shape index: {}]
  %s6 = inlined_call_operand.vmem [shape: f32[2,100,32], index: 6, kind: output, shape index: {}]
  %s7 = sld [smem:[#allocation0]]
  $region57: #{_lambda_.1} parent=0
    _
  %s9 = ssub.s32 1, %s7
  %s10 = scalar_select 0, %s9, %s7
  loop: start=0, step=1, limit=4
  $region2: #{_lambda_.1} parent=0 // loop_pre_header
    _
  $region3: #{_lambda_.1} parent=0 // loop_header
    %s12 = sphi 0, %s16
    %p13 = scmp.ge.s32.totalorder %s12, 4
    %s22 = sphi 0, %s24
    %s25 = sphi 0, %s22
    %s26 = sphi 0, %s25
    %s42 = sphi 0, %s26
    %s46 = sphi 0, %s46
    %s48 = sphi 0, %s46
    %s49 = sphi 0, %s48
    %s63 = sphi 0, %s49
    %s67 = sphi 0, %s67
    %s69 = sphi 0, %s67
    %s70 = sphi 0, %s69
    %s84 = sphi 0, %s70
    %s88 = sphi 0, %s88
    %s90 = sphi 0, %s88
    %s91 = sphi 0, %s90
    %s105 = sphi 0, %s91
    %s109 = sphi 0, %s109
    %s111 = sphi 0, %s109
    %s112 = sphi 0, %s111
    %s126 = sphi 0, %s112
    %s130 = sphi 0, %s130
    %s132 = sphi 0, %s130
    %s133 = sphi 0, %s132
    %s147 = sphi 0, %s133
    %s153 = sphi 0, %s155
    %s156 = sphi 0, %s153
    %s157 = sphi 0, %s156
    %s173 = sphi 0, %s157
  $region4: #{_lambda_.1} parent=0 // loop_header_branch
    %15 = sbr.rel (%p13) target = $region8
  $region5: #{_lambda_.1} parent=0 // loop_body
    %s17 = ssub.s32 %s12, 1
    %s18 = ssub.s32 %s12, 2
    %s19 = sadd.s32 %s12, 1
    %s20 = ssub.s32 %s12, %s19
    %p21 = scmp.eq.s32.totalorder %s20, 0
    %s23 = sadd.s32 %s22, 1
    %s24 = scalar_select %p21, %s22, %s23
    %p27 = pneg %p21
    %p28 = scmp.eq.s32.totalorder %s12, 1
    %p29 = por %p27, %p28
    %p30 = scmp.ne.s32.totalorder %s22, %s25
    %p31 = scmp.eq.s32.totalorder %s12, 0
    %p32 = por %p30, %p31
    %p33 = scmp.ne.s32.totalorder %s22, %s25
    %p34 = scmp.eq.s32.totalorder %s17, 1
    %p35 = por %p33, %p34
    %p36 = scmp.ne.s32.totalorder %s25, %s26
    %p37 = scmp.eq.s32.totalorder %s17, 0
    %p38 = por %p36, %p37
    %p39 = scmp.ne.s32.totalorder %s25, %s26
    %p40 = scmp.eq.s32.totalorder %s18, 1
    %p41 = por %p39, %p40
    %p43 = scmp.ne.s32.totalorder %s26, %s42
    %p44 = scmp.eq.s32.totalorder %s18, 0
    %p45 = por %p43, %p44
    %s47 = sadd.s32 %s46, 1
    %p50 = scmp.eq.s32.totalorder %s12, 1
    %p51 = scmp.ne.s32.totalorder %s46, %s48
    %p52 = scmp.eq.s32.totalorder %s12, 0
    %p53 = por %p51, %p52
    %p54 = scmp.ne.s32.totalorder %s46, %s48
    %p55 = scmp.eq.s32.totalorder %s17, 1
    %p56 = por %p54, %p55
    %p57 = scmp.ne.s32.totalorder %s48, %s49
    %p58 = scmp.eq.s32.totalorder %s17, 0
    %p59 = por %p57, %p58
    %p60 = scmp.ne.s32.totalorder %s48, %s49
    %p61 = scmp.eq.s32.totalorder %s18, 1
    %p62 = por %p60, %p61
    %p64 = scmp.ne.s32.totalorder %s49, %s63
    %p65 = scmp.eq.s32.totalorder %s18, 0
    %p66 = por %p64, %p65
    %s68 = sadd.s32 %s67, 1
    %p71 = scmp.eq.s32.totalorder %s12, 1
    %p72 = scmp.ne.s32.totalorder %s67, %s69
    %p73 = scmp.eq.s32.totalorder %s12, 0
    %p74 = por %p72, %p73
    %p75 = scmp.ne.s32.totalorder %s67, %s69
    %p76 = scmp.eq.s32.totalorder %s17, 1
    %p77 = por %p75, %p76
    %p78 = scmp.ne.s32.totalorder %s69, %s70
    %p79 = scmp.eq.s32.totalorder %s17, 0
    %p80 = por %p78, %p79
    %p81 = scmp.ne.s32.totalorder %s69, %s70
    %p82 = scmp.eq.s32.totalorder %s18, 1
    %p83 = por %p81, %p82
    %p85 = scmp.ne.s32.totalorder %s70, %s84
    %p86 = scmp.eq.s32.totalorder %s18, 0
    %p87 = por %p85, %p86
    %s89 = sadd.s32 %s88, 1
    %p92 = scmp.eq.s32.totalorder %s12, 1
    %p93 = scmp.ne.s32.totalorder %s88, %s90
    %p94 = scmp.eq.s32.totalorder %s12, 0
    %p95 = por %p93, %p94
    %p96 = scmp.ne.s32.totalorder %s88, %s90
    %p97 = scmp.eq.s32.totalorder %s17, 1
    %p98 = por %p96, %p97
    %p99 = scmp.ne.s32.totalorder %s90, %s91
    %p100 = scmp.eq.s32.totalorder %s17, 0
    %p101 = por %p99, %p100
    %p102 = scmp.ne.s32.totalorder %s90, %s91
    %p103 = scmp.eq.s32.totalorder %s18, 1
    %p104 = por %p102, %p103
    %p106 = scmp.ne.s32.totalorder %s91, %s105
    %p107 = scmp.eq.s32.totalorder %s18, 0
    %p108 = por %p106, %p107
    %s110 = sadd.s32 %s109, 1
    %p113 = scmp.eq.s32.totalorder %s12, 1
    %p114 = scmp.ne.s32.totalorder %s109, %s111
    %p115 = scmp.eq.s32.totalorder %s12, 0
    %p116 = por %p114, %p115
    %p117 = scmp.ne.s32.totalorder %s109, %s111
    %p118 = scmp.eq.s32.totalorder %s17, 1
    %p119 = por %p117, %p118
    %p120 = scmp.ne.s32.totalorder %s111, %s112
    %p121 = scmp.eq.s32.totalorder %s17, 0
    %p122 = por %p120, %p121
    %p123 = scmp.ne.s32.totalorder %s111, %s112
    %p124 = scmp.eq.s32.totalorder %s18, 1
    %p125 = por %p123, %p124
    %p127 = scmp.ne.s32.totalorder %s112, %s126
    %p128 = scmp.eq.s32.totalorder %s18, 0
    %p129 = por %p127, %p128
    %s131 = sadd.s32 %s130, 1
    %p134 = scmp.eq.s32.totalorder %s12, 1
    %p135 = scmp.ne.s32.totalorder %s130, %s132
    %p136 = scmp.eq.s32.totalorder %s12, 0
    %p137 = por %p135, %p136
    %p138 = scmp.ne.s32.totalorder %s130, %s132
    %p139 = scmp.eq.s32.totalorder %s17, 1
    %p140 = por %p138, %p139
    %p141 = scmp.ne.s32.totalorder %s132, %s133
    %p142 = scmp.eq.s32.totalorder %s17, 0
    %p143 = por %p141, %p142
    %p144 = scmp.ne.s32.totalorder %s132, %s133
    %p145 = scmp.eq.s32.totalorder %s18, 1
    %p146 = por %p144, %p145
    %p148 = scmp.ne.s32.totalorder %s133, %s147
    %p149 = scmp.eq.s32.totalorder %s18, 0
    %p150 = por %p148, %p149
    %s151 = ssub.s32 %s12, %s19
    %p152 = scmp.eq.s32.totalorder %s151, 0
    %s154 = sadd.s32 %s153, 1
    %s155 = scalar_select %p152, %s153, %s154
    %p158 = pneg %p152
    %p159 = scmp.eq.s32.totalorder %s12, 1
    %p160 = por %p158, %p159
    %p161 = scmp.ne.s32.totalorder %s153, %s156
    %p162 = scmp.eq.s32.totalorder %s12, 0
    %p163 = por %p161, %p162
    %p164 = scmp.ne.s32.totalorder %s153, %s156
    %p165 = scmp.eq.s32.totalorder %s17, 1
    %p166 = por %p164, %p165
    %p167 = scmp.ne.s32.totalorder %s156, %s157
    %p168 = scmp.eq.s32.totalorder %s17, 0
    %p169 = por %p167, %p168
    %p170 = scmp.ne.s32.totalorder %s156, %s157
    %p171 = scmp.eq.s32.totalorder %s18, 1
    %p172 = por %p170, %p171
    %p174 = scmp.ne.s32.totalorder %s157, %s173
    %p175 = scmp.eq.s32.totalorder %s18, 0
    %p176 = por %p174, %p175
    %p177 = scmp.le.s32.totalorder 1, %s12
    %p178 = scmp.lt.s32.totalorder %s12, 3
    %p179 = pnand %p177, %p178
    %p180 = pneg %p179
    // Predicated region
    $region9: #{_lambda_.1} parent=5 // pred_check
      _
    $region10: #{_lambda_.1} parent=5 // pred_check_branch
      %182 = sbr.rel (%p179) target = $region12
    $region11: #{_lambda_.1} parent=5 // pred_region
      %s183 = ssub.s32 %s12, 1
      // Predicated region
      $region13: #{_lambda_.1} parent=11 // pred_check
        %p184 = pneg %p59
      $region14: #{_lambda_.1} parent=11 // pred_check_branch
        %186 = sbr.rel (%p184) target = $region16
      $region15: #{_lambda_.1} parent=11 // pred_region
        _
      $region16: #{_lambda_.1} parent=11 // pred_fallthru
        _
      // Predicated region
      $region17: #{_lambda_.1} parent=11 // pred_check
        %p187 = pneg %p80
      $region18: #{_lambda_.1} parent=11 // pred_check_branch
        %189 = sbr.rel (%p187) target = $region20
      $region19: #{_lambda_.1} parent=11 // pred_region
        _
      $region20: #{_lambda_.1} parent=11 // pred_fallthru
        _
      // Predicated region
      $region21: #{_lambda_.1} parent=11 // pred_check
        %p190 = pneg %p101
      $region22: #{_lambda_.1} parent=11 // pred_check_branch
        %192 = sbr.rel (%p190) target = $region24
      $region23: #{_lambda_.1} parent=11 // pred_region
        _
      $region24: #{_lambda_.1} parent=11 // pred_fallthru
        _
      // Predicated region
      $region25: #{_lambda_.1} parent=11 // pred_check
        %p193 = pneg %p122
      $region26: #{_lambda_.1} parent=11 // pred_check_branch
        %195 = sbr.rel (%p193) target = $region28
      $region27: #{_lambda_.1} parent=11 // pred_region
        _
      $region28: #{_lambda_.1} parent=11 // pred_fallthru
        _
      // Predicated region
      $region29: #{_lambda_.1} parent=11 // pred_check
        %p196 = pneg %p143
      $region30: #{_lambda_.1} parent=11 // pred_check_branch
        %198 = sbr.rel (%p196) target = $region32
      $region31: #{_lambda_.1} parent=11 // pred_region
        _
      $region32: #{_lambda_.1} parent=11 // pred_fallthru
        _
    $region12: #{_lambda_.1} parent=5 // pred_fallthru
      _
    %p199 = scmp.lt.s32.totalorder %s12, 2
    // Predicated region
    $region33: #{_lambda_.1} parent=5 // pred_check
      %p200 = pneg %p199
    $region34: #{_lambda_.1} parent=5 // pred_check_branch
      %202 = sbr.rel (%p200) target = $region36
    $region35: #{_lambda_.1} parent=5 // pred_region
      // Predicated region
      $region37: #{_lambda_.1} parent=35 // pred_check
        %p203 = pneg %p32
      $region38: #{_lambda_.1} parent=35 // pred_check_branch
        %205 = sbr.rel (%p203) target = $region40
      $region39: #{_lambda_.1} parent=35 // pred_region
        %p206 = scmp.lt.s32.totalorder %s12, 1
        %s207 = scalar_select %p206, %s12, 1
        %s208 = smul.addr %s207, 3
        %s209 = smul.addr %s208, 8
        %s210 = scalar_lea.vmem %s0, %s209
      $region40: #{_lambda_.1} parent=35 // pred_fallthru
        _
    $region36: #{_lambda_.1} parent=5 // pred_fallthru
      _
    %p211 = scmp.le.s32.totalorder 1, %s12
    %p212 = scmp.lt.s32.totalorder %s12, 3
    %p213 = pnand %p211, %p212
    %p214 = pneg %p213
    // Predicated region
    $region41: #{_lambda_.1} parent=5 // pred_check
      _
    $region42: #{_lambda_.1} parent=5 // pred_check_branch
      %216 = sbr.rel (%p213) target = $region44
    $region43: #{_lambda_.1} parent=5 // pred_region
      %s217 = ssub.s32 %s12, 1
      %p218 = scmp.lt.s32.totalorder %s17, 1
      %s219 = scalar_select %p218, %s17, 1
      %s220 = smul.addr %s219, 3
      %s221 = smul.addr %s220, 8
      %s222 = scalar_lea.vmem %s0, %s221
      %p223 = pneg %p38
      %p224 = pneg %p35
      %p225 = pneg %p59
      %p226 = pneg %p56
      %p227 = pneg %p80
      %p228 = pneg %p77
      %p229 = pneg %p101
      %p230 = pneg %p98
      %p231 = pneg %p122
      %p232 = pneg %p119
      %p233 = pneg %p143
      %p234 = pneg %p140
      %p235 = pneg %p169
      %p236 = pneg %p166
      %p237 = scmp.lt.s32.totalorder %s17, 1
      %s238 = scalar_select %p237, %s17, 1
      %s239 = smul.addr %s238, 13
      %s240 = smul.addr %s239, 8
      %s241 = scalar_lea.vmem %s6, %s240
      %p242 = scmp.lt.s32.totalorder %s17, 1
      %s243 = scalar_select %p242, %s17, 1
      %s244 = smul.addr %s243, 3
      %s245 = smul.addr %s244, 8
      %s246 = scalar_lea.vmem %s0, %s245
      %p247 = scmp.lt.s32.totalorder %s17, 1
      %s248 = scalar_select %p247, %s17, 1
      %s249 = smul.addr %s248, 13
      %s250 = smul.addr %s249, 8
      %s251 = scalar_lea.vmem %s6, %s250
      %v252 = vld [vmem:[%s246] sm:$0xff]
      %v253 = vld [vmem:[%s246 + $0x8] sm:$0xff]
      %v254 = vld [vmem:[%s246 + $0x10] sm:$0xff]
      %v255 = vld [vmem:[%s1] sm:$0xff]
      %v256 = vld [vmem:[%s1 + $0x8] sm:$0xff]
      %v257 = vld [vmem:[%s1 + $0x10] sm:$0xff]
      %v258 = vld [vmem:[%s1 + $0x18] sm:$0xff]
      %v259 = vld [vmem:[%s1 + $0x20] sm:$0xff]
      %v260 = vld [vmem:[%s1 + $0x28] sm:$0xff]
      %v261 = vld [vmem:[%s1 + $0x30] sm:$0xff]
      %v262 = vld [vmem:[%s1 + $0x38] sm:$0xff]
      %v263 = vld [vmem:[%s1 + $0x40] sm:$0x1]
      %vm264 = vcmask 531456
      %v266 = vsel %vm264, %v252, 0
      %v269 = vsel %vm264, %v253, 0
      %v272 = vsel %vm264, %v254, 0
      %vm274 = vcmask 1040384
      %v276 = vsel %vm274, %v263, 0
      %278 = vmatprep.subr.mxu0 0.0
      %279 = vmatpush1.msra.mxu0 %v255
      %280 = vmatprep.subr.mxu0 0.0
      %281 = vmatpush1.msra.mxu0 %v256
      %282 = vmatprep.subr.mxu0 0.0
      %283 = vmatpush1.msra.mxu0 %v257
      %284 = vmatprep.subr.mxu0 0.0
      %285 = vmatpush1.msra.mxu0 %v258
      %286 = vmatprep.subr.mxu0 0.0
      %287 = vmatpush1.msra.mxu0 %v259
      %288 = vmatprep.subr.mxu0 0.0
      %289 = vmatpush1.msra.mxu0 %v260
      %290 = vmatprep.subr.mxu0 0.0
      %291 = vmatpush1.msra.mxu0 %v261
      %292 = vmatprep.subr.mxu0 0.0
      %293 = vmatpush1.msra.mxu0 %v262
      %294 = vmatprep.subr.mxu0 0.0
      %295 = vmatpush1.msra.mxu0 %v276
      %296 = vmatprep.subr.mxu0 0.0
      %297 = vmatpush1.msra.mxu0 0.0
      %298 = vmatprep.subr.mxu0 0.0
      %299 = vmatpush1.msra.mxu0 0.0
      %300 = vmatprep.subr.mxu0 0.0
      %301 = vmatpush1.msra.mxu0 0.0
      %302 = vmatprep.subr.mxu0 0.0
      %303 = vmatpush1.msra.mxu0 0.0
      %304 = vmatprep.subr.mxu0 0.0
      %305 = vmatpush1.msra.mxu0 0.0
      %306 = vmatprep.subr.mxu0 0.0
      %307 = vmatpush1.msra.mxu0 0.0
      %308 = vmatprep.subr.mxu0 0.0
      %309 = vmatpush1.msra.mxu0 0.0
      %310 = vmatprep.subr.mxu0 0.0
      %311 = vmatpush1.msra.mxu0 0.0
      %312 = vmatprep.subr.mxu0 0.0
      %313 = vmatpush1.msra.mxu0 0.0
      %314 = vmatprep.subr.mxu0 0.0
      %315 = vmatpush1.msra.mxu0 0.0
      %316 = vmatprep.subr.mxu0 0.0
      %317 = vmatpush1.msra.mxu0 0.0
      %318 = vmatprep.subr.mxu0 0.0
      %319 = vmatpush1.msra.mxu0 0.0
      %320 = vmatprep.subr.mxu0 0.0
      %321 = vmatpush1.msra.mxu0 0.0
      %322 = vmatprep.subr.mxu0 0.0
      %323 = vmatpush1.msra.mxu0 0.0
      %324 = vmatprep.subr.mxu0 0.0
      %325 = vmatpush1.msra.mxu0 0.0
      %326 = vmatprep.subr.mxu0 0.0
      %327 = vmatpush1.msra.mxu0 0.0
      %328 = vmatprep.subr.mxu0 0.0
      %329 = vmatpush1.msra.mxu0 0.0
      %330 = vmatprep.subr.mxu0 0.0
      %331 = vmatpush1.msra.mxu0 0.0
      %332 = vmatprep.subr.mxu0 0.0
      %333 = vmatpush1.msra.mxu0 0.0
      %334 = vmatprep.subr.mxu0 0.0
      %335 = vmatpush1.msra.mxu0 0.0
      %336 = vmatprep.subr.mxu0 0.0
      %337 = vmatpush1.msra.mxu0 0.0
      %338 = vmatprep.subr.mxu0 0.0
      %339 = vmatpush1.msra.mxu0 0.0
      %340 = vmatprep.subr.mxu0 0.0
      %341 = vmatpush1.msra.mxu0 0.0
      %342 = vmatprep.mubr.f32.mxu0 0.0
      %343 = vmatmul.mubr.f32.gmra.mrb[0].mxu0 %v266
      %v344 = vpop.f32.mrb[0].mxu0
      %v345 = vadd.f32 0.0, %v344
      %v346 = vpop.f32.mrb[0].mxu0
      %347 = vmatprep.mubr.f32.mxu0 0.0
      %348 = vmatmul.mubr.f32.gmra.mrb[0].mxu0 %v269
      %v349 = vpop.f32.mrb[0].mxu0
      %v350 = vadd.f32 0.0, %v349
      %v351 = vpop.f32.mrb[0].mxu0
      %352 = vmatprep.mubr.f32.mxu0 0.0
      %353 = vmatmul.mubr.f32.gmra.mrb[0].mxu0 %v272
      %v354 = vpop.f32.mrb[0].mxu0
      %v355 = vadd.f32 0.0, %v354
      %v356 = vpop.f32.mrb[0].mxu0
      %357 = vdwg.mxu0
      %v358 = vld [vmem:[%s2] sm:$0xff]
      %v359 = vld [vmem:[%s2 + $0x8] sm:$0xff]
      %v360 = vld [vmem:[%s2 + $0x10] sm:$0xff]
      %v361 = vld [vmem:[%s2 + $0x18] sm:$0xff]
      %v362 = vld [vmem:[%s2 + $0x20] sm:$0xff]
      %v363 = vld [vmem:[%s2 + $0x28] sm:$0xff]
      %v364 = vld [vmem:[%s2 + $0x30] sm:$0xff]
      %v365 = vld [vmem:[%s2 + $0x38] sm:$0xff]
      %v366 = vld [vmem:[%s4] sm:$0xff]
      %vm367 = vcmask 261120
      %v368 = vsel %vm367, %v345, 0.0
      %369 = vadd.xlane.f32.xlu0 %v368
      %v370 = vpop.xlane.xlu0 %369
      %v371 = vsel %vm367, %v350, 0.0
      %372 = vadd.xlane.f32.xlu0 %v371
      %v373 = vpop.xlane.xlu0 %372
      %v374 = vsel %vm367, %v355, 0.0
      %375 = vadd.xlane.f32.xlu0 %v374
      %v376 = vpop.xlane.xlu0 %375
      %v377 = vrcp.pop 32.0
      %v378 = vmul.f32 %v370, %v377
      %v379 = vmul.f32 %v373, %v377
      %v380 = vmul.f32 %v376, %v377
      %v381 = vsub.f32 %v345, %v378
      %v382 = vsub.f32 %v350, %v379
      %v383 = vsub.f32 %v355, %v380
      %v384 = vmul.f32 %v381, %v381
      %v385 = vmul.f32 %v382, %v382
      %v386 = vmul.f32 %v383, %v383
      %v387 = vsel %vm367, %v384, 0.0
      %388 = vadd.xlane.f32.xlu0 %v387
      %v389 = vpop.xlane.xlu0 %388
      %v390 = vsel %vm367, %v385, 0.0
      %391 = vadd.xlane.f32.xlu0 %v390
      %v392 = vpop.xlane.xlu0 %391
      %v393 = vsel %vm367, %v386, 0.0
      %394 = vadd.xlane.f32.xlu0 %v393
      %v395 = vpop.xlane.xlu0 %394
      %v396 = vmul.f32 %v389, %v377
      %v397 = vmul.f32 %v392, %v377
      %v398 = vmul.f32 %v395, %v377
      %v399 = vadd.f32 %v396, 1e-05
      %v400 = vadd.f32 %v397, 1e-05
      %v401 = vadd.f32 %v398, 1e-05
      %v402 = vrsqrt.pop %v399
      %v403 = vrsqrt.pop %v400
      %v404 = vrsqrt.pop %v401
      %v405 = vmul.f32 %v381, %v402
      %v406 = vmul.f32 %v382, %v403
      %v407 = vmul.f32 %v383, %v404
      %v408 = vlaneseq
      %v409 = vshrl.u32 %v408, 7
      %v410 = vsub.s32 0, %v409
      %v411 = vrot.slane %v366, %v410
      %v412 = vmul.f32 %v405, %v411
      %v413 = vmul.f32 %v406, %v411
      %v414 = vmul.f32 %v407, %v411
      %v415 = vlaneseq
      %v416 = vshrl.u32 %v415, 7
      %v417 = vsub.s32 1, %v416
      %v418 = vrot.slane %v366, %v417
      %v419 = vadd.f32 %v412, %v418
      %v420 = vadd.f32 %v413, %v418
      %v421 = vadd.f32 %v414, %v418
      %v423 = vsel %vm367, %v419, 0
      %v426 = vsel %vm367, %v420, 0
      %v429 = vsel %vm367, %v421, 0
      %431 = vmatprep.subr.mxu0 0.0
      %432 = vmatpush1.msra.mxu0 %v358
      %433 = vmatprep.subr.mxu0 0.0
      %434 = vmatpush1.msra.mxu0 %v360
      %435 = vmatprep.subr.mxu0 0.0
      %436 = vmatpush1.msra.mxu0 %v362
      %437 = vmatprep.subr.mxu0 0.0
      %438 = vmatpush1.msra.mxu0 %v364
      %439 = vmatprep.subr.mxu0 0.0
      %440 = vmatpush1.msra.mxu0 0.0
      %441 = vmatprep.subr.mxu0 0.0
      %442 = vmatpush1.msra.mxu0 0.0
      %443 = vmatprep.subr.mxu0 0.0
      %444 = vmatpush1.msra.mxu0 0.0
      %445 = vmatprep.subr.mxu0 0.0
      %446 = vmatpush1.msra.mxu0 0.0
      %447 = vmatprep.subr.mxu0 0.0
      %448 = vmatpush1.msra.mxu0 0.0
      %449 = vmatprep.subr.mxu0 0.0
      %450 = vmatpush1.msra.mxu0 0.0
      %451 = vmatprep.subr.mxu0 0.0
      %452 = vmatpush1.msra.mxu0 0.0
      %453 = vmatprep.subr.mxu0 0.0
      %454 = vmatpush1.msra.mxu0 0.0
      %455 = vmatprep.subr.mxu0 0.0
      %456 = vmatpush1.msra.mxu0 0.0
      %457 = vmatprep.subr.mxu0 0.0
      %458 = vmatpush1.msra.mxu0 0.0
      %459 = vmatprep.subr.mxu0 0.0
      %460 = vmatpush1.msra.mxu0 0.0
      %461 = vmatprep.subr.mxu0 0.0
      %462 = vmatpush1.msra.mxu0 0.0
      %463 = vmatprep.subr.mxu0 0.0
      %464 = vmatpush1.msra.mxu0 0.0
      %465 = vmatprep.subr.mxu0 0.0
      %466 = vmatpush1.msra.mxu0 0.0
      %467 = vmatprep.subr.mxu0 0.0
      %468 = vmatpush1.msra.mxu0 0.0
      %469 = vmatprep.subr.mxu0 0.0
      %470 = vmatpush1.msra.mxu0 0.0
      %471 = vmatprep.subr.mxu0 0.0
      %472 = vmatpush1.msra.mxu0 0.0
      %473 = vmatprep.subr.mxu0 0.0
      %474 = vmatpush1.msra.mxu0 0.0
      %475 = vmatprep.subr.mxu0 0.0
      %476 = vmatpush1.msra.mxu0 0.0
      %477 = vmatprep.subr.mxu0 0.0
      %478 = vmatpush1.msra.mxu0 0.0
      %479 = vmatprep.subr.mxu0 0.0
      %480 = vmatpush1.msra.mxu0 0.0
      %481 = vmatprep.subr.mxu0 0.0
      %482 = vmatpush1.msra.mxu0 0.0
      %483 = vmatprep.subr.mxu0 0.0
      %484 = vmatpush1.msra.mxu0 0.0
      %485 = vmatprep.subr.mxu0 0.0
      %486 = vmatpush1.msra.mxu0 0.0
      %487 = vmatprep.subr.mxu0 0.0
      %488 = vmatpush1.msra.mxu0 0.0
      %489 = vmatprep.subr.mxu0 0.0
      %490 = vmatpush1.msra.mxu0 0.0
      %491 = vmatprep.subr.mxu0 0.0
      %492 = vmatpush1.msra.mxu0 0.0
      %493 = vmatprep.subr.mxu0 0.0
      %494 = vmatpush1.msra.mxu0 0.0
      %495 = vmatprep.mubr.f32.mxu0 0.0
      %496 = vmatmul.mubr.f32.gmra.mrb[0].mxu0 %v423
      %v497 = vpop.f32.mrb[0].mxu0
      %v498 = vadd.f32 0.0, %v497
      %v499 = vpop.f32.mrb[0].mxu0
      %500 = vmatprep.mubr.f32.mxu0 0.0
      %501 = vmatmul.mubr.f32.gmra.mrb[0].mxu0 %v426
      %v502 = vpop.f32.mrb[0].mxu0
      %v503 = vadd.f32 0.0, %v502
      %v504 = vpop.f32.mrb[0].mxu0
      %505 = vmatprep.mubr.f32.mxu0 0.0
      %506 = vmatmul.mubr.f32.gmra.mrb[0].mxu0 %v429
      %v507 = vpop.f32.mrb[0].mxu0
      %v508 = vadd.f32 0.0, %v507
      %v509 = vpop.f32.mrb[0].mxu0
      %510 = vdwg.mxu0
      %514 = vrot.lane.b32.xlu0 %v498, 96
      %v515 = vpop.permute.xlu0 %514
      %516 = vrot.lane.b32.xlu0 %v503, 96
      %v517 = vpop.permute.xlu0 %516
      %518 = vrot.lane.b32.xlu0 %v508, 96
      %v519 = vpop.permute.xlu0 %518
      %vm520 = vcmask 64512
      %v521 = vsel %vm520, %v498, 0
      %v523 = vsel %vm520, %v503, 0
      %v525 = vsel %vm520, %v508, 0
      %v527 = vsel %vm520, %v515, 0
      %v529 = vsel %vm520, %v517, 0
      %v531 = vsel %vm520, %v519, 0
      %533 = vmatprep.subr.mxu0 0.0
      %534 = vmatpush1.xpose.msra.mxu0 %v527
      %535 = vmatprep.subr.mxu0 0.0
      %536 = vmatpush1.xpose.msra.mxu0 %v529
      %537 = vmatprep.subr.mxu0 0.0
      %538 = vmatpush1.xpose.msra.mxu0 %v531
      %539 = vmatprep.subr.mxu0 0.0
      %540 = vmatpush1.xpose.msra.mxu0 0.0
      %541 = vmatprep.subr.mxu0 0.0
      %542 = vmatpush1.xpose.msra.mxu0 0.0
      %543 = vmatprep.subr.mxu0 0.0
      %544 = vmatpush1.xpose.msra.mxu0 0.0
      %545 = vmatprep.subr.mxu0 0.0
      %546 = vmatpush1.xpose.msra.mxu0 0.0
      %547 = vmatprep.subr.mxu0 0.0
      %548 = vmatpush1.xpose.msra.mxu0 0.0
      %549 = vmatprep.subr.mxu0 0.0
      %550 = vmatpush1.xpose.msra.mxu0 0.0
      %551 = vmatprep.subr.mxu0 0.0
      %552 = vmatpush1.xpose.msra.mxu0 0.0
      %553 = vmatprep.subr.mxu0 0.0
      %554 = vmatpush1.xpose.msra.mxu0 0.0
      %555 = vmatprep.subr.mxu0 0.0
      %556 = vmatpush1.xpose.msra.mxu0 0.0
      %557 = vmatprep.subr.mxu0 0.0
      %558 = vmatpush1.xpose.msra.mxu0 0.0
      %559 = vmatprep.subr.mxu0 0.0
      %560 = vmatpush1.xpose.msra.mxu0 0.0
      %561 = vmatprep.subr.mxu0 0.0
      %562 = vmatpush1.xpose.msra.mxu0 0.0
      %563 = vmatprep.subr.mxu0 0.0
      %564 = vmatpush1.xpose.msra.mxu0 0.0
      %565 = vmatprep.subr.mxu0 0.0
      %566 = vmatpush1.xpose.msra.mxu0 0.0
      %567 = vmatprep.subr.mxu0 0.0
      %568 = vmatpush1.xpose.msra.mxu0 0.0
      %569 = vmatprep.subr.mxu0 0.0
      %570 = vmatpush1.xpose.msra.mxu0 0.0
      %571 = vmatprep.subr.mxu0 0.0
      %572 = vmatpush1.xpose.msra.mxu0 0.0
      %573 = vmatprep.subr.mxu0 0.0
      %574 = vmatpush1.xpose.msra.mxu0 0.0
      %575 = vmatprep.subr.mxu0 0.0
      %576 = vmatpush1.xpose.msra.mxu0 0.0
      %577 = vmatprep.subr.mxu0 0.0
      %578 = vmatpush1.xpose.msra.mxu0 0.0
      %579 = vmatprep.subr.mxu0 0.0
      %580 = vmatpush1.xpose.msra.mxu0 0.0
      %581 = vmatprep.subr.mxu0 0.0
      %582 = vmatpush1.xpose.msra.mxu0 0.0
      %583 = vmatprep.subr.mxu0 0.0
      %584 = vmatpush1.xpose.msra.mxu0 0.0
      %585 = vmatprep.subr.mxu0 0.0
      %586 = vmatpush1.xpose.msra.mxu0 0.0
      %587 = vmatprep.subr.mxu0 0.0
      %588 = vmatpush1.xpose.msra.mxu0 0.0
      %589 = vmatprep.subr.mxu0 0.0
      %590 = vmatpush1.xpose.msra.mxu0 0.0
      %591 = vmatprep.subr.mxu0 0.0
      %592 = vmatpush1.xpose.msra.mxu0 0.0
      %593 = vmatprep.subr.mxu0 0.0
      %594 = vmatpush1.xpose.msra.mxu0 0.0
      %595 = vmatprep.subr.mxu0 0.0
      %596 = vmatpush1.xpose.msra.mxu0 0.0
      %597 = vmatprep.mubr.f32.mxu0 0.0
      %598 = vmatmul.mubr.f32.gmra.mrb[0].mxu0 %v521
      %v599 = vpop.f32.mrb[0].mxu0
      %v600 = vadd.f32 0.0, %v599
      %v601 = vpop.f32.mrb[0].mxu0
      %602 = vmatprep.mubr.f32.mxu0 0.0
      %603 = vmatmul.mubr.f32.gmra.mrb[0].mxu0 %v523
      %v604 = vpop.f32.mrb[0].mxu0
      %v605 = vadd.f32 0.0, %v604
      %v606 = vpop.f32.mrb[0].mxu0
      %607 = vmatprep.mubr.f32.mxu0 0.0
      %608 = vmatmul.mubr.f32.gmra.mrb[0].mxu0 %v525
      %v609 = vpop.f32.mrb[0].mxu0
      %v610 = vadd.f32 0.0, %v609
      %v611 = vpop.f32.mrb[0].mxu0
      %612 = vdwg.mxu0
      %v613 = vmul.f32 %v600, 0.35355338
      %v614 = vmul.f32 %v605, 0.35355338
      %v615 = vmul.f32 %v610, 0.35355338
      %vm616 = vcmask 138240
      %v617 = vsel %vm616, %v613, -inf
      %618 = vmax.xlane.f32.xlu0 %v617
      %v619 = vpop.xlane.xlu0 %618
      %v620 = vsel %vm616, %v614, -inf
      %621 = vmax.xlane.f32.xlu0 %v620
      %v622 = vpop.xlane.xlu0 %621
      %v623 = vsel %vm616, %v615, -inf
      %624 = vmax.xlane.f32.xlu0 %v623
      %v625 = vpop.xlane.xlu0 %624
      %v626 = vsub.f32 %v613, %v619
      %v627 = vsub.f32 %v614, %v622
      %v628 = vsub.f32 %v615, %v625
      %v629 = vmul.f32 %v626, 1.442695
      %v630 = vpow.pop %v629
      %v631 = vmul.f32 %v627, 1.442695
      %v632 = vpow.pop %v631
      %v633 = vmul.f32 %v628, 1.442695
      %v634 = vpow.pop %v633
      %v635 = vsel %vm616, %v630, 0.0
      %636 = vadd.xlane.f32.xlu0 %v635
      %v637 = vpop.xlane.xlu0 %636
      %v638 = vsel %vm616, %v632, 0.0
      %639 = vadd.xlane.f32.xlu0 %v638
      %v640 = vpop.xlane.xlu0 %639
      %v641 = vsel %vm616, %v634, 0.0
      %642 = vadd.xlane.f32.xlu0 %v641
      %v643 = vpop.xlane.xlu0 %642
      %v644 = vrcp.pop %v637
      %v645 = vmul.f32 %v630, %v644
      %v646 = vrcp.pop %v640
      %v647 = vmul.f32 %v632, %v646
      %v648 = vrcp.pop %v643
      %v649 = vmul.f32 %v634, %v648
      %650 = vrot.lane.b32.xlu0 %v498, 64
      %v651 = vpop.permute.xlu0 %650
      %652 = vrot.lane.b32.xlu0 %v503, 64
      %v653 = vpop.permute.xlu0 %652
      %654 = vrot.lane.b32.xlu0 %v508, 64
      %v655 = vpop.permute.xlu0 %654
      %v659 = vsel %vm616, %v645, 0
      %v662 = vsel %vm616, %v647, 0
      %v665 = vsel %vm616, %v649, 0
      %v667 = vsel %vm274, %v655, 0
      %669 = vmatprep.subr.mxu0 0.0
      %670 = vmatpush1.msra.mxu0 %v651
      %671 = vmatprep.subr.mxu0 0.0
      %672 = vmatpush1.msra.mxu0 %v653
      %673 = vmatprep.subr.mxu0 0.0
      %674 = vmatpush1.msra.mxu0 %v667
      %675 = vmatprep.subr.mxu0 0.0
      %676 = vmatpush1.msra.mxu0 0.0
      %677 = vmatprep.subr.mxu0 0.0
      %678 = vmatpush1.msra.mxu0 0.0
      %679 = vmatprep.subr.mxu0 0.0
      %680 = vmatpush1.msra.mxu0 0.0
      %681 = vmatprep.subr.mxu0 0.0
      %682 = vmatpush1.msra.mxu0 0.0
      %683 = vmatprep.subr.mxu0 0.0
      %684 = vmatpush1.msra.mxu0 0.0
      %685 = vmatprep.subr.mxu0 0.0
      %686 = vmatpush1.msra.mxu0 0.0
      %687 = vmatprep.subr.mxu0 0.0
      %688 = vmatpush1.msra.mxu0 0.0
      %689 = vmatprep.subr.mxu0 0.0
      %690 = vmatpush1.msra.mxu0 0.0
      %691 = vmatprep.subr.mxu0 0.0
      %692 = vmatpush1.msra.mxu0 0.0
      %693 = vmatprep.subr.mxu0 0.0
      %694 = vmatpush1.msra.mxu0 0.0
      %695 = vmatprep.subr.mxu0 0.0
      %696 = vmatpush1.msra.mxu0 0.0
      %697 = vmatprep.subr.mxu0 0.0
      %698 = vmatpush1.msra.mxu0 0.0
      %699 = vmatprep.subr.mxu0 0.0
      %700 = vmatpush1.msra.mxu0 0.0
      %701 = vmatprep.subr.mxu0 0.0
      %702 = vmatpush1.msra.mxu0 0.0
      %703 = vmatprep.subr.mxu0 0.0
      %704 = vmatpush1.msra.mxu0 0.0
      %705 = vmatprep.subr.mxu0 0.0
      %706 = vmatpush1.msra.mxu0 0.0
      %707 = vmatprep.subr.mxu0 0.0
      %708 = vmatpush1.msra.mxu0 0.0
      %709 = vmatprep.subr.mxu0 0.0
      %710 = vmatpush1.msra.mxu0 0.0
      %711 = vmatprep.subr.mxu0 0.0
      %712 = vmatpush1.msra.mxu0 0.0
      %713 = vmatprep.subr.mxu0 0.0
      %714 = vmatpush1.msra.mxu0 0.0
      %715 = vmatprep.subr.mxu0 0.0
      %716 = vmatpush1.msra.mxu0 0.0
      %717 = vmatprep.subr.mxu0 0.0
      %718 = vmatpush1.msra.mxu0 0.0
      %719 = vmatprep.subr.mxu0 0.0
      %720 = vmatpush1.msra.mxu0 0.0
      %721 = vmatprep.subr.mxu0 0.0
      %722 = vmatpush1.msra.mxu0 0.0
      %723 = vmatprep.subr.mxu0 0.0
      %724 = vmatpush1.msra.mxu0 0.0
      %725 = vmatprep.subr.mxu0 0.0
      %726 = vmatpush1.msra.mxu0 0.0
      %727 = vmatprep.subr.mxu0 0.0
      %728 = vmatpush1.msra.mxu0 0.0
      %729 = vmatprep.subr.mxu0 0.0
      %730 = vmatpush1.msra.mxu0 0.0
      %731 = vmatprep.subr.mxu0 0.0
      %732 = vmatpush1.msra.mxu0 0.0
      %733 = vmatprep.mubr.f32.mxu0 0.0
      %734 = vmatmul.mubr.f32.gmra.mrb[0].mxu0 %v659
      %v735 = vpop.f32.mrb[0].mxu0
      %v736 = vadd.f32 0.0, %v735
      %v737 = vpop.f32.mrb[0].mxu0
      %738 = vmatprep.mubr.f32.mxu0 0.0
      %739 = vmatmul.mubr.f32.gmra.mrb[0].mxu0 %v662
      %v740 = vpop.f32.mrb[0].mxu0
      %v741 = vadd.f32 0.0, %v740
      %v742 = vpop.f32.mrb[0].mxu0
      %743 = vmatprep.mubr.f32.mxu0 0.0
      %744 = vmatmul.mubr.f32.gmra.mrb[0].mxu0 %v665
      %v745 = vpop.f32.mrb[0].mxu0
      %v746 = vadd.f32 0.0, %v745
      %v747 = vpop.f32.mrb[0].mxu0
      %748 = vdwg.mxu0
      %749 = vrot.lane.b32.xlu0 %v498, 120
      %v750 = vpop.permute.xlu0 %749
      %751 = vrot.lane.b32.xlu0 %v503, 120
      %v752 = vpop.permute.xlu0 %751
      %753 = vrot.lane.b32.xlu0 %v508, 120
      %v754 = vpop.permute.xlu0 %753
      %755 = vrot.lane.b32.xlu0 %v498, 88
      %v756 = vpop.permute.xlu0 %755
      %757 = vrot.lane.b32.xlu0 %v503, 88
      %v758 = vpop.permute.xlu0 %757
      %759 = vrot.lane.b32.xlu0 %v508, 88
      %v760 = vpop.permute.xlu0 %759
      %v761 = vsel %vm520, %v750, 0
      %v763 = vsel %vm520, %v752, 0
      %v765 = vsel %vm520, %v754, 0
      %v767 = vsel %vm520, %v756, 0
      %v769 = vsel %vm520, %v758, 0
      %v771 = vsel %vm520, %v760, 0
      %773 = vmatprep.subr.mxu0 0.0
      %774 = vmatpush1.xpose.msra.mxu0 %v767
      %775 = vmatprep.subr.mxu0 0.0
      %776 = vmatpush1.xpose.msra.mxu0 %v769
      %777 = vmatprep.subr.mxu0 0.0
      %778 = vmatpush1.xpose.msra.mxu0 %v771
      %779 = vmatprep.subr.mxu0 0.0
      %780 = vmatpush1.xpose.msra.mxu0 0.0
      %781 = vmatprep.subr.mxu0 0.0
      %782 = vmatpush1.xpose.msra.mxu0 0.0
      %783 = vmatprep.subr.mxu0 0.0
      %784 = vmatpush1.xpose.msra.mxu0 0.0
      %785 = vmatprep.subr.mxu0 0.0
      %786 = vmatpush1.xpose.msra.mxu0 0.0
      %787 = vmatprep.subr.mxu0 0.0
      %788 = vmatpush1.xpose.msra.mxu0 0.0
      %789 = vmatprep.subr.mxu0 0.0
      %790 = vmatpush1.xpose.msra.mxu0 0.0
      %791 = vmatprep.subr.mxu0 0.0
      %792 = vmatpush1.xpose.msra.mxu0 0.0
      %793 = vmatprep.subr.mxu0 0.0
      %794 = vmatpush1.xpose.msra.mxu0 0.0
      %795 = vmatprep.subr.mxu0 0.0
      %796 = vmatpush1.xpose.msra.mxu0 0.0
      %797 = vmatprep.subr.mxu0 0.0
      %798 = vmatpush1.xpose.msra.mxu0 0.0
      %799 = vmatprep.subr.mxu0 0.0
      %800 = vmatpush1.xpose.msra.mxu0 0.0
      %801 = vmatprep.subr.mxu0 0.0
      %802 = vmatpush1.xpose.msra.mxu0 0.0
      %803 = vmatprep.subr.mxu0 0.0
      %804 = vmatpush1.xpose.msra.mxu0 0.0
      %805 = vmatprep.subr.mxu0 0.0
      %806 = vmatpush1.xpose.msra.mxu0 0.0
      %807 = vmatprep.subr.mxu0 0.0
      %808 = vmatpush1.xpose.msra.mxu0 0.0
      %809 = vmatprep.subr.mxu0 0.0
      %810 = vmatpush1.xpose.msra.mxu0 0.0
      %811 = vmatprep.subr.mxu0 0.0
      %812 = vmatpush1.xpose.msra.mxu0 0.0
      %813 = vmatprep.subr.mxu0 0.0
      %814 = vmatpush1.xpose.msra.mxu0 0.0
      %815 = vmatprep.subr.mxu0 0.0
      %816 = vmatpush1.xpose.msra.mxu0 0.0
      %817 = vmatprep.subr.mxu0 0.0
      %818 = vmatpush1.xpose.msra.mxu0 0.0
      %819 = vmatprep.subr.mxu0 0.0
      %820 = vmatpush1.xpose.msra.mxu0 0.0
      %821 = vmatprep.subr.mxu0 0.0
      %822 = vmatpush1.xpose.msra.mxu0 0.0
      %823 = vmatprep.subr.mxu0 0.0
      %824 = vmatpush1.xpose.msra.mxu0 0.0
      %825 = vmatprep.subr.mxu0 0.0
      %826 = vmatpush1.xpose.msra.mxu0 0.0
      %827 = vmatprep.subr.mxu0 0.0
      %828 = vmatpush1.xpose.msra.mxu0 0.0
      %829 = vmatprep.subr.mxu0 0.0
      %830 = vmatpush1.xpose.msra.mxu0 0.0
      %831 = vmatprep.subr.mxu0 0.0
      %832 = vmatpush1.xpose.msra.mxu0 0.0
      %833 = vmatprep.subr.mxu0 0.0
      %834 = vmatpush1.xpose.msra.mxu0 0.0
      %835 = vmatprep.subr.mxu0 0.0
      %836 = vmatpush1.xpose.msra.mxu0 0.0
      %837 = vmatprep.mubr.f32.mxu0 0.0
      %838 = vmatmul.mubr.f32.gmra.mrb[0].mxu0 %v761
      %v839 = vpop.f32.mrb[0].mxu0
      %v840 = vadd.f32 0.0, %v839
      %v841 = vpop.f32.mrb[0].mxu0
      %842 = vmatprep.mubr.f32.mxu0 0.0
      %843 = vmatmul.mubr.f32.gmra.mrb[0].mxu0 %v763
      %v844 = vpop.f32.mrb[0].mxu0
      %v845 = vadd.f32 0.0, %v844
      %v846 = vpop.f32.mrb[0].mxu0
      %847 = vmatprep.mubr.f32.mxu0 0.0
      %848 = vmatmul.mubr.f32.gmra.mrb[0].mxu0 %v765
      %v849 = vpop.f32.mrb[0].mxu0
      %v850 = vadd.f32 0.0, %v849
      %v851 = vpop.f32.mrb[0].mxu0
      %852 = vdwg.mxu0
      %v853 = vmul.f32 %v840, 0.35355338
      %v854 = vmul.f32 %v845, 0.35355338
      %v855 = vmul.f32 %v850, 0.35355338
      %v856 = vsel %vm616, %v853, -inf
      %857 = vmax.xlane.f32.xlu0 %v856
      %v858 = vpop.xlane.xlu0 %857
      %v859 = vsel %vm616, %v854, -inf
      %860 = vmax.xlane.f32.xlu0 %v859
      %v861 = vpop.xlane.xlu0 %860
      %v862 = vsel %vm616, %v855, -inf
      %863 = vmax.xlane.f32.xlu0 %v862
      %v864 = vpop.xlane.xlu0 %863
      %v865 = vsub.f32 %v853, %v858
      %v866 = vsub.f32 %v854, %v861
      %v867 = vsub.f32 %v855, %v864
      %v868 = vmul.f32 %v865, 1.442695
      %v869 = vpow.pop %v868
      %v870 = vmul.f32 %v866, 1.442695
      %v871 = vpow.pop %v870
      %v872 = vmul.f32 %v867, 1.442695
      %v873 = vpow.pop %v872
      %v874 = vsel %vm616, %v869, 0.0
      %875 = vadd.xlane.f32.xlu0 %v874
      %v876 = vpop.xlane.xlu0 %875
      %v877 = vsel %vm616, %v871, 0.0
      %878 = vadd.xlane.f32.xlu0 %v877
      %v879 = vpop.xlane.xlu0 %878
      %v880 = vsel %vm616, %v873, 0.0
      %881 = vadd.xlane.f32.xlu0 %v880
      %v882 = vpop.xlane.xlu0 %881
      %v883 = vrcp.pop %v876
      %v884 = vmul.f32 %v869, %v883
      %v885 = vrcp.pop %v879
      %v886 = vmul.f32 %v871, %v885
      %v887 = vrcp.pop %v882
      %v888 = vmul.f32 %v873, %v887
      %889 = vrot.lane.b32.xlu0 %v498, 56
      %v890 = vpop.permute.xlu0 %889
      %891 = vrot.lane.b32.xlu0 %v503, 56
      %v892 = vpop.permute.xlu0 %891
      %893 = vrot.lane.b32.xlu0 %v508, 56
      %v894 = vpop.permute.xlu0 %893
      %v898 = vsel %vm616, %v884, 0
      %v901 = vsel %vm616, %v886, 0
      %v904 = vsel %vm616, %v888, 0
      %v906 = vsel %vm274, %v894, 0
      %908 = vmatprep.subr.mxu0 0.0
      %909 = vmatpush1.msra.mxu0 %v890
      %910 = vmatprep.subr.mxu0 0.0
      %911 = vmatpush1.msra.mxu0 %v892
      %912 = vmatprep.subr.mxu0 0.0
      %913 = vmatpush1.msra.mxu0 %v906
      %914 = vmatprep.subr.mxu0 0.0
      %915 = vmatpush1.msra.mxu0 0.0
      %916 = vmatprep.subr.mxu0 0.0
      %917 = vmatpush1.msra.mxu0 0.0
      %918 = vmatprep.subr.mxu0 0.0
      %919 = vmatpush1.msra.mxu0 0.0
      %920 = vmatprep.subr.mxu0 0.0
      %921 = vmatpush1.msra.mxu0 0.0
      %922 = vmatprep.subr.mxu0 0.0
      %923 = vmatpush1.msra.mxu0 0.0
      %924 = vmatprep.subr.mxu0 0.0
      %925 = vmatpush1.msra.mxu0 0.0
      %926 = vmatprep.subr.mxu0 0.0
      %927 = vmatpush1.msra.mxu0 0.0
      %928 = vmatprep.subr.mxu0 0.0
      %929 = vmatpush1.msra.mxu0 0.0
      %930 = vmatprep.subr.mxu0 0.0
      %931 = vmatpush1.msra.mxu0 0.0
      %932 = vmatprep.subr.mxu0 0.0
      %933 = vmatpush1.msra.mxu0 0.0
      %934 = vmatprep.subr.mxu0 0.0
      %935 = vmatpush1.msra.mxu0 0.0
      %936 = vmatprep.subr.mxu0 0.0
      %937 = vmatpush1.msra.mxu0 0.0
      %938 = vmatprep.subr.mxu0 0.0
      %939 = vmatpush1.msra.mxu0 0.0
      %940 = vmatprep.subr.mxu0 0.0
      %941 = vmatpush1.msra.mxu0 0.0
      %942 = vmatprep.subr.mxu0 0.0
      %943 = vmatpush1.msra.mxu0 0.0
      %944 = vmatprep.subr.mxu0 0.0
      %945 = vmatpush1.msra.mxu0 0.0
      %946 = vmatprep.subr.mxu0 0.0
      %947 = vmatpush1.msra.mxu0 0.0
      %948 = vmatprep.subr.mxu0 0.0
      %949 = vmatpush1.msra.mxu0 0.0
      %950 = vmatprep.subr.mxu0 0.0
      %951 = vmatpush1.msra.mxu0 0.0
      %952 = vmatprep.subr.mxu0 0.0
      %953 = vmatpush1.msra.mxu0 0.0
      %954 = vmatprep.subr.mxu0 0.0
      %955 = vmatpush1.msra.mxu0 0.0
      %956 = vmatprep.subr.mxu0 0.0
      %957 = vmatpush1.msra.mxu0 0.0
      %958 = vmatprep.subr.mxu0 0.0
      %959 = vmatpush1.msra.mxu0 0.0
      %960 = vmatprep.subr.mxu0 0.0
      %961 = vmatpush1.msra.mxu0 0.0
      %962 = vmatprep.subr.mxu0 0.0
      %963 = vmatpush1.msra.mxu0 0.0
      %964 = vmatprep.subr.mxu0 0.0
      %965 = vmatpush1.msra.mxu0 0.0
      %966 = vmatprep.subr.mxu0 0.0
      %967 = vmatpush1.msra.mxu0 0.0
      %968 = vmatprep.subr.mxu0 0.0
      %969 = vmatpush1.msra.mxu0 0.0
      %970 = vmatprep.subr.mxu0 0.0
      %971 = vmatpush1.msra.mxu0 0.0
      %972 = vmatprep.mubr.f32.mxu0 0.0
      %973 = vmatmul.mubr.f32.gmra.mrb[0].mxu0 %v898
      %v974 = vpop.f32.mrb[0].mxu0
      %v975 = vadd.f32 0.0, %v974
      %v976 = vpop.f32.mrb[0].mxu0
      %977 = vmatprep.mubr.f32.mxu0 0.0
      %978 = vmatmul.mubr.f32.gmra.mrb[0].mxu0 %v901
      %v979 = vpop.f32.mrb[0].mxu0
      %v980 = vadd.f32 0.0, %v979
      %v981 = vpop.f32.mrb[0].mxu0
      %982 = vmatprep.mubr.f32.mxu0 0.0
      %983 = vmatmul.mubr.f32.gmra.mrb[0].mxu0 %v904
      %v984 = vpop.f32.mrb[0].mxu0
      %v985 = vadd.f32 0.0, %v984
      %v986 = vpop.f32.mrb[0].mxu0
      %987 = vdwg.mxu0
      %988 = vrot.lane.b32.xlu0 %v498, 112
      %v989 = vpop.permute.xlu0 %988
      %990 = vrot.lane.b32.xlu0 %v503, 112
      %v991 = vpop.permute.xlu0 %990
      %992 = vrot.lane.b32.xlu0 %v508, 112
      %v993 = vpop.permute.xlu0 %992
      %994 = vrot.lane.b32.xlu0 %v498, 80
      %v995 = vpop.permute.xlu0 %994
      %996 = vrot.lane.b32.xlu0 %v503, 80
      %v997 = vpop.permute.xlu0 %996
      %998 = vrot.lane.b32.xlu0 %v508, 80
      %v999 = vpop.permute.xlu0 %998
      %v1000 = vsel %vm520, %v989, 0
      %v1002 = vsel %vm520, %v991, 0
      %v1004 = vsel %vm520, %v993, 0
      %v1006 = vsel %vm520, %v995, 0
      %v1008 = vsel %vm520, %v997, 0
      %v1010 = vsel %vm520, %v999, 0
      %1012 = vmatprep.subr.mxu0 0.0
      %1013 = vmatpush1.xpose.msra.mxu0 %v1006
      %1014 = vmatprep.subr.mxu0 0.0
      %1015 = vmatpush1.xpose.msra.mxu0 %v1008
      %1016 = vmatprep.subr.mxu0 0.0
      %1017 = vmatpush1.xpose.msra.mxu0 %v1010
      %1018 = vmatprep.subr.mxu0 0.0
      %1019 = vmatpush1.xpose.msra.mxu0 0.0
      %1020 = vmatprep.subr.mxu0 0.0
      %1021 = vmatpush1.xpose.msra.mxu0 0.0
      %1022 = vmatprep.subr.mxu0 0.0
      %1023 = vmatpush1.xpose.msra.mxu0 0.0
      %1024 = vmatprep.subr.mxu0 0.0
      %1025 = vmatpush1.xpose.msra.mxu0 0.0
      %1026 = vmatprep.subr.mxu0 0.0
      %1027 = vmatpush1.xpose.msra.mxu0 0.0
      %1028 = vmatprep.subr.mxu0 0.0
      %1029 = vmatpush1.xpose.msra.mxu0 0.0
      %1030 = vmatprep.subr.mxu0 0.0
      %1031 = vmatpush1.xpose.msra.mxu0 0.0
      %1032 = vmatprep.subr.mxu0 0.0
      %1033 = vmatpush1.xpose.msra.mxu0 0.0
      %1034 = vmatprep.subr.mxu0 0.0
      %1035 = vmatpush1.xpose.msra.mxu0 0.0
      %1036 = vmatprep.subr.mxu0 0.0
      %1037 = vmatpush1.xpose.msra.mxu0 0.0
      %1038 = vmatprep.subr.mxu0 0.0
      %1039 = vmatpush1.xpose.msra.mxu0 0.0
      %1040 = vmatprep.subr.mxu0 0.0
      %1041 = vmatpush1.xpose.msra.mxu0 0.0
      %1042 = vmatprep.subr.mxu0 0.0
      %1043 = vmatpush1.xpose.msra.mxu0 0.0
      %1044 = vmatprep.subr.mxu0 0.0
      %1045 = vmatpush1.xpose.msra.mxu0 0.0
      %1046 = vmatprep.subr.mxu0 0.0
      %1047 = vmatpush1.xpose.msra.mxu0 0.0
      %1048 = vmatprep.subr.mxu0 0.0
      %1049 = vmatpush1.xpose.msra.mxu0 0.0
      %1050 = vmatprep.subr.mxu0 0.0
      %1051 = vmatpush1.xpose.msra.mxu0 0.0
      %1052 = vmatprep.subr.mxu0 0.0
      %1053 = vmatpush1.xpose.msra.mxu0 0.0
      %1054 = vmatprep.subr.mxu0 0.0
      %1055 = vmatpush1.xpose.msra.mxu0 0.0
      %1056 = vmatprep.subr.mxu0 0.0
      %1057 = vmatpush1.xpose.msra.mxu0 0.0
      %1058 = vmatprep.subr.mxu0 0.0
      %1059 = vmatpush1.xpose.msra.mxu0 0.0
      %1060 = vmatprep.subr.mxu0 0.0
      %1061 = vmatpush1.xpose.msra.mxu0 0.0
      %1062 = vmatprep.subr.mxu0 0.0
      %1063 = vmatpush1.xpose.msra.mxu0 0.0
      %1064 = vmatprep.subr.mxu0 0.0
      %1065 = vmatpush1.xpose.msra.mxu0 0.0
      %1066 = vmatprep.subr.mxu0 0.0
      %1067 = vmatpush1.xpose.msra.mxu0 0.0
      %1068 = vmatprep.subr.mxu0 0.0
      %1069 = vmatpush1.xpose.msra.mxu0 0.0
      %1070 = vmatprep.subr.mxu0 0.0
      %1071 = vmatpush1.xpose.msra.mxu0 0.0
      %1072 = vmatprep.subr.mxu0 0.0
      %1073 = vmatpush1.xpose.msra.mxu0 0.0
      %1074 = vmatprep.subr.mxu0 0.0
      %1075 = vmatpush1.xpose.msra.mxu0 0.0
      %1076 = vmatprep.mubr.f32.mxu0 0.0
      %1077 = vmatmul.mubr.f32.gmra.mrb[0].mxu0 %v1000
      %v1078 = vpop.f32.mrb[0].mxu0
      %v1079 = vadd.f32 0.0, %v1078
      %v1080 = vpop.f32.mrb[0].mxu0
      %1081 = vmatprep.mubr.f32.mxu0 0.0
      %1082 = vmatmul.mubr.f32.gmra.mrb[0].mxu0 %v1002
      %v1083 = vpop.f32.mrb[0].mxu0
      %v1084 = vadd.f32 0.0, %v1083
      %v1085 = vpop.f32.mrb[0].mxu0
      %1086 = vmatprep.mubr.f32.mxu0 0.0
      %1087 = vmatmul.mubr.f32.gmra.mrb[0].mxu0 %v1004
      %v1088 = vpop.f32.mrb[0].mxu0
      %v1089 = vadd.f32 0.0, %v1088
      %v1090 = vpop.f32.mrb[0].mxu0
      %1091 = vdwg.mxu0
      %v1092 = vmul.f32 %v1079, 0.35355338
      %v1093 = vmul.f32 %v1084, 0.35355338
      %v1094 = vmul.f32 %v1089, 0.35355338
      %v1095 = vsel %vm616, %v1092, -inf
      %1096 = vmax.xlane.f32.xlu0 %v1095
      %v1097 = vpop.xlane.xlu0 %1096
      %v1098 = vsel %vm616, %v1093, -inf
      %1099 = vmax.xlane.f32.xlu0 %v1098
      %v1100 = vpop.xlane.xlu0 %1099
      %v1101 = vsel %vm616, %v1094, -inf
      %1102 = vmax.xlane.f32.xlu0 %v1101
      %v1103 = vpop.xlane.xlu0 %1102
      %v1104 = vsub.f32 %v1092, %v1097
      %v1105 = vsub.f32 %v1093, %v1100
      %v1106 = vsub.f32 %v1094, %v1103
      %v1107 = vmul.f32 %v1104, 1.442695
      %v1108 = vpow.pop %v1107
      %v1109 = vmul.f32 %v1105, 1.442695
      %v1110 = vpow.pop %v1109
      %v1111 = vmul.f32 %v1106, 1.442695
      %v1112 = vpow.pop %v1111
      %v1113 = vsel %vm616, %v1108, 0.0
      %1114 = vadd.xlane.f32.xlu0 %v1113
      %v1115 = vpop.xlane.xlu0 %1114
      %v1116 = vsel %vm616, %v1110, 0.0
      %1117 = vadd.xlane.f32.xlu0 %v1116
      %v1118 = vpop.xlane.xlu0 %1117
      %v1119 = vsel %vm616, %v1112, 0.0
      %1120 = vadd.xlane.f32.xlu0 %v1119
      %v1121 = vpop.xlane.xlu0 %1120
      %v1122 = vrcp.pop %v1115
      %v1123 = vmul.f32 %v1108, %v1122
      %v1124 = vrcp.pop %v1118
      %v1125 = vmul.f32 %v1110, %v1124
      %v1126 = vrcp.pop %v1121
      %v1127 = vmul.f32 %v1112, %v1126
      %1128 = vrot.lane.b32.xlu0 %v498, 48
      %v1129 = vpop.permute.xlu0 %1128
      %1130 = vrot.lane.b32.xlu0 %v503, 48
      %v1131 = vpop.permute.xlu0 %1130
      %1132 = vrot.lane.b32.xlu0 %v508, 48
      %v1133 = vpop.permute.xlu0 %1132
      %v1137 = vsel %vm616, %v1123, 0
      %v1140 = vsel %vm616, %v1125, 0
      %v1143 = vsel %vm616, %v1127, 0
      %v1145 = vsel %vm274, %v1133, 0
      %1147 = vmatprep.subr.mxu0 0.0
      %1148 = vmatpush1.msra.mxu0 %v1129
      %1149 = vmatprep.subr.mxu0 0.0
      %1150 = vmatpush1.msra.mxu0 %v1131
      %1151 = vmatprep.subr.mxu0 0.0
      %1152 = vmatpush1.msra.mxu0 %v1145
      %1153 = vmatprep.subr.mxu0 0.0
      %1154 = vmatpush1.msra.mxu0 0.0
      %1155 = vmatprep.subr.mxu0 0.0
      %1156 = vmatpush1.msra.mxu0 0.0
      %1157 = vmatprep.subr.mxu0 0.0
      %1158 = vmatpush1.msra.mxu0 0.0
      %1159 = vmatprep.subr.mxu0 0.0
      %1160 = vmatpush1.msra.mxu0 0.0
      %1161 = vmatprep.subr.mxu0 0.0
      %1162 = vmatpush1.msra.mxu0 0.0
      %1163 = vmatprep.subr.mxu0 0.0
      %1164 = vmatpush1.msra.mxu0 0.0
      %1165 = vmatprep.subr.mxu0 0.0
      %1166 = vmatpush1.msra.mxu0 0.0
      %1167 = vmatprep.subr.mxu0 0.0
      %1168 = vmatpush1.msra.mxu0 0.0
      %1169 = vmatprep.subr.mxu0 0.0
      %1170 = vmatpush1.msra.mxu0 0.0
      %1171 = vmatprep.subr.mxu0 0.0
      %1172 = vmatpush1.msra.mxu0 0.0
      %1173 = vmatprep.subr.mxu0 0.0
      %1174 = vmatpush1.msra.mxu0 0.0
      %1175 = vmatprep.subr.mxu0 0.0
      %1176 = vmatpush1.msra.mxu0 0.0
      %1177 = vmatprep.subr.mxu0 0.0
      %1178 = vmatpush1.msra.mxu0 0.0
      %1179 = vmatprep.subr.mxu0 0.0
      %1180 = vmatpush1.msra.mxu0 0.0
      %1181 = vmatprep.subr.mxu0 0.0
      %1182 = vmatpush1.msra.mxu0 0.0
      %1183 = vmatprep.subr.mxu0 0.0
      %1184 = vmatpush1.msra.mxu0 0.0
      %1185 = vmatprep.subr.mxu0 0.0
      %1186 = vmatpush1.msra.mxu0 0.0
      %1187 = vmatprep.subr.mxu0 0.0
      %1188 = vmatpush1.msra.mxu0 0.0
      %1189 = vmatprep.subr.mxu0 0.0
      %1190 = vmatpush1.msra.mxu0 0.0
      %1191 = vmatprep.subr.mxu0 0.0
      %1192 = vmatpush1.msra.mxu0 0.0
      %1193 = vmatprep.subr.mxu0 0.0
      %1194 = vmatpush1.msra.mxu0 0.0
      %1195 = vmatprep.subr.mxu0 0.0
      %1196 = vmatpush1.msra.mxu0 0.0
      %1197 = vmatprep.subr.mxu0 0.0
      %1198 = vmatpush1.msra.mxu0 0.0
      %1199 = vmatprep.subr.mxu0 0.0
      %1200 = vmatpush1.msra.mxu0 0.0
      %1201 = vmatprep.subr.mxu0 0.0
      %1202 = vmatpush1.msra.mxu0 0.0
      %1203 = vmatprep.subr.mxu0 0.0
      %1204 = vmatpush1.msra.mxu0 0.0
      %1205 = vmatprep.subr.mxu0 0.0
      %1206 = vmatpush1.msra.mxu0 0.0
      %1207 = vmatprep.subr.mxu0 0.0
      %1208 = vmatpush1.msra.mxu0 0.0
      %1209 = vmatprep.subr.mxu0 0.0
      %1210 = vmatpush1.msra.mxu0 0.0
      %1211 = vmatprep.mubr.f32.mxu0 0.0
      %1212 = vmatmul.mubr.f32.gmra.mrb[0].mxu0 %v1137
      %v1213 = vpop.f32.mrb[0].mxu0
      %v1214 = vadd.f32 0.0, %v1213
      %v1215 = vpop.f32.mrb[0].mxu0
      %1216 = vmatprep.mubr.f32.mxu0 0.0
      %1217 = vmatmul.mubr.f32.gmra.mrb[0].mxu0 %v1140
      %v1218 = vpop.f32.mrb[0].mxu0
      %v1219 = vadd.f32 0.0, %v1218
      %v1220 = vpop.f32.mrb[0].mxu0
      %1221 = vmatprep.mubr.f32.mxu0 0.0
      %1222 = vmatmul.mubr.f32.gmra.mrb[0].mxu0 %v1143
      %v1223 = vpop.f32.mrb[0].mxu0
      %v1224 = vadd.f32 0.0, %v1223
      %v1225 = vpop.f32.mrb[0].mxu0
      %1226 = vdwg.mxu0
      %1227 = vrot.lane.b32.xlu0 %v498, 104
      %v1228 = vpop.permute.xlu0 %1227
      %1229 = vrot.lane.b32.xlu0 %v503, 104
      %v1230 = vpop.permute.xlu0 %1229
      %1231 = vrot.lane.b32.xlu0 %v508, 104
      %v1232 = vpop.permute.xlu0 %1231
      %1233 = vrot.lane.b32.xlu0 %v498, 72
      %v1234 = vpop.permute.xlu0 %1233
      %1235 = vrot.lane.b32.xlu0 %v503, 72
      %v1236 = vpop.permute.xlu0 %1235
      %1237 = vrot.lane.b32.xlu0 %v508, 72
      %v1238 = vpop.permute.xlu0 %1237
      %v1239 = vsel %vm520, %v1228, 0
      %v1241 = vsel %vm520, %v1230, 0
      %v1243 = vsel %vm520, %v1232, 0
      %v1245 = vsel %vm520, %v1234, 0
      %v1247 = vsel %vm520, %v1236, 0
      %v1249 = vsel %vm520, %v1238, 0
      %1251 = vmatprep.subr.mxu0 0.0
      %1252 = vmatpush1.xpose.msra.mxu0 %v1245
      %1253 = vmatprep.subr.mxu0 0.0
      %1254 = vmatpush1.xpose.msra.mxu0 %v1247
      %1255 = vmatprep.subr.mxu0 0.0
      %1256 = vmatpush1.xpose.msra.mxu0 %v1249
      %1257 = vmatprep.subr.mxu0 0.0
      %1258 = vmatpush1.xpose.msra.mxu0 0.0
      %1259 = vmatprep.subr.mxu0 0.0
      %1260 = vmatpush1.xpose.msra.mxu0 0.0
      %1261 = vmatprep.subr.mxu0 0.0
      %1262 = vmatpush1.xpose.msra.mxu0 0.0
      %1263 = vmatprep.subr.mxu0 0.0
      %1264 = vmatpush1.xpose.msra.mxu0 0.0
      %1265 = vmatprep.subr.mxu0 0.0
      %1266 = vmatpush1.xpose.msra.mxu0 0.0
      %1267 = vmatprep.subr.mxu0 0.0
      %1268 = vmatpush1.xpose.msra.mxu0 0.0
      %1269 = vmatprep.subr.mxu0 0.0
      %1270 = vmatpush1.xpose.msra.mxu0 0.0
      %1271 = vmatprep.subr.mxu0 0.0
      %1272 = vmatpush1.xpose.msra.mxu0 0.0
      %1273 = vmatprep.subr.mxu0 0.0
      %1274 = vmatpush1.xpose.msra.mxu0 0.0
      %1275 = vmatprep.subr.mxu0 0.0
      %1276 = vmatpush1.xpose.msra.mxu0 0.0
      %1277 = vmatprep.subr.mxu0 0.0
      %1278 = vmatpush1.xpose.msra.mxu0 0.0
      %1279 = vmatprep.subr.mxu0 0.0
      %1280 = vmatpush1.xpose.msra.mxu0 0.0
      %1281 = vmatprep.subr.mxu0 0.0
      %1282 = vmatpush1.xpose.msra.mxu0 0.0
      %1283 = vmatprep.subr.mxu0 0.0
      %1284 = vmatpush1.xpose.msra.mxu0 0.0
      %1285 = vmatprep.subr.mxu0 0.0
      %1286 = vmatpush1.xpose.msra.mxu0 0.0
      %1287 = vmatprep.subr.mxu0 0.0
      %1288 = vmatpush1.xpose.msra.mxu0 0.0
      %1289 = vmatprep.subr.mxu0 0.0
      %1290 = vmatpush1.xpose.msra.mxu0 0.0
      %1291 = vmatprep.subr.mxu0 0.0
      %1292 = vmatpush1.xpose.msra.mxu0 0.0
      %1293 = vmatprep.subr.mxu0 0.0
      %1294 = vmatpush1.xpose.msra.mxu0 0.0
      %1295 = vmatprep.subr.mxu0 0.0
      %1296 = vmatpush1.xpose.msra.mxu0 0.0
      %1297 = vmatprep.subr.mxu0 0.0
      %1298 = vmatpush1.xpose.msra.mxu0 0.0
      %1299 = vmatprep.subr.mxu0 0.0
      %1300 = vmatpush1.xpose.msra.mxu0 0.0
      %1301 = vmatprep.subr.mxu0 0.0
      %1302 = vmatpush1.xpose.msra.mxu0 0.0
      %1303 = vmatprep.subr.mxu0 0.0
      %1304 = vmatpush1.xpose.msra.mxu0 0.0
      %1305 = vmatprep.subr.mxu0 0.0
      %1306 = vmatpush1.xpose.msra.mxu0 0.0
      %1307 = vmatprep.subr.mxu0 0.0
      %1308 = vmatpush1.xpose.msra.mxu0 0.0
      %1309 = vmatprep.subr.mxu0 0.0
      %1310 = vmatpush1.xpose.msra.mxu0 0.0
      %1311 = vmatprep.subr.mxu0 0.0
      %1312 = vmatpush1.xpose.msra.mxu0 0.0
      %1313 = vmatprep.subr.mxu0 0.0
      %1314 = vmatpush1.xpose.msra.mxu0 0.0
      %1315 = vmatprep.mubr.f32.mxu0 0.0
      %1316 = vmatmul.mubr.f32.gmra.mrb[0].mxu0 %v1239
      %v1317 = vpop.f32.mrb[0].mxu0
      %v1318 = vadd.f32 0.0, %v1317
      %v1319 = vpop.f32.mrb[0].mxu0
      %1320 = vmatprep.mubr.f32.mxu0 0.0
      %1321 = vmatmul.mubr.f32.gmra.mrb[0].mxu0 %v1241
      %v1322 = vpop.f32.mrb[0].mxu0
      %v1323 = vadd.f32 0.0, %v1322
      %v1324 = vpop.f32.mrb[0].mxu0
      %1325 = vmatprep.mubr.f32.mxu0 0.0
      %1326 = vmatmul.mubr.f32.gmra.mrb[0].mxu0 %v1243
      %v1327 = vpop.f32.mrb[0].mxu0
      %v1328 = vadd.f32 0.0, %v1327
      %v1329 = vpop.f32.mrb[0].mxu0
      %1330 = vdwg.mxu0
      %v1331 = vmul.f32 %v1318, 0.35355338
      %v1332 = vmul.f32 %v1323, 0.35355338
      %v1333 = vmul.f32 %v1328, 0.35355338
      %v1334 = vsel %vm616, %v1331, -inf
      %1335 = vmax.xlane.f32.xlu0 %v1334
      %v1336 = vpop.xlane.xlu0 %1335
      %v1337 = vsel %vm616, %v1332, -inf
      %1338 = vmax.xlane.f32.xlu0 %v1337
      %v1339 = vpop.xlane.xlu0 %1338
      %v1340 = vsel %vm616, %v1333, -inf
      %1341 = vmax.xlane.f32.xlu0 %v1340
      %v1342 = vpop.xlane.xlu0 %1341
      %v1343 = vsub.f32 %v1331, %v1336
      %v1344 = vsub.f32 %v1332, %v1339
      %v1345 = vsub.f32 %v1333, %v1342
      %v1346 = vmul.f32 %v1343, 1.442695
      %v1347 = vpow.pop %v1346
      %v1348 = vmul.f32 %v1344, 1.442695
      %v1349 = vpow.pop %v1348
      %v1350 = vmul.f32 %v1345, 1.442695
      %v1351 = vpow.pop %v1350
      %v1352 = vsel %vm616, %v1347, 0.0
      %1353 = vadd.xlane.f32.xlu0 %v1352
      %v1354 = vpop.xlane.xlu0 %1353
      %v1355 = vsel %vm616, %v1349, 0.0
      %1356 = vadd.xlane.f32.xlu0 %v1355
      %v1357 = vpop.xlane.xlu0 %1356
      %v1358 = vsel %vm616, %v1351, 0.0
      %1359 = vadd.xlane.f32.xlu0 %v1358
      %v1360 = vpop.xlane.xlu0 %1359
      %v1361 = vrcp.pop %v1354
      %v1362 = vmul.f32 %v1347, %v1361
      %v1363 = vrcp.pop %v1357
      %v1364 = vmul.f32 %v1349, %v1363
      %v1365 = vrcp.pop %v1360
      %v1366 = vmul.f32 %v1351, %v1365
      %1367 = vrot.lane.b32.xlu0 %v498, 40
      %v1368 = vpop.permute.xlu0 %1367
      %1369 = vrot.lane.b32.xlu0 %v503, 40
      %v1370 = vpop.permute.xlu0 %1369
      %1371 = vrot.lane.b32.xlu0 %v508, 40
      %v1372 = vpop.permute.xlu0 %1371
      %v1376 = vsel %vm616, %v1362, 0
      %v1379 = vsel %vm616, %v1364, 0
      %v1382 = vsel %vm616, %v1366, 0
      %v1384 = vsel %vm274, %v1372, 0
      %1386 = vmatprep.subr.mxu0 0.0
      %1387 = vmatpush1.msra.mxu0 %v1368
      %1388 = vmatprep.subr.mxu0 0.0
      %1389 = vmatpush1.msra.mxu0 %v1370
      %1390 = vmatprep.subr.mxu0 0.0
      %1391 = vmatpush1.msra.mxu0 %v1384
      %1392 = vmatprep.subr.mxu0 0.0
      %1393 = vmatpush1.msra.mxu0 0.0
      %1394 = vmatprep.subr.mxu0 0.0
      %1395 = vmatpush1.msra.mxu0 0.0
      %1396 = vmatprep.subr.mxu0 0.0
      %1397 = vmatpush1.msra.mxu0 0.0
      %1398 = vmatprep.subr.mxu0 0.0
      %1399 = vmatpush1.msra.mxu0 0.0
      %1400 = vmatprep.subr.mxu0 0.0
      %1401 = vmatpush1.msra.mxu0 0.0
      %1402 = vmatprep.subr.mxu0 0.0
      %1403 = vmatpush1.msra.mxu0 0.0
      %1404 = vmatprep.subr.mxu0 0.0
      %1405 = vmatpush1.msra.mxu0 0.0
      %1406 = vmatprep.subr.mxu0 0.0
      %1407 = vmatpush1.msra.mxu0 0.0
      %1408 = vmatprep.subr.mxu0 0.0
      %1409 = vmatpush1.msra.mxu0 0.0
      %1410 = vmatprep.subr.mxu0 0.0
      %1411 = vmatpush1.msra.mxu0 0.0
      %1412 = vmatprep.subr.mxu0 0.0
      %1413 = vmatpush1.msra.mxu0 0.0
      %1414 = vmatprep.subr.mxu0 0.0
      %1415 = vmatpush1.msra.mxu0 0.0
      %1416 = vmatprep.subr.mxu0 0.0
      %1417 = vmatpush1.msra.mxu0 0.0
      %1418 = vmatprep.subr.mxu0 0.0
      %1419 = vmatpush1.msra.mxu0 0.0
      %1420 = vmatprep.subr.mxu0 0.0
      %1421 = vmatpush1.msra.mxu0 0.0
      %1422 = vmatprep.subr.mxu0 0.0
      %1423 = vmatpush1.msra.mxu0 0.0
      %1424 = vmatprep.subr.mxu0 0.0
      %1425 = vmatpush1.msra.mxu0 0.0
      %1426 = vmatprep.subr.mxu0 0.0
      %1427 = vmatpush1.msra.mxu0 0.0
      %1428 = vmatprep.subr.mxu0 0.0
      %1429 = vmatpush1.msra.mxu0 0.0
      %1430 = vmatprep.subr.mxu0 0.0
      %1431 = vmatpush1.msra.mxu0 0.0
      %1432 = vmatprep.subr.mxu0 0.0
      %1433 = vmatpush1.msra.mxu0 0.0
      %1434 = vmatprep.subr.mxu0 0.0
      %1435 = vmatpush1.msra.mxu0 0.0
      %1436 = vmatprep.subr.mxu0 0.0
      %1437 = vmatpush1.msra.mxu0 0.0
      %1438 = vmatprep.subr.mxu0 0.0
      %1439 = vmatpush1.msra.mxu0 0.0
      %1440 = vmatprep.subr.mxu0 0.0
      %1441 = vmatpush1.msra.mxu0 0.0
      %1442 = vmatprep.subr.mxu0 0.0
      %1443 = vmatpush1.msra.mxu0 0.0
      %1444 = vmatprep.subr.mxu0 0.0
      %1445 = vmatpush1.msra.mxu0 0.0
      %1446 = vmatprep.subr.mxu0 0.0
      %1447 = vmatpush1.msra.mxu0 0.0
      %1448 = vmatprep.subr.mxu0 0.0
      %1449 = vmatpush1.msra.mxu0 0.0
      %1450 = vmatprep.mubr.f32.mxu0 0.0
      %1451 = vmatmul.mubr.f32.gmra.mrb[0].mxu0 %v1376
      %v1452 = vpop.f32.mrb[0].mxu0
      %v1453 = vadd.f32 0.0, %v1452
      %v1454 = vpop.f32.mrb[0].mxu0
      %1455 = vmatprep.mubr.f32.mxu0 0.0
      %1456 = vmatmul.mubr.f32.gmra.mrb[0].mxu0 %v1379
      %v1457 = vpop.f32.mrb[0].mxu0
      %v1458 = vadd.f32 0.0, %v1457
      %v1459 = vpop.f32.mrb[0].mxu0
      %1460 = vmatprep.mubr.f32.mxu0 0.0
      %1461 = vmatmul.mubr.f32.gmra.mrb[0].mxu0 %v1382
      %v1462 = vpop.f32.mrb[0].mxu0
      %v1463 = vadd.f32 0.0, %v1462
      %v1464 = vpop.f32.mrb[0].mxu0
      %1465 = vdwg.mxu0
      %1469 = vrot.lane.b32.xlu0 %v975, 8
      %v1470 = vpop.permute.xlu0 %1469
      %1471 = vrot.lane.b32.xlu0 %v980, 8
      %v1472 = vpop.permute.xlu0 %1471
      %1473 = vrot.lane.b32.xlu0 %v985, 8
      %v1474 = vpop.permute.xlu0 %1473
      %1481 = vrot.lane.b32.xlu0 %v1214, 16
      %v1482 = vpop.permute.xlu0 %1481
      %1483 = vrot.lane.b32.xlu0 %v1219, 16
      %v1484 = vpop.permute.xlu0 %1483
      %1485 = vrot.lane.b32.xlu0 %v1224, 16
      %v1486 = vpop.permute.xlu0 %1485
      %1493 = vrot.lane.b32.xlu0 %v1453, 24
      %v1494 = vpop.permute.xlu0 %1493
      %1495 = vrot.lane.b32.xlu0 %v1458, 24
      %v1496 = vpop.permute.xlu0 %1495
      %1497 = vrot.lane.b32.xlu0 %v1463, 24
      %v1498 = vpop.permute.xlu0 %1497
      %v1502 = vsel %vm520, %v736, %v1470
      %v1503 = vsel %vm520, %v741, %v1472
      %v1504 = vsel %vm520, %v746, %v1474
      %vm1505 = vcmask 130048
      %v1506 = vsel %vm1505, %v1502, %v1482
      %v1507 = vsel %vm1505, %v1503, %v1484
      %v1508 = vsel %vm1505, %v1504, %v1486
      %vm1509 = vcmask 195584
      %v1510 = vsel %vm1509, %v1506, %v1494
      %v1511 = vsel %vm1509, %v1507, %v1496
      %v1512 = vsel %vm1509, %v1508, %v1498
      %1517 = vrot.lane.b32.xlu0 %v358, 32
      %v1518 = vpop.permute.xlu0 %1517
      %1519 = vrot.lane.b32.xlu0 %v360, 32
      %v1520 = vpop.permute.xlu0 %1519
      %1521 = vrot.lane.b32.xlu0 %v362, 32
      %v1522 = vpop.permute.xlu0 %1521
      %1523 = vrot.lane.b32.xlu0 %v364, 32
      %v1524 = vpop.permute.xlu0 %1523
      %v1530 = vsel %vm367, %v1510, 0
      %v1533 = vsel %vm367, %v1511, 0
      %v1536 = vsel %vm367, %v1512, 0
      %1538 = vmatprep.subr.mxu0 0.0
      %1539 = vmatpush1.msra.mxu0 %v1518
      %1540 = vmatprep.subr.mxu0 0.0
      %1541 = vmatpush1.msra.mxu0 %v1520
      %1542 = vmatprep.subr.mxu0 0.0
      %1543 = vmatpush1.msra.mxu0 %v1522
      %1544 = vmatprep.subr.mxu0 0.0
      %1545 = vmatpush1.msra.mxu0 %v1524
      %1546 = vmatprep.subr.mxu0 0.0
      %1547 = vmatpush1.msra.mxu0 0.0
      %1548 = vmatprep.subr.mxu0 0.0
      %1549 = vmatpush1.msra.mxu0 0.0
      %1550 = vmatprep.subr.mxu0 0.0
      %1551 = vmatpush1.msra.mxu0 0.0
      %1552 = vmatprep.subr.mxu0 0.0
      %1553 = vmatpush1.msra.mxu0 0.0
      %1554 = vmatprep.subr.mxu0 0.0
      %1555 = vmatpush1.msra.mxu0 0.0
      %1556 = vmatprep.subr.mxu0 0.0
      %1557 = vmatpush1.msra.mxu0 0.0
      %1558 = vmatprep.subr.mxu0 0.0
      %1559 = vmatpush1.msra.mxu0 0.0
      %1560 = vmatprep.subr.mxu0 0.0
      %1561 = vmatpush1.msra.mxu0 0.0
      %1562 = vmatprep.subr.mxu0 0.0
      %1563 = vmatpush1.msra.mxu0 0.0
      %1564 = vmatprep.subr.mxu0 0.0
      %1565 = vmatpush1.msra.mxu0 0.0
      %1566 = vmatprep.subr.mxu0 0.0
      %1567 = vmatpush1.msra.mxu0 0.0
      %1568 = vmatprep.subr.mxu0 0.0
      %1569 = vmatpush1.msra.mxu0 0.0
      %1570 = vmatprep.subr.mxu0 0.0
      %1571 = vmatpush1.msra.mxu0 0.0
      %1572 = vmatprep.subr.mxu0 0.0
      %1573 = vmatpush1.msra.mxu0 0.0
      %1574 = vmatprep.subr.mxu0 0.0
      %1575 = vmatpush1.msra.mxu0 0.0
      %1576 = vmatprep.subr.mxu0 0.0
      %1577 = vmatpush1.msra.mxu0 0.0
      %1578 = vmatprep.subr.mxu0 0.0
      %1579 = vmatpush1.msra.mxu0 0.0
      %1580 = vmatprep.subr.mxu0 0.0
      %1581 = vmatpush1.msra.mxu0 0.0
      %1582 = vmatprep.subr.mxu0 0.0
      %1583 = vmatpush1.msra.mxu0 0.0
      %1584 = vmatprep.subr.mxu0 0.0
      %1585 = vmatpush1.msra.mxu0 0.0
      %1586 = vmatprep.subr.mxu0 0.0
      %1587 = vmatpush1.msra.mxu0 0.0
      %1588 = vmatprep.subr.mxu0 0.0
      %1589 = vmatpush1.msra.mxu0 0.0
      %1590 = vmatprep.subr.mxu0 0.0
      %1591 = vmatpush1.msra.mxu0 0.0
      %1592 = vmatprep.subr.mxu0 0.0
      %1593 = vmatpush1.msra.mxu0 0.0
      %1594 = vmatprep.subr.mxu0 0.0
      %1595 = vmatpush1.msra.mxu0 0.0
      %1596 = vmatprep.subr.mxu0 0.0
      %1597 = vmatpush1.msra.mxu0 0.0
      %1598 = vmatprep.subr.mxu0 0.0
      %1599 = vmatpush1.msra.mxu0 0.0
      %1600 = vmatprep.subr.mxu0 0.0
      %1601 = vmatpush1.msra.mxu0 0.0
      %1602 = vmatprep.mubr.f32.mxu0 0.0
      %1603 = vmatmul.mubr.f32.gmra.mrb[0].mxu0 %v1530
      %v1604 = vpop.f32.mrb[0].mxu0
      %v1605 = vadd.f32 0.0, %v1604
      %v1606 = vpop.f32.mrb[0].mxu0
      %1607 = vmatprep.mubr.f32.mxu0 0.0
      %1608 = vmatmul.mubr.f32.gmra.mrb[0].mxu0 %v1533
      %v1609 = vpop.f32.mrb[0].mxu0
      %v1610 = vadd.f32 0.0, %v1609
      %v1611 = vpop.f32.mrb[0].mxu0
      %1612 = vmatprep.mubr.f32.mxu0 0.0
      %1613 = vmatmul.mubr.f32.gmra.mrb[0].mxu0 %v1536
      %v1614 = vpop.f32.mrb[0].mxu0
      %v1615 = vadd.f32 0.0, %v1614
      %v1616 = vpop.f32.mrb[0].mxu0
      %1617 = vdwg.mxu0
      %v1618 = vadd.f32 %v345, %v1605
      %v1619 = vadd.f32 %v350, %v1610
      %v1620 = vadd.f32 %v355, %v1615
      %v1621 = vlaneseq
      %v1622 = vshrl.u32 %v1621, 7
      %v1623 = vsub.s32 4, %v1622
      %v1624 = vrot.slane %v366, %v1623
      %v1625 = vadd.f32 %v1618, %v1624
      %v1626 = vadd.f32 %v1619, %v1624
      %v1627 = vadd.f32 %v1620, %v1624
      %v1628 = vsel %vm367, %v1625, 0.0
      %1629 = vadd.xlane.f32.xlu0 %v1628
      %v1630 = vpop.xlane.xlu0 %1629
      %v1631 = vsel %vm367, %v1626, 0.0
      %1632 = vadd.xlane.f32.xlu0 %v1631
      %v1633 = vpop.xlane.xlu0 %1632
      %v1634 = vsel %vm367, %v1627, 0.0
      %1635 = vadd.xlane.f32.xlu0 %v1634
      %v1636 = vpop.xlane.xlu0 %1635
      %v1637 = vmul.f32 %v1630, %v377
      %v1638 = vmul.f32 %v1633, %v377
      %v1639 = vmul.f32 %v1636, %v377
      %v1640 = vsub.f32 %v1625, %v1637
      %v1641 = vsub.f32 %v1626, %v1638
      %v1642 = vsub.f32 %v1627, %v1639
      %v1643 = vmul.f32 %v1640, %v1640
      %v1644 = vmul.f32 %v1641, %v1641
      %v1645 = vmul.f32 %v1642, %v1642
      %v1646 = vsel %vm367, %v1643, 0.0
      %1647 = vadd.xlane.f32.xlu0 %v1646
      %v1648 = vpop.xlane.xlu0 %1647
      %v1649 = vsel %vm367, %v1644, 0.0
      %1650 = vadd.xlane.f32.xlu0 %v1649
      %v1651 = vpop.xlane.xlu0 %1650
      %v1652 = vsel %vm367, %v1645, 0.0
      %1653 = vadd.xlane.f32.xlu0 %v1652
      %v1654 = vpop.xlane.xlu0 %1653
      %v1655 = vmul.f32 %v1648, %v377
      %v1656 = vmul.f32 %v1651, %v377
      %v1657 = vmul.f32 %v1654, %v377
      %v1658 = vadd.f32 %v1655, 1e-05
      %v1659 = vadd.f32 %v1656, 1e-05
      %v1660 = vadd.f32 %v1657, 1e-05
      %v1661 = vrsqrt.pop %v1658
      %v1662 = vrsqrt.pop %v1659
      %v1663 = vrsqrt.pop %v1660
      %v1664 = vmul.f32 %v1640, %v1661
      %v1665 = vmul.f32 %v1641, %v1662
      %v1666 = vmul.f32 %v1642, %v1663
      %v1667 = vlaneseq
      %v1668 = vshrl.u32 %v1667, 7
      %v1669 = vsub.s32 2, %v1668
      %v1670 = vrot.slane %v366, %v1669
      %v1671 = vmul.f32 %v1664, %v1670
      %v1672 = vmul.f32 %v1665, %v1670
      %v1673 = vmul.f32 %v1666, %v1670
      %v1674 = vlaneseq
      %v1675 = vshrl.u32 %v1674, 7
      %v1676 = vsub.s32 3, %v1675
      %v1677 = vrot.slane %v366, %v1676
      %v1678 = vadd.f32 %v1671, %v1677
      %v1679 = vadd.f32 %v1672, %v1677
      %v1680 = vadd.f32 %v1673, %v1677
      %v1681 = vlaneseq
      %v1682 = vshrl.u32 %v1681, 7
      %v1683 = vsub.s32 6, %v1682
      %v1684 = vrot.slane %v366, %v1683
      %v1686 = vsel %vm367, %v1678, 0
      %v1689 = vsel %vm367, %v1679, 0
      %v1692 = vsel %vm367, %v1680, 0
      %1694 = vmatprep.subr.mxu0 0.0
      %1695 = vmatpush1.msra.mxu0 %v359
      %1696 = vmatprep.subr.mxu0 0.0
      %1697 = vmatpush1.msra.mxu0 %v361
      %1698 = vmatprep.subr.mxu0 0.0
      %1699 = vmatpush1.msra.mxu0 %v363
      %1700 = vmatprep.subr.mxu0 0.0
      %1701 = vmatpush1.msra.mxu0 %v365
      %1702 = vmatprep.subr.mxu0 0.0
      %1703 = vmatpush1.msra.mxu0 0.0
      %1704 = vmatprep.subr.mxu0 0.0
      %1705 = vmatpush1.msra.mxu0 0.0
      %1706 = vmatprep.subr.mxu0 0.0
      %1707 = vmatpush1.msra.mxu0 0.0
      %1708 = vmatprep.subr.mxu0 0.0
      %1709 = vmatpush1.msra.mxu0 0.0
      %1710 = vmatprep.subr.mxu0 0.0
      %1711 = vmatpush1.msra.mxu0 0.0
      %1712 = vmatprep.subr.mxu0 0.0
      %1713 = vmatpush1.msra.mxu0 0.0
      %1714 = vmatprep.subr.mxu0 0.0
      %1715 = vmatpush1.msra.mxu0 0.0
      %1716 = vmatprep.subr.mxu0 0.0
      %1717 = vmatpush1.msra.mxu0 0.0
      %1718 = vmatprep.subr.mxu0 0.0
      %1719 = vmatpush1.msra.mxu0 0.0
      %1720 = vmatprep.subr.mxu0 0.0
      %1721 = vmatpush1.msra.mxu0 0.0
      %1722 = vmatprep.subr.mxu0 0.0
      %1723 = vmatpush1.msra.mxu0 0.0
      %1724 = vmatprep.subr.mxu0 0.0
      %1725 = vmatpush1.msra.mxu0 0.0
      %1726 = vmatprep.subr.mxu0 0.0
      %1727 = vmatpush1.msra.mxu0 0.0
      %1728 = vmatprep.subr.mxu0 0.0
      %1729 = vmatpush1.msra.mxu0 0.0
      %1730 = vmatprep.subr.mxu0 0.0
      %1731 = vmatpush1.msra.mxu0 0.0
      %1732 = vmatprep.subr.mxu0 0.0
      %1733 = vmatpush1.msra.mxu0 0.0
      %1734 = vmatprep.subr.mxu0 0.0
      %1735 = vmatpush1.msra.mxu0 0.0
      %1736 = vmatprep.subr.mxu0 0.0
      %1737 = vmatpush1.msra.mxu0 0.0
      %1738 = vmatprep.subr.mxu0 0.0
      %1739 = vmatpush1.msra.mxu0 0.0
      %1740 = vmatprep.subr.mxu0 0.0
      %1741 = vmatpush1.msra.mxu0 0.0
      %1742 = vmatprep.subr.mxu0 0.0
      %1743 = vmatpush1.msra.mxu0 0.0
      %1744 = vmatprep.subr.mxu0 0.0
      %1745 = vmatpush1.msra.mxu0 0.0
      %1746 = vmatprep.subr.mxu0 0.0
      %1747 = vmatpush1.msra.mxu0 0.0
      %1748 = vmatprep.subr.mxu0 0.0
      %1749 = vmatpush1.msra.mxu0 0.0
      %1750 = vmatprep.subr.mxu0 0.0
      %1751 = vmatpush1.msra.mxu0 0.0
      %1752 = vmatprep.subr.mxu0 0.0
      %1753 = vmatpush1.msra.mxu0 0.0
      %1754 = vmatprep.subr.mxu0 0.0
      %1755 = vmatpush1.msra.mxu0 0.0
      %1756 = vmatprep.subr.mxu0 0.0
      %1757 = vmatpush1.msra.mxu0 0.0
      %1758 = vmatprep.mubr.f32.mxu0 0.0
      %1759 = vmatmul.mubr.f32.gmra.mrb[0].mxu0 %v1686
      %v1760 = vpop.f32.mrb[0].mxu0
      %v1761 = vadd.f32 %v1684, %v1760
      %v1762 = vpop.f32.mrb[0].mxu0
      %1763 = vmatprep.mubr.f32.mxu0 0.0
      %1764 = vmatmul.mubr.f32.gmra.mrb[0].mxu0 %v1689
      %v1765 = vpop.f32.mrb[0].mxu0
      %v1766 = vadd.f32 %v1684, %v1765
      %v1767 = vpop.f32.mrb[0].mxu0
      %1768 = vmatprep.mubr.f32.mxu0 0.0
      %1769 = vmatmul.mubr.f32.gmra.mrb[0].mxu0 %v1692
      %v1770 = vpop.f32.mrb[0].mxu0
      %v1771 = vadd.f32 %v1684, %v1770
      %v1772 = vpop.f32.mrb[0].mxu0
      %1773 = vdwg.mxu0
      %v1774 = vmul.f32 %v1761, 0.5
      %v1775 = vmul.f32 %v1766, 0.5
      %v1776 = vmul.f32 %v1771, 0.5
      %v1777 = vmul.f32 %v1761, 0.70710677
      %v1778 = vmul.f32 %v1766, 0.70710677
      %v1779 = vmul.f32 %v1771, 0.70710677
      %v1780 = verf.f32.pop %v1777
      %v1781 = verf.f32.pop %v1778
      %v1782 = verf.f32.pop %v1779
      %v1783 = vadd.f32 %v1780, 1.0
      %v1784 = vadd.f32 %v1781, 1.0
      %v1785 = vadd.f32 %v1782, 1.0
      %v1786 = vmul.f32 %v1774, %v1783
      %v1787 = vmul.f32 %v1775, %v1784
      %v1788 = vmul.f32 %v1776, %v1785
      %v1789 = vld [vmem:[%s3] sm:$0xff]
      %v1790 = vld [vmem:[%s3 + $0x8] sm:$0xff]
      %v1791 = vld [vmem:[%s3 + $0x10] sm:$0xff]
      %v1792 = vld [vmem:[%s3 + $0x18] sm:$0xff]
      %v1793 = vld [vmem:[%s3 + $0x20] sm:$0xff]
      %v1794 = vld [vmem:[%s3 + $0x28] sm:$0xff]
      %v1795 = vld [vmem:[%s3 + $0x30] sm:$0xff]
      %v1796 = vld [vmem:[%s3 + $0x38] sm:$0xff]
      %vm1797 = vcmask 523264
      %v1799 = vsel %vm1797, %v1786, 0
      %v1802 = vsel %vm1797, %v1787, 0
      %v1805 = vsel %vm1797, %v1788, 0
      %1807 = vmatprep.subr.mxu0 0.0
      %1808 = vmatpush1.msra.mxu0 %v1789
      %1809 = vmatprep.subr.mxu0 0.0
      %1810 = vmatpush1.msra.mxu0 %v1790
      %1811 = vmatprep.subr.mxu0 0.0
      %1812 = vmatpush1.msra.mxu0 %v1791
      %1813 = vmatprep.subr.mxu0 0.0
      %1814 = vmatpush1.msra.mxu0 %v1792
      %1815 = vmatprep.subr.mxu0 0.0
      %1816 = vmatpush1.msra.mxu0 %v1793
      %1817 = vmatprep.subr.mxu0 0.0
      %1818 = vmatpush1.msra.mxu0 %v1794
      %1819 = vmatprep.subr.mxu0 0.0
      %1820 = vmatpush1.msra.mxu0 %v1795
      %1821 = vmatprep.subr.mxu0 0.0
      %1822 = vmatpush1.msra.mxu0 %v1796
      %1823 = vmatprep.subr.mxu0 0.0
      %1824 = vmatpush1.msra.mxu0 0.0
      %1825 = vmatprep.subr.mxu0 0.0
      %1826 = vmatpush1.msra.mxu0 0.0
      %1827 = vmatprep.subr.mxu0 0.0
      %1828 = vmatpush1.msra.mxu0 0.0
      %1829 = vmatprep.subr.mxu0 0.0
      %1830 = vmatpush1.msra.mxu0 0.0
      %1831 = vmatprep.subr.mxu0 0.0
      %1832 = vmatpush1.msra.mxu0 0.0
      %1833 = vmatprep.subr.mxu0 0.0
      %1834 = vmatpush1.msra.mxu0 0.0
      %1835 = vmatprep.subr.mxu0 0.0
      %1836 = vmatpush1.msra.mxu0 0.0
      %1837 = vmatprep.subr.mxu0 0.0
      %1838 = vmatpush1.msra.mxu0 0.0
      %1839 = vmatprep.subr.mxu0 0.0
      %1840 = vmatpush1.msra.mxu0 0.0
      %1841 = vmatprep.subr.mxu0 0.0
      %1842 = vmatpush1.msra.mxu0 0.0
      %1843 = vmatprep.subr.mxu0 0.0
      %1844 = vmatpush1.msra.mxu0 0.0
      %1845 = vmatprep.subr.mxu0 0.0
      %1846 = vmatpush1.msra.mxu0 0.0
      %1847 = vmatprep.subr.mxu0 0.0
      %1848 = vmatpush1.msra.mxu0 0.0
      %1849 = vmatprep.subr.mxu0 0.0
      %1850 = vmatpush1.msra.mxu0 0.0
      %1851 = vmatprep.subr.mxu0 0.0
      %1852 = vmatpush1.msra.mxu0 0.0
      %1853 = vmatprep.subr.mxu0 0.0
      %1854 = vmatpush1.msra.mxu0 0.0
      %1855 = vmatprep.subr.mxu0 0.0
      %1856 = vmatpush1.msra.mxu0 0.0
      %1857 = vmatprep.subr.mxu0 0.0
      %1858 = vmatpush1.msra.mxu0 0.0
      %1859 = vmatprep.subr.mxu0 0.0
      %1860 = vmatpush1.msra.mxu0 0.0
      %1861 = vmatprep.subr.mxu0 0.0
      %1862 = vmatpush1.msra.mxu0 0.0
      %1863 = vmatprep.subr.mxu0 0.0
      %1864 = vmatpush1.msra.mxu0 0.0
      %1865 = vmatprep.subr.mxu0 0.0
      %1866 = vmatpush1.msra.mxu0 0.0
      %1867 = vmatprep.subr.mxu0 0.0
      %1868 = vmatpush1.msra.mxu0 0.0
      %1869 = vmatprep.subr.mxu0 0.0
      %1870 = vmatpush1.msra.mxu0 0.0
      %1871 = vmatprep.mubr.f32.mxu0 0.0
      %1872 = vmatmul.mubr.f32.gmra.mrb[0].mxu0 %v1799
      %v1873 = vpop.f32.mrb[0].mxu0
      %v1874 = vadd.f32 0.0, %v1873
      %v1875 = vpop.f32.mrb[0].mxu0
      %1876 = vmatprep.mubr.f32.mxu0 0.0
      %1877 = vmatmul.mubr.f32.gmra.mrb[0].mxu0 %v1802
      %v1878 = vpop.f32.mrb[0].mxu0
      %v1879 = vadd.f32 0.0, %v1878
      %v1880 = vpop.f32.mrb[0].mxu0
      %1881 = vmatprep.mubr.f32.mxu0 0.0
      %1882 = vmatmul.mubr.f32.gmra.mrb[0].mxu0 %v1805
      %v1883 = vpop.f32.mrb[0].mxu0
      %v1884 = vadd.f32 0.0, %v1883
      %v1885 = vpop.f32.mrb[0].mxu0
      %1886 = vdwg.mxu0
      %v1887 = vadd.f32 %v1625, %v1874
      %v1888 = vadd.f32 %v1626, %v1879
      %v1889 = vadd.f32 %v1627, %v1884
      %v1890 = vlaneseq
      %v1891 = vshrl.u32 %v1890, 7
      %v1892 = vsub.s32 5, %v1891
      %v1893 = vrot.slane %v366, %v1892
      %v1894 = vadd.f32 %v1887, %v1893
      %v1895 = vadd.f32 %v1888, %v1893
      %v1896 = vadd.f32 %v1889, %v1893
      %s1897 = scalar_lea.vmem %s2, 64
      %v1898 = vld [vmem:[%s1897] sm:$0xff]
      %v1899 = vld [vmem:[%s1897 + $0x8] sm:$0xff]
      %v1900 = vld [vmem:[%s1897 + $0x10] sm:$0xff]
      %v1901 = vld [vmem:[%s1897 + $0x18] sm:$0xff]
      %v1902 = vld [vmem:[%s1897 + $0x20] sm:$0xff]
      %v1903 = vld [vmem:[%s1897 + $0x28] sm:$0xff]
      %v1904 = vld [vmem:[%s1897 + $0x30] sm:$0xff]
      %v1905 = vld [vmem:[%s1897 + $0x38] sm:$0xff]
      %s1906 = scalar_lea.vmem %s4, 8
      %v1907 = vld [vmem:[%s1906] sm:$0xff]
      %v1908 = vsel %vm367, %v1894, 0.0
      %1909 = vadd.xlane.f32.xlu0 %v1908
      %v1910 = vpop.xlane.xlu0 %1909
      %v1911 = vsel %vm367, %v1895, 0.0
      %1912 = vadd.xlane.f32.xlu0 %v1911
      %v1913 = vpop.xlane.xlu0 %1912
      %v1914 = vsel %vm367, %v1896, 0.0
      %1915 = vadd.xlane.f32.xlu0 %v1914
      %v1916 = vpop.xlane.xlu0 %1915
      %v1917 = vmul.f32 %v1910, %v377
      %v1918 = vmul.f32 %v1913, %v377
      %v1919 = vmul.f32 %v1916, %v377
      %v1920 = vsub.f32 %v1894, %v1917
      %v1921 = vsub.f32 %v1895, %v1918
      %v1922 = vsub.f32 %v1896, %v1919
      %v1923 = vmul.f32 %v1920, %v1920
      %v1924 = vmul.f32 %v1921, %v1921
      %v1925 = vmul.f32 %v1922, %v1922
      %v1926 = vsel %vm367, %v1923, 0.0
      %1927 = vadd.xlane.f32.xlu0 %v1926
      %v1928 = vpop.xlane.xlu0 %1927
      %v1929 = vsel %vm367, %v1924, 0.0
      %1930 = vadd.xlane.f32.xlu0 %v1929
      %v1931 = vpop.xlane.xlu0 %1930
      %v1932 = vsel %vm367, %v1925, 0.0
      %1933 = vadd.xlane.f32.xlu0 %v1932
      %v1934 = vpop.xlane.xlu0 %1933
      %v1935 = vmul.f32 %v1928, %v377
      %v1936 = vmul.f32 %v1931, %v377
      %v1937 = vmul.f32 %v1934, %v377
      %v1938 = vadd.f32 %v1935, 1e-05
      %v1939 = vadd.f32 %v1936, 1e-05
      %v1940 = vadd.f32 %v1937, 1e-05
      %v1941 = vrsqrt.pop %v1938
      %v1942 = vrsqrt.pop %v1939
      %v1943 = vrsqrt.pop %v1940
      %v1944 = vmul.f32 %v1920, %v1941
      %v1945 = vmul.f32 %v1921, %v1942
      %v1946 = vmul.f32 %v1922, %v1943
      %v1947 = vlaneseq
      %v1948 = vshrl.u32 %v1947, 7
      %v1949 = vsub.s32 0, %v1948
      %v1950 = vrot.slane %v1907, %v1949
      %v1951 = vmul.f32 %v1944, %v1950
      %v1952 = vmul.f32 %v1945, %v1950
      %v1953 = vmul.f32 %v1946, %v1950
      %v1954 = vlaneseq
      %v1955 = vshrl.u32 %v1954, 7
      %v1956 = vsub.s32 1, %v1955
      %v1957 = vrot.slane %v1907, %v1956
      %v1958 = vadd.f32 %v1951, %v1957
      %v1959 = vadd.f32 %v1952, %v1957
      %v1960 = vadd.f32 %v1953, %v1957
      %v1962 = vsel %vm367, %v1958, 0
      %v1965 = vsel %vm367, %v1959, 0
      %v1968 = vsel %vm367, %v1960, 0
      %1970 = vmatprep.subr.mxu0 0.0
      %1971 = vmatpush1.msra.mxu0 %v1898
      %1972 = vmatprep.subr.mxu0 0.0
      %1973 = vmatpush1.msra.mxu0 %v1900
      %1974 = vmatprep.subr.mxu0 0.0
      %1975 = vmatpush1.msra.mxu0 %v1902
      %1976 = vmatprep.subr.mxu0 0.0
      %1977 = vmatpush1.msra.mxu0 %v1904
      %1978 = vmatprep.subr.mxu0 0.0
      %1979 = vmatpush1.msra.mxu0 0.0
      %1980 = vmatprep.subr.mxu0 0.0
      %1981 = vmatpush1.msra.mxu0 0.0
      %1982 = vmatprep.subr.mxu0 0.0
      %1983 = vmatpush1.msra.mxu0 0.0
      %1984 = vmatprep.subr.mxu0 0.0
      %1985 = vmatpush1.msra.mxu0 0.0
      %1986 = vmatprep.subr.mxu0 0.0
      %1987 = vmatpush1.msra.mxu0 0.0
      %1988 = vmatprep.subr.mxu0 0.0
      %1989 = vmatpush1.msra.mxu0 0.0
      %1990 = vmatprep.subr.mxu0 0.0
      %1991 = vmatpush1.msra.mxu0 0.0
      %1992 = vmatprep.subr.mxu0 0.0
      %1993 = vmatpush1.msra.mxu0 0.0
      %1994 = vmatprep.subr.mxu0 0.0
      %1995 = vmatpush1.msra.mxu0 0.0
      %1996 = vmatprep.subr.mxu0 0.0
      %1997 = vmatpush1.msra.mxu0 0.0
      %1998 = vmatprep.subr.mxu0 0.0
      %1999 = vmatpush1.msra.mxu0 0.0
      %2000 = vmatprep.subr.mxu0 0.0
      %2001 = vmatpush1.msra.mxu0 0.0
      %2002 = vmatprep.subr.mxu0 0.0
      %2003 = vmatpush1.msra.mxu0 0.0
      %2004 = vmatprep.subr.mxu0 0.0
      %2005 = vmatpush1.msra.mxu0 0.0
      %2006 = vmatprep.subr.mxu0 0.0
      %2007 = vmatpush1.msra.mxu0 0.0
      %2008 = vmatprep.subr.mxu0 0.0
      %2009 = vmatpush1.msra.mxu0 0.0
      %2010 = vmatprep.subr.mxu0 0.0
      %2011 = vmatpush1.msra.mxu0 0.0
      %2012 = vmatprep.subr.mxu0 0.0
      %2013 = vmatpush1.msra.mxu0 0.0
      %2014 = vmatprep.subr.mxu0 0.0
      %2015 = vmatpush1.msra.mxu0 0.0
      %2016 = vmatprep.subr.mxu0 0.0
      %2017 = vmatpush1.msra.mxu0 0.0
      %2018 = vmatprep.subr.mxu0 0.0
      %2019 = vmatpush1.msra.mxu0 0.0
      %2020 = vmatprep.subr.mxu0 0.0
      %2021 = vmatpush1.msra.mxu0 0.0
      %2022 = vmatprep.subr.mxu0 0.0
      %2023 = vmatpush1.msra.mxu0 0.0
      %2024 = vmatprep.subr.mxu0 0.0
      %2025 = vmatpush1.msra.mxu0 0.0
      %2026 = vmatprep.subr.mxu0 0.0
      %2027 = vmatpush1.msra.mxu0 0.0
      %2028 = vmatprep.subr.mxu0 0.0
      %2029 = vmatpush1.msra.mxu0 0.0
      %2030 = vmatprep.subr.mxu0 0.0
      %2031 = vmatpush1.msra.mxu0 0.0
      %2032 = vmatprep.subr.mxu0 0.0
      %2033 = vmatpush1.msra.mxu0 0.0
      %2034 = vmatprep.mubr.f32.mxu0 0.0
      %2035 = vmatmul.mubr.f32.gmra.mrb[0].mxu0 %v1962
      %v2036 = vpop.f32.mrb[0].mxu0
      %v2037 = vadd.f32 0.0, %v2036
      %v2038 = vpop.f32.mrb[0].mxu0
      %2039 = vmatprep.mubr.f32.mxu0 0.0
      %2040 = vmatmul.mubr.f32.gmra.mrb[0].mxu0 %v1965
      %v2041 = vpop.f32.mrb[0].mxu0
      %v2042 = vadd.f32 0.0, %v2041
      %v2043 = vpop.f32.mrb[0].mxu0
      %2044 = vmatprep.mubr.f32.mxu0 0.0
      %2045 = vmatmul.mubr.f32.gmra.mrb[0].mxu0 %v1968
      %v2046 = vpop.f32.mrb[0].mxu0
      %v2047 = vadd.f32 0.0, %v2046
      %v2048 = vpop.f32.mrb[0].mxu0
      %2049 = vdwg.mxu0
      %2053 = vrot.lane.b32.xlu0 %v2037, 96
      %v2054 = vpop.permute.xlu0 %2053
      %2055 = vrot.lane.b32.xlu0 %v2042, 96
      %v2056 = vpop.permute.xlu0 %2055
      %2057 = vrot.lane.b32.xlu0 %v2047, 96
      %v2058 = vpop.permute.xlu0 %2057
      %v2059 = vsel %vm520, %v2037, 0
      %v2061 = vsel %vm520, %v2042, 0
      %v2063 = vsel %vm520, %v2047, 0
      %v2065 = vsel %vm520, %v2054, 0
      %v2067 = vsel %vm520, %v2056, 0
      %v2069 = vsel %vm520, %v2058, 0
      %2071 = vmatprep.subr.mxu0 0.0
      %2072 = vmatpush1.xpose.msra.mxu0 %v2065
      %2073 = vmatprep.subr.mxu0 0.0
      %2074 = vmatpush1.xpose.msra.mxu0 %v2067
      %2075 = vmatprep.subr.mxu0 0.0
      %2076 = vmatpush1.xpose.msra.mxu0 %v2069
      %2077 = vmatprep.subr.mxu0 0.0
      %2078 = vmatpush1.xpose.msra.mxu0 0.0
      %2079 = vmatprep.subr.mxu0 0.0
      %2080 = vmatpush1.xpose.msra.mxu0 0.0
      %2081 = vmatprep.subr.mxu0 0.0
      %2082 = vmatpush1.xpose.msra.mxu0 0.0
      %2083 = vmatprep.subr.mxu0 0.0
      %2084 = vmatpush1.xpose.msra.mxu0 0.0
      %2085 = vmatprep.subr.mxu0 0.0
      %2086 = vmatpush1.xpose.msra.mxu0 0.0
      %2087 = vmatprep.subr.mxu0 0.0
      %2088 = vmatpush1.xpose.msra.mxu0 0.0
      %2089 = vmatprep.subr.mxu0 0.0
      %2090 = vmatpush1.xpose.msra.mxu0 0.0
      %2091 = vmatprep.subr.mxu0 0.0
      %2092 = vmatpush1.xpose.msra.mxu0 0.0
      %2093 = vmatprep.subr.mxu0 0.0
      %2094 = vmatpush1.xpose.msra.mxu0 0.0
      %2095 = vmatprep.subr.mxu0 0.0
      %2096 = vmatpush1.xpose.msra.mxu0 0.0
      %2097 = vmatprep.subr.mxu0 0.0
      %2098 = vmatpush1.xpose.msra.mxu0 0.0
      %2099 = vmatprep.subr.mxu0 0.0
      %2100 = vmatpush1.xpose.msra.mxu0 0.0
      %2101 = vmatprep.subr.mxu0 0.0
      %2102 = vmatpush1.xpose.msra.mxu0 0.0
      %2103 = vmatprep.subr.mxu0 0.0
      %2104 = vmatpush1.xpose.msra.mxu0 0.0
      %2105 = vmatprep.subr.mxu0 0.0
      %2106 = vmatpush1.xpose.msra.mxu0 0.0
      %2107 = vmatprep.subr.mxu0 0.0
      %2108 = vmatpush1.xpose.msra.mxu0 0.0
      %2109 = vmatprep.subr.mxu0 0.0
      %2110 = vmatpush1.xpose.msra.mxu0 0.0
      %2111 = vmatprep.subr.mxu0 0.0
      %2112 = vmatpush1.xpose.msra.mxu0 0.0
      %2113 = vmatprep.subr.mxu0 0.0
      %2114 = vmatpush1.xpose.msra.mxu0 0.0
      %2115 = vmatprep.subr.mxu0 0.0
      %2116 = vmatpush1.xpose.msra.mxu0 0.0
      %2117 = vmatprep.subr.mxu0 0.0
      %2118 = vmatpush1.xpose.msra.mxu0 0.0
      %2119 = vmatprep.subr.mxu0 0.0
      %2120 = vmatpush1.xpose.msra.mxu0 0.0
      %2121 = vmatprep.subr.mxu0 0.0
      %2122 = vmatpush1.xpose.msra.mxu0 0.0
      %2123 = vmatprep.subr.mxu0 0.0
      %2124 = vmatpush1.xpose.msra.mxu0 0.0
      %2125 = vmatprep.subr.mxu0 0.0
      %2126 = vmatpush1.xpose.msra.mxu0 0.0
      %2127 = vmatprep.subr.mxu0 0.0
      %2128 = vmatpush1.xpose.msra.mxu0 0.0
      %2129 = vmatprep.subr.mxu0 0.0
      %2130 = vmatpush1.xpose.msra.mxu0 0.0
      %2131 = vmatprep.subr.mxu0 0.0
      %2132 = vmatpush1.xpose.msra.mxu0 0.0
      %2133 = vmatprep.subr.mxu0 0.0
      %2134 = vmatpush1.xpose.msra.mxu0 0.0
      %2135 = vmatprep.mubr.f32.mxu0 0.0
      %2136 = vmatmul.mubr.f32.gmra.mrb[0].mxu0 %v2059
      %v2137 = vpop.f32.mrb[0].mxu0
      %v2138 = vadd.f32 0.0, %v2137
      %v2139 = vpop.f32.mrb[0].mxu0
      %2140 = vmatprep.mubr.f32.mxu0 0.0
      %2141 = vmatmul.mubr.f32.gmra.mrb[0].mxu0 %v2061
      %v2142 = vpop.f32.mrb[0].mxu0
      %v2143 = vadd.f32 0.0, %v2142
      %v2144 = vpop.f32.mrb[0].mxu0
      %2145 = vmatprep.mubr.f32.mxu0 0.0
      %2146 = vmatmul.mubr.f32.gmra.mrb[0].mxu0 %v2063
      %v2147 = vpop.f32.mrb[0].mxu0
      %v2148 = vadd.f32 0.0, %v2147
      %v2149 = vpop.f32.mrb[0].mxu0
      %2150 = vdwg.mxu0
      %v2151 = vmul.f32 %v2138, 0.35355338
      %v2152 = vmul.f32 %v2143, 0.35355338
      %v2153 = vmul.f32 %v2148, 0.35355338
      %v2154 = vsel %vm616, %v2151, -inf
      %2155 = vmax.xlane.f32.xlu0 %v2154
      %v2156 = vpop.xlane.xlu0 %2155
      %v2157 = vsel %vm616, %v2152, -inf
      %2158 = vmax.xlane.f32.xlu0 %v2157
      %v2159 = vpop.xlane.xlu0 %2158
      %v2160 = vsel %vm616, %v2153, -inf
      %2161 = vmax.xlane.f32.xlu0 %v2160
      %v2162 = vpop.xlane.xlu0 %2161
      %v2163 = vsub.f32 %v2151, %v2156
      %v2164 = vsub.f32 %v2152, %v2159
      %v2165 = vsub.f32 %v2153, %v2162
      %v2166 = vmul.f32 %v2163, 1.442695
      %v2167 = vpow.pop %v2166
      %v2168 = vmul.f32 %v2164, 1.442695
      %v2169 = vpow.pop %v2168
      %v2170 = vmul.f32 %v2165, 1.442695
      %v2171 = vpow.pop %v2170
      %v2172 = vsel %vm616, %v2167, 0.0
      %2173 = vadd.xlane.f32.xlu0 %v2172
      %v2174 = vpop.xlane.xlu0 %2173
      %v2175 = vsel %vm616, %v2169, 0.0
      %2176 = vadd.xlane.f32.xlu0 %v2175
      %v2177 = vpop.xlane.xlu0 %2176
      %v2178 = vsel %vm616, %v2171, 0.0
      %2179 = vadd.xlane.f32.xlu0 %v2178
      %v2180 = vpop.xlane.xlu0 %2179
      %v2181 = vrcp.pop %v2174
      %v2182 = vmul.f32 %v2167, %v2181
      %v2183 = vrcp.pop %v2177
      %v2184 = vmul.f32 %v2169, %v2183
      %v2185 = vrcp.pop %v2180
      %v2186 = vmul.f32 %v2171, %v2185
      %2187 = vrot.lane.b32.xlu0 %v2037, 64
      %v2188 = vpop.permute.xlu0 %2187
      %2189 = vrot.lane.b32.xlu0 %v2042, 64
      %v2190 = vpop.permute.xlu0 %2189
      %2191 = vrot.lane.b32.xlu0 %v2047, 64
      %v2192 = vpop.permute.xlu0 %2191
      %v2196 = vsel %vm616, %v2182, 0
      %v2199 = vsel %vm616, %v2184, 0
      %v2202 = vsel %vm616, %v2186, 0
      %v2204 = vsel %vm274, %v2192, 0
      %2206 = vmatprep.subr.mxu0 0.0
      %2207 = vmatpush1.msra.mxu0 %v2188
      %2208 = vmatprep.subr.mxu0 0.0
      %2209 = vmatpush1.msra.mxu0 %v2190
      %2210 = vmatprep.subr.mxu0 0.0
      %2211 = vmatpush1.msra.mxu0 %v2204
      %2212 = vmatprep.subr.mxu0 0.0
      %2213 = vmatpush1.msra.mxu0 0.0
      %2214 = vmatprep.subr.mxu0 0.0
      %2215 = vmatpush1.msra.mxu0 0.0
      %2216 = vmatprep.subr.mxu0 0.0
      %2217 = vmatpush1.msra.mxu0 0.0
      %2218 = vmatprep.subr.mxu0 0.0
      %2219 = vmatpush1.msra.mxu0 0.0
      %2220 = vmatprep.subr.mxu0 0.0
      %2221 = vmatpush1.msra.mxu0 0.0
      %2222 = vmatprep.subr.mxu0 0.0
      %2223 = vmatpush1.msra.mxu0 0.0
      %2224 = vmatprep.subr.mxu0 0.0
      %2225 = vmatpush1.msra.mxu0 0.0
      %2226 = vmatprep.subr.mxu0 0.0
      %2227 = vmatpush1.msra.mxu0 0.0
      %2228 = vmatprep.subr.mxu0 0.0
      %2229 = vmatpush1.msra.mxu0 0.0
      %2230 = vmatprep.subr.mxu0 0.0
      %2231 = vmatpush1.msra.mxu0 0.0
      %2232 = vmatprep.subr.mxu0 0.0
      %2233 = vmatpush1.msra.mxu0 0.0
      %2234 = vmatprep.subr.mxu0 0.0
      %2235 = vmatpush1.msra.mxu0 0.0
      %2236 = vmatprep.subr.mxu0 0.0
      %2237 = vmatpush1.msra.mxu0 0.0
      %2238 = vmatprep.subr.mxu0 0.0
      %2239 = vmatpush1.msra.mxu0 0.0
      %2240 = vmatprep.subr.mxu0 0.0
      %2241 = vmatpush1.msra.mxu0 0.0
      %2242 = vmatprep.subr.mxu0 0.0
      %2243 = vmatpush1.msra.mxu0 0.0
      %2244 = vmatprep.subr.mxu0 0.0
      %2245 = vmatpush1.msra.mxu0 0.0
      %2246 = vmatprep.subr.mxu0 0.0
      %2247 = vmatpush1.msra.mxu0 0.0
      %2248 = vmatprep.subr.mxu0 0.0
      %2249 = vmatpush1.msra.mxu0 0.0
      %2250 = vmatprep.subr.mxu0 0.0
      %2251 = vmatpush1.msra.mxu0 0.0
      %2252 = vmatprep.subr.mxu0 0.0
      %2253 = vmatpush1.msra.mxu0 0.0
      %2254 = vmatprep.subr.mxu0 0.0
      %2255 = vmatpush1.msra.mxu0 0.0
      %2256 = vmatprep.subr.mxu0 0.0
      %2257 = vmatpush1.msra.mxu0 0.0
      %2258 = vmatprep.subr.mxu0 0.0
      %2259 = vmatpush1.msra.mxu0 0.0
      %2260 = vmatprep.subr.mxu0 0.0
      %2261 = vmatpush1.msra.mxu0 0.0
      %2262 = vmatprep.subr.mxu0 0.0
      %2263 = vmatpush1.msra.mxu0 0.0
      %2264 = vmatprep.subr.mxu0 0.0
      %2265 = vmatpush1.msra.mxu0 0.0
      %2266 = vmatprep.subr.mxu0 0.0
      %2267 = vmatpush1.msra.mxu0 0.0
      %2268 = vmatprep.subr.mxu0 0.0
      %2269 = vmatpush1.msra.mxu0 0.0
      %2270 = vmatprep.mubr.f32.mxu0 0.0
      %2271 = vmatmul.mubr.f32.gmra.mrb[0].mxu0 %v2196
      %v2272 = vpop.f32.mrb[0].mxu0
      %v2273 = vadd.f32 0.0, %v2272
      %v2274 = vpop.f32.mrb[0].mxu0
      %2275 = vmatprep.mubr.f32.mxu0 0.0
      %2276 = vmatmul.mubr.f32.gmra.mrb[0].mxu0 %v2199
      %v2277 = vpop.f32.mrb[0].mxu0
      %v2278 = vadd.f32 0.0, %v2277
      %v2279 = vpop.f32.mrb[0].mxu0
      %2280 = vmatprep.mubr.f32.mxu0 0.0
      %2281 = vmatmul.mubr.f32.gmra.mrb[0].mxu0 %v2202
      %v2282 = vpop.f32.mrb[0].mxu0
      %v2283 = vadd.f32 0.0, %v2282
      %v2284 = vpop.f32.mrb[0].mxu0
      %2285 = vdwg.mxu0
      %2286 = vrot.lane.b32.xlu0 %v2037, 120
      %v2287 = vpop.permute.xlu0 %2286
      %2288 = vrot.lane.b32.xlu0 %v2042, 120
      %v2289 = vpop.permute.xlu0 %2288
      %2290 = vrot.lane.b32.xlu0 %v2047, 120
      %v2291 = vpop.permute.xlu0 %2290
      %2292 = vrot.lane.b32.xlu0 %v2037, 88
      %v2293 = vpop.permute.xlu0 %2292
      %2294 = vrot.lane.b32.xlu0 %v2042, 88
      %v2295 = vpop.permute.xlu0 %2294
      %2296 = vrot.lane.b32.xlu0 %v2047, 88
      %v2297 = vpop.permute.xlu0 %2296
      %v2298 = vsel %vm520, %v2287, 0
      %v2300 = vsel %vm520, %v2289, 0
      %v2302 = vsel %vm520, %v2291, 0
      %v2304 = vsel %vm520, %v2293, 0
      %v2306 = vsel %vm520, %v2295, 0
      %v2308 = vsel %vm520, %v2297, 0
      %2310 = vmatprep.subr.mxu0 0.0
      %2311 = vmatpush1.xpose.msra.mxu0 %v2304
      %2312 = vmatprep.subr.mxu0 0.0
      %2313 = vmatpush1.xpose.msra.mxu0 %v2306
      %2314 = vmatprep.subr.mxu0 0.0
      %2315 = vmatpush1.xpose.msra.mxu0 %v2308
      %2316 = vmatprep.subr.mxu0 0.0
      %2317 = vmatpush1.xpose.msra.mxu0 0.0
      %2318 = vmatprep.subr.mxu0 0.0
      %2319 = vmatpush1.xpose.msra.mxu0 0.0
      %2320 = vmatprep.subr.mxu0 0.0
      %2321 = vmatpush1.xpose.msra.mxu0 0.0
      %2322 = vmatprep.subr.mxu0 0.0
      %2323 = vmatpush1.xpose.msra.mxu0 0.0
      %2324 = vmatprep.subr.mxu0 0.0
      %2325 = vmatpush1.xpose.msra.mxu0 0.0
      %2326 = vmatprep.subr.mxu0 0.0
      %2327 = vmatpush1.xpose.msra.mxu0 0.0
      %2328 = vmatprep.subr.mxu0 0.0
      %2329 = vmatpush1.xpose.msra.mxu0 0.0
      %2330 = vmatprep.subr.mxu0 0.0
      %2331 = vmatpush1.xpose.msra.mxu0 0.0
      %2332 = vmatprep.subr.mxu0 0.0
      %2333 = vmatpush1.xpose.msra.mxu0 0.0
      %2334 = vmatprep.subr.mxu0 0.0
      %2335 = vmatpush1.xpose.msra.mxu0 0.0
      %2336 = vmatprep.subr.mxu0 0.0
      %2337 = vmatpush1.xpose.msra.mxu0 0.0
      %2338 = vmatprep.subr.mxu0 0.0
      %2339 = vmatpush1.xpose.msra.mxu0 0.0
      %2340 = vmatprep.subr.mxu0 0.0
      %2341 = vmatpush1.xpose.msra.mxu0 0.0
      %2342 = vmatprep.subr.mxu0 0.0
      %2343 = vmatpush1.xpose.msra.mxu0 0.0
      %2344 = vmatprep.subr.mxu0 0.0
      %2345 = vmatpush1.xpose.msra.mxu0 0.0
      %2346 = vmatprep.subr.mxu0 0.0
      %2347 = vmatpush1.xpose.msra.mxu0 0.0
      %2348 = vmatprep.subr.mxu0 0.0
      %2349 = vmatpush1.xpose.msra.mxu0 0.0
      %2350 = vmatprep.subr.mxu0 0.0
      %2351 = vmatpush1.xpose.msra.mxu0 0.0
      %2352 = vmatprep.subr.mxu0 0.0
      %2353 = vmatpush1.xpose.msra.mxu0 0.0
      %2354 = vmatprep.subr.mxu0 0.0
      %2355 = vmatpush1.xpose.msra.mxu0 0.0
      %2356 = vmatprep.subr.mxu0 0.0
      %2357 = vmatpush1.xpose.msra.mxu0 0.0
      %2358 = vmatprep.subr.mxu0 0.0
      %2359 = vmatpush1.xpose.msra.mxu0 0.0
      %2360 = vmatprep.subr.mxu0 0.0
      %2361 = vmatpush1.xpose.msra.mxu0 0.0
      %2362 = vmatprep.subr.mxu0 0.0
      %2363 = vmatpush1.xpose.msra.mxu0 0.0
      %2364 = vmatprep.subr.mxu0 0.0
      %2365 = vmatpush1.xpose.msra.mxu0 0.0
      %2366 = vmatprep.subr.mxu0 0.0
      %2367 = vmatpush1.xpose.msra.mxu0 0.0
      %2368 = vmatprep.subr.mxu0 0.0
      %2369 = vmatpush1.xpose.msra.mxu0 0.0
      %2370 = vmatprep.subr.mxu0 0.0
      %2371 = vmatpush1.xpose.msra.mxu0 0.0
      %2372 = vmatprep.subr.mxu0 0.0
      %2373 = vmatpush1.xpose.msra.mxu0 0.0
      %2374 = vmatprep.mubr.f32.mxu0 0.0
      %2375 = vmatmul.mubr.f32.gmra.mrb[0].mxu0 %v2298
      %v2376 = vpop.f32.mrb[0].mxu0
      %v2377 = vadd.f32 0.0, %v2376
      %v2378 = vpop.f32.mrb[0].mxu0
      %2379 = vmatprep.mubr.f32.mxu0 0.0
      %2380 = vmatmul.mubr.f32.gmra.mrb[0].mxu0 %v2300
      %v2381 = vpop.f32.mrb[0].mxu0
      %v2382 = vadd.f32 0.0, %v2381
      %v2383 = vpop.f32.mrb[0].mxu0
      %2384 = vmatprep.mubr.f32.mxu0 0.0
      %2385 = vmatmul.mubr.f32.gmra.mrb[0].mxu0 %v2302
      %v2386 = vpop.f32.mrb[0].mxu0
      %v2387 = vadd.f32 0.0, %v2386
      %v2388 = vpop.f32.mrb[0].mxu0
      %2389 = vdwg.mxu0
      %v2390 = vmul.f32 %v2377, 0.35355338
      %v2391 = vmul.f32 %v2382, 0.35355338
      %v2392 = vmul.f32 %v2387, 0.35355338
      %v2393 = vsel %vm616, %v2390, -inf
      %2394 = vmax.xlane.f32.xlu0 %v2393
      %v2395 = vpop.xlane.xlu0 %2394
      %v2396 = vsel %vm616, %v2391, -inf
      %2397 = vmax.xlane.f32.xlu0 %v2396
      %v2398 = vpop.xlane.xlu0 %2397
      %v2399 = vsel %vm616, %v2392, -inf
      %2400 = vmax.xlane.f32.xlu0 %v2399
      %v2401 = vpop.xlane.xlu0 %2400
      %v2402 = vsub.f32 %v2390, %v2395
      %v2403 = vsub.f32 %v2391, %v2398
      %v2404 = vsub.f32 %v2392, %v2401
      %v2405 = vmul.f32 %v2402, 1.442695
      %v2406 = vpow.pop %v2405
      %v2407 = vmul.f32 %v2403, 1.442695
      %v2408 = vpow.pop %v2407
      %v2409 = vmul.f32 %v2404, 1.442695
      %v2410 = vpow.pop %v2409
      %v2411 = vsel %vm616, %v2406, 0.0
      %2412 = vadd.xlane.f32.xlu0 %v2411
      %v2413 = vpop.xlane.xlu0 %2412
      %v2414 = vsel %vm616, %v2408, 0.0
      %2415 = vadd.xlane.f32.xlu0 %v2414
      %v2416 = vpop.xlane.xlu0 %2415
      %v2417 = vsel %vm616, %v2410, 0.0
      %2418 = vadd.xlane.f32.xlu0 %v2417
      %v2419 = vpop.xlane.xlu0 %2418
      %v2420 = vrcp.pop %v2413
      %v2421 = vmul.f32 %v2406, %v2420
      %v2422 = vrcp.pop %v2416
      %v2423 = vmul.f32 %v2408, %v2422
      %v2424 = vrcp.pop %v2419
      %v2425 = vmul.f32 %v2410, %v2424
      %2426 = vrot.lane.b32.xlu0 %v2037, 56
      %v2427 = vpop.permute.xlu0 %2426
      %2428 = vrot.lane.b32.xlu0 %v2042, 56
      %v2429 = vpop.permute.xlu0 %2428
      %2430 = vrot.lane.b32.xlu0 %v2047, 56
      %v2431 = vpop.permute.xlu0 %2430
      %v2435 = vsel %vm616, %v2421, 0
      %v2438 = vsel %vm616, %v2423, 0
      %v2441 = vsel %vm616, %v2425, 0
      %v2443 = vsel %vm274, %v2431, 0
      %2445 = vmatprep.subr.mxu0 0.0
      %2446 = vmatpush1.msra.mxu0 %v2427
      %2447 = vmatprep.subr.mxu0 0.0
      %2448 = vmatpush1.msra.mxu0 %v2429
      %2449 = vmatprep.subr.mxu0 0.0
      %2450 = vmatpush1.msra.mxu0 %v2443
      %2451 = vmatprep.subr.mxu0 0.0
      %2452 = vmatpush1.msra.mxu0 0.0
      %2453 = vmatprep.subr.mxu0 0.0
      %2454 = vmatpush1.msra.mxu0 0.0
      %2455 = vmatprep.subr.mxu0 0.0
      %2456 = vmatpush1.msra.mxu0 0.0
      %2457 = vmatprep.subr.mxu0 0.0
      %2458 = vmatpush1.msra.mxu0 0.0
      %2459 = vmatprep.subr.mxu0 0.0
      %2460 = vmatpush1.msra.mxu0 0.0
      %2461 = vmatprep.subr.mxu0 0.0
      %2462 = vmatpush1.msra.mxu0 0.0
      %2463 = vmatprep.subr.mxu0 0.0
      %2464 = vmatpush1.msra.mxu0 0.0
      %2465 = vmatprep.subr.mxu0 0.0
      %2466 = vmatpush1.msra.mxu0 0.0
      %2467 = vmatprep.subr.mxu0 0.0
      %2468 = vmatpush1.msra.mxu0 0.0
      %2469 = vmatprep.subr.mxu0 0.0
      %2470 = vmatpush1.msra.mxu0 0.0
      %2471 = vmatprep.subr.mxu0 0.0
      %2472 = vmatpush1.msra.mxu0 0.0
      %2473 = vmatprep.subr.mxu0 0.0
      %2474 = vmatpush1.msra.mxu0 0.0
      %2475 = vmatprep.subr.mxu0 0.0
      %2476 = vmatpush1.msra.mxu0 0.0
      %2477 = vmatprep.subr.mxu0 0.0
      %2478 = vmatpush1.msra.mxu0 0.0
      %2479 = vmatprep.subr.mxu0 0.0
      %2480 = vmatpush1.msra.mxu0 0.0
      %2481 = vmatprep.subr.mxu0 0.0
      %2482 = vmatpush1.msra.mxu0 0.0
      %2483 = vmatprep.subr.mxu0 0.0
      %2484 = vmatpush1.msra.mxu0 0.0
      %2485 = vmatprep.subr.mxu0 0.0
      %2486 = vmatpush1.msra.mxu0 0.0
      %2487 = vmatprep.subr.mxu0 0.0
      %2488 = vmatpush1.msra.mxu0 0.0
      %2489 = vmatprep.subr.mxu0 0.0
      %2490 = vmatpush1.msra.mxu0 0.0
      %2491 = vmatprep.subr.mxu0 0.0
      %2492 = vmatpush1.msra.mxu0 0.0
      %2493 = vmatprep.subr.mxu0 0.0
      %2494 = vmatpush1.msra.mxu0 0.0
      %2495 = vmatprep.subr.mxu0 0.0
      %2496 = vmatpush1.msra.mxu0 0.0
      %2497 = vmatprep.subr.mxu0 0.0
      %2498 = vmatpush1.msra.mxu0 0.0
      %2499 = vmatprep.subr.mxu0 0.0
      %2500 = vmatpush1.msra.mxu0 0.0
      %2501 = vmatprep.subr.mxu0 0.0
      %2502 = vmatpush1.msra.mxu0 0.0
      %2503 = vmatprep.subr.mxu0 0.0
      %2504 = vmatpush1.msra.mxu0 0.0
      %2505 = vmatprep.subr.mxu0 0.0
      %2506 = vmatpush1.msra.mxu0 0.0
      %2507 = vmatprep.subr.mxu0 0.0
      %2508 = vmatpush1.msra.mxu0 0.0
      %2509 = vmatprep.mubr.f32.mxu0 0.0
      %2510 = vmatmul.mubr.f32.gmra.mrb[0].mxu0 %v2435
      %v2511 = vpop.f32.mrb[0].mxu0
      %v2512 = vadd.f32 0.0, %v2511
      %v2513 = vpop.f32.mrb[0].mxu0
      %2514 = vmatprep.mubr.f32.mxu0 0.0
      %2515 = vmatmul.mubr.f32.gmra.mrb[0].mxu0 %v2438
      %v2516 = vpop.f32.mrb[0].mxu0
      %v2517 = vadd.f32 0.0, %v2516
      %v2518 = vpop.f32.mrb[0].mxu0
      %2519 = vmatprep.mubr.f32.mxu0 0.0
      %2520 = vmatmul.mubr.f32.gmra.mrb[0].mxu0 %v2441
      %v2521 = vpop.f32.mrb[0].mxu0
      %v2522 = vadd.f32 0.0, %v2521
      %v2523 = vpop.f32.mrb[0].mxu0
      %2524 = vdwg.mxu0
      %2525 = vrot.lane.b32.xlu0 %v2037, 112
      %v2526 = vpop.permute.xlu0 %2525
      %2527 = vrot.lane.b32.xlu0 %v2042, 112
      %v2528 = vpop.permute.xlu0 %2527
      %2529 = vrot.lane.b32.xlu0 %v2047, 112
      %v2530 = vpop.permute.xlu0 %2529
      %2531 = vrot.lane.b32.xlu0 %v2037, 80
      %v2532 = vpop.permute.xlu0 %2531
      %2533 = vrot.lane.b32.xlu0 %v2042, 80
      %v2534 = vpop.permute.xlu0 %2533
      %2535 = vrot.lane.b32.xlu0 %v2047, 80
      %v2536 = vpop.permute.xlu0 %2535
      %v2537 = vsel %vm520, %v2526, 0
      %v2539 = vsel %vm520, %v2528, 0
      %v2541 = vsel %vm520, %v2530, 0
      %v2543 = vsel %vm520, %v2532, 0
      %v2545 = vsel %vm520, %v2534, 0
      %v2547 = vsel %vm520, %v2536, 0
      %2549 = vmatprep.subr.mxu0 0.0
      %2550 = vmatpush1.xpose.msra.mxu0 %v2543
      %2551 = vmatprep.subr.mxu0 0.0
      %2552 = vmatpush1.xpose.msra.mxu0 %v2545
      %2553 = vmatprep.subr.mxu0 0.0
      %2554 = vmatpush1.xpose.msra.mxu0 %v2547
      %2555 = vmatprep.subr.mxu0 0.0
      %2556 = vmatpush1.xpose.msra.mxu0 0.0
      %2557 = vmatprep.subr.mxu0 0.0
      %2558 = vmatpush1.xpose.msra.mxu0 0.0
      %2559 = vmatprep.subr.mxu0 0.0
      %2560 = vmatpush1.xpose.msra.mxu0 0.0
      %2561 = vmatprep.subr.mxu0 0.0
      %2562 = vmatpush1.xpose.msra.mxu0 0.0
      %2563 = vmatprep.subr.mxu0 0.0
      %2564 = vmatpush1.xpose.msra.mxu0 0.0
      %2565 = vmatprep.subr.mxu0 0.0
      %2566 = vmatpush1.xpose.msra.mxu0 0.0
      %2567 = vmatprep.subr.mxu0 0.0
      %2568 = vmatpush1.xpose.msra.mxu0 0.0
      %2569 = vmatprep.subr.mxu0 0.0
      %2570 = vmatpush1.xpose.msra.mxu0 0.0
      %2571 = vmatprep.subr.mxu0 0.0
      %2572 = vmatpush1.xpose.msra.mxu0 0.0
      %2573 = vmatprep.subr.mxu0 0.0
      %2574 = vmatpush1.xpose.msra.mxu0 0.0
      %2575 = vmatprep.subr.mxu0 0.0
      %2576 = vmatpush1.xpose.msra.mxu0 0.0
      %2577 = vmatprep.subr.mxu0 0.0
      %2578 = vmatpush1.xpose.msra.mxu0 0.0
      %2579 = vmatprep.subr.mxu0 0.0
      %2580 = vmatpush1.xpose.msra.mxu0 0.0
      %2581 = vmatprep.subr.mxu0 0.0
      %2582 = vmatpush1.xpose.msra.mxu0 0.0
      %2583 = vmatprep.subr.mxu0 0.0
      %2584 = vmatpush1.xpose.msra.mxu0 0.0
      %2585 = vmatprep.subr.mxu0 0.0
      %2586 = vmatpush1.xpose.msra.mxu0 0.0
      %2587 = vmatprep.subr.mxu0 0.0
      %2588 = vmatpush1.xpose.msra.mxu0 0.0
      %2589 = vmatprep.subr.mxu0 0.0
      %2590 = vmatpush1.xpose.msra.mxu0 0.0
      %2591 = vmatprep.subr.mxu0 0.0
      %2592 = vmatpush1.xpose.msra.mxu0 0.0
      %2593 = vmatprep.subr.mxu0 0.0
      %2594 = vmatpush1.xpose.msra.mxu0 0.0
      %2595 = vmatprep.subr.mxu0 0.0
      %2596 = vmatpush1.xpose.msra.mxu0 0.0
      %2597 = vmatprep.subr.mxu0 0.0
      %2598 = vmatpush1.xpose.msra.mxu0 0.0
      %2599 = vmatprep.subr.mxu0 0.0
      %2600 = vmatpush1.xpose.msra.mxu0 0.0
      %2601 = vmatprep.subr.mxu0 0.0
      %2602 = vmatpush1.xpose.msra.mxu0 0.0
      %2603 = vmatprep.subr.mxu0 0.0
      %2604 = vmatpush1.xpose.msra.mxu0 0.0
      %2605 = vmatprep.subr.mxu0 0.0
      %2606 = vmatpush1.xpose.msra.mxu0 0.0
      %2607 = vmatprep.subr.mxu0 0.0
      %2608 = vmatpush1.xpose.msra.mxu0 0.0
      %2609 = vmatprep.subr.mxu0 0.0
      %2610 = vmatpush1.xpose.msra.mxu0 0.0
      %2611 = vmatprep.subr.mxu0 0.0
      %2612 = vmatpush1.xpose.msra.mxu0 0.0
      %2613 = vmatprep.mubr.f32.mxu0 0.0
      %2614 = vmatmul.mubr.f32.gmra.mrb[0].mxu0 %v2537
      %v2615 = vpop.f32.mrb[0].mxu0
      %v2616 = vadd.f32 0.0, %v2615
      %v2617 = vpop.f32.mrb[0].mxu0
      %2618 = vmatprep.mubr.f32.mxu0 0.0
      %2619 = vmatmul.mubr.f32.gmra.mrb[0].mxu0 %v2539
      %v2620 = vpop.f32.mrb[0].mxu0
      %v2621 = vadd.f32 0.0, %v2620
      %v2622 = vpop.f32.mrb[0].mxu0
      %2623 = vmatprep.mubr.f32.mxu0 0.0
      %2624 = vmatmul.mubr.f32.gmra.mrb[0].mxu0 %v2541
      %v2625 = vpop.f32.mrb[0].mxu0
      %v2626 = vadd.f32 0.0, %v2625
      %v2627 = vpop.f32.mrb[0].mxu0
      %2628 = vdwg.mxu0
      %v2629 = vmul.f32 %v2616, 0.35355338
      %v2630 = vmul.f32 %v2621, 0.35355338
      %v2631 = vmul.f32 %v2626, 0.35355338
      %v2632 = vsel %vm616, %v2629, -inf
      %2633 = vmax.xlane.f32.xlu0 %v2632
      %v2634 = vpop.xlane.xlu0 %2633
      %v2635 = vsel %vm616, %v2630, -inf
      %2636 = vmax.xlane.f32.xlu0 %v2635
      %v2637 = vpop.xlane.xlu0 %2636
      %v2638 = vsel %vm616, %v2631, -inf
      %2639 = vmax.xlane.f32.xlu0 %v2638
      %v2640 = vpop.xlane.xlu0 %2639
      %v2641 = vsub.f32 %v2629, %v2634
      %v2642 = vsub.f32 %v2630, %v2637
      %v2643 = vsub.f32 %v2631, %v2640
      %v2644 = vmul.f32 %v2641, 1.442695
      %v2645 = vpow.pop %v2644
      %v2646 = vmul.f32 %v2642, 1.442695
      %v2647 = vpow.pop %v2646
      %v2648 = vmul.f32 %v2643, 1.442695
      %v2649 = vpow.pop %v2648
      %v2650 = vsel %vm616, %v2645, 0.0
      %2651 = vadd.xlane.f32.xlu0 %v2650
      %v2652 = vpop.xlane.xlu0 %2651
      %v2653 = vsel %vm616, %v2647, 0.0
      %2654 = vadd.xlane.f32.xlu0 %v2653
      %v2655 = vpop.xlane.xlu0 %2654
      %v2656 = vsel %vm616, %v2649, 0.0
      %2657 = vadd.xlane.f32.xlu0 %v2656
      %v2658 = vpop.xlane.xlu0 %2657
      %v2659 = vrcp.pop %v2652
      %v2660 = vmul.f32 %v2645, %v2659
      %v2661 = vrcp.pop %v2655
      %v2662 = vmul.f32 %v2647, %v2661
      %v2663 = vrcp.pop %v2658
      %v2664 = vmul.f32 %v2649, %v2663
      %2665 = vrot.lane.b32.xlu0 %v2037, 48
      %v2666 = vpop.permute.xlu0 %2665
      %2667 = vrot.lane.b32.xlu0 %v2042, 48
      %v2668 = vpop.permute.xlu0 %2667
      %2669 = vrot.lane.b32.xlu0 %v2047, 48
      %v2670 = vpop.permute.xlu0 %2669
      %v2674 = vsel %vm616, %v2660, 0
      %v2677 = vsel %vm616, %v2662, 0
      %v2680 = vsel %vm616, %v2664, 0
      %v2682 = vsel %vm274, %v2670, 0
      %2684 = vmatprep.subr.mxu0 0.0
      %2685 = vmatpush1.msra.mxu0 %v2666
      %2686 = vmatprep.subr.mxu0 0.0
      %2687 = vmatpush1.msra.mxu0 %v2668
      %2688 = vmatprep.subr.mxu0 0.0
      %2689 = vmatpush1.msra.mxu0 %v2682
      %2690 = vmatprep.subr.mxu0 0.0
      %2691 = vmatpush1.msra.mxu0 0.0
      %2692 = vmatprep.subr.mxu0 0.0
      %2693 = vmatpush1.msra.mxu0 0.0
      %2694 = vmatprep.subr.mxu0 0.0
      %2695 = vmatpush1.msra.mxu0 0.0
      %2696 = vmatprep.subr.mxu0 0.0
      %2697 = vmatpush1.msra.mxu0 0.0
      %2698 = vmatprep.subr.mxu0 0.0
      %2699 = vmatpush1.msra.mxu0 0.0
      %2700 = vmatprep.subr.mxu0 0.0
      %2701 = vmatpush1.msra.mxu0 0.0
      %2702 = vmatprep.subr.mxu0 0.0
      %2703 = vmatpush1.msra.mxu0 0.0
      %2704 = vmatprep.subr.mxu0 0.0
      %2705 = vmatpush1.msra.mxu0 0.0
      %2706 = vmatprep.subr.mxu0 0.0
      %2707 = vmatpush1.msra.mxu0 0.0
      %2708 = vmatprep.subr.mxu0 0.0
      %2709 = vmatpush1.msra.mxu0 0.0
      %2710 = vmatprep.subr.mxu0 0.0
      %2711 = vmatpush1.msra.mxu0 0.0
      %2712 = vmatprep.subr.mxu0 0.0
      %2713 = vmatpush1.msra.mxu0 0.0
      %2714 = vmatprep.subr.mxu0 0.0
      %2715 = vmatpush1.msra.mxu0 0.0
      %2716 = vmatprep.subr.mxu0 0.0
      %2717 = vmatpush1.msra.mxu0 0.0
      %2718 = vmatprep.subr.mxu0 0.0
      %2719 = vmatpush1.msra.mxu0 0.0
      %2720 = vmatprep.subr.mxu0 0.0
      %2721 = vmatpush1.msra.mxu0 0.0
      %2722 = vmatprep.subr.mxu0 0.0
      %2723 = vmatpush1.msra.mxu0 0.0
      %2724 = vmatprep.subr.mxu0 0.0
      %2725 = vmatpush1.msra.mxu0 0.0
      %2726 = vmatprep.subr.mxu0 0.0
      %2727 = vmatpush1.msra.mxu0 0.0
      %2728 = vmatprep.subr.mxu0 0.0
      %2729 = vmatpush1.msra.mxu0 0.0
      %2730 = vmatprep.subr.mxu0 0.0
      %2731 = vmatpush1.msra.mxu0 0.0
      %2732 = vmatprep.subr.mxu0 0.0
      %2733 = vmatpush1.msra.mxu0 0.0
      %2734 = vmatprep.subr.mxu0 0.0
      %2735 = vmatpush1.msra.mxu0 0.0
      %2736 = vmatprep.subr.mxu0 0.0
      %2737 = vmatpush1.msra.mxu0 0.0
      %2738 = vmatprep.subr.mxu0 0.0
      %2739 = vmatpush1.msra.mxu0 0.0
      %2740 = vmatprep.subr.mxu0 0.0
      %2741 = vmatpush1.msra.mxu0 0.0
      %2742 = vmatprep.subr.mxu0 0.0
      %2743 = vmatpush1.msra.mxu0 0.0
      %2744 = vmatprep.subr.mxu0 0.0
      %2745 = vmatpush1.msra.mxu0 0.0
      %2746 = vmatprep.subr.mxu0 0.0
      %2747 = vmatpush1.msra.mxu0 0.0
      %2748 = vmatprep.mubr.f32.mxu0 0.0
      %2749 = vmatmul.mubr.f32.gmra.mrb[0].mxu0 %v2674
      %v2750 = vpop.f32.mrb[0].mxu0
      %v2751 = vadd.f32 0.0, %v2750
      %v2752 = vpop.f32.mrb[0].mxu0
      %2753 = vmatprep.mubr.f32.mxu0 0.0
      %2754 = vmatmul.mubr.f32.gmra.mrb[0].mxu0 %v2677
      %v2755 = vpop.f32.mrb[0].mxu0
      %v2756 = vadd.f32 0.0, %v2755
      %v2757 = vpop.f32.mrb[0].mxu0
      %2758 = vmatprep.mubr.f32.mxu0 0.0
      %2759 = vmatmul.mubr.f32.gmra.mrb[0].mxu0 %v2680
      %v2760 = vpop.f32.mrb[0].mxu0
      %v2761 = vadd.f32 0.0, %v2760
      %v2762 = vpop.f32.mrb[0].mxu0
      %2763 = vdwg.mxu0
      %2764 = vrot.lane.b32.xlu0 %v2037, 104
      %v2765 = vpop.permute.xlu0 %2764
      %2766 = vrot.lane.b32.xlu0 %v2042, 104
      %v2767 = vpop.permute.xlu0 %2766
      %2768 = vrot.lane.b32.xlu0 %v2047, 104
      %v2769 = vpop.permute.xlu0 %2768
      %2770 = vrot.lane.b32.xlu0 %v2037, 72
      %v2771 = vpop.permute.xlu0 %2770
      %2772 = vrot.lane.b32.xlu0 %v2042, 72
      %v2773 = vpop.permute.xlu0 %2772
      %2774 = vrot.lane.b32.xlu0 %v2047, 72
      %v2775 = vpop.permute.xlu0 %2774
      %v2776 = vsel %vm520, %v2765, 0
      %v2778 = vsel %vm520, %v2767, 0
      %v2780 = vsel %vm520, %v2769, 0
      %v2782 = vsel %vm520, %v2771, 0
      %v2784 = vsel %vm520, %v2773, 0
      %v2786 = vsel %vm520, %v2775, 0
      %2788 = vmatprep.subr.mxu0 0.0
      %2789 = vmatpush1.xpose.msra.mxu0 %v2782
      %2790 = vmatprep.subr.mxu0 0.0
      %2791 = vmatpush1.xpose.msra.mxu0 %v2784
      %2792 = vmatprep.subr.mxu0 0.0
      %2793 = vmatpush1.xpose.msra.mxu0 %v2786
      %2794 = vmatprep.subr.mxu0 0.0
      %2795 = vmatpush1.xpose.msra.mxu0 0.0
      %2796 = vmatprep.subr.mxu0 0.0
      %2797 = vmatpush1.xpose.msra.mxu0 0.0
      %2798 = vmatprep.subr.mxu0 0.0
      %2799 = vmatpush1.xpose.msra.mxu0 0.0
      %2800 = vmatprep.subr.mxu0 0.0
      %2801 = vmatpush1.xpose.msra.mxu0 0.0
      %2802 = vmatprep.subr.mxu0 0.0
      %2803 = vmatpush1.xpose.msra.mxu0 0.0
      %2804 = vmatprep.subr.mxu0 0.0
      %2805 = vmatpush1.xpose.msra.mxu0 0.0
      %2806 = vmatprep.subr.mxu0 0.0
      %2807 = vmatpush1.xpose.msra.mxu0 0.0
      %2808 = vmatprep.subr.mxu0 0.0
      %2809 = vmatpush1.xpose.msra.mxu0 0.0
      %2810 = vmatprep.subr.mxu0 0.0
      %2811 = vmatpush1.xpose.msra.mxu0 0.0
      %2812 = vmatprep.subr.mxu0 0.0
      %2813 = vmatpush1.xpose.msra.mxu0 0.0
      %2814 = vmatprep.subr.mxu0 0.0
      %2815 = vmatpush1.xpose.msra.mxu0 0.0
      %2816 = vmatprep.subr.mxu0 0.0
      %2817 = vmatpush1.xpose.msra.mxu0 0.0
      %2818 = vmatprep.subr.mxu0 0.0
      %2819 = vmatpush1.xpose.msra.mxu0 0.0
      %2820 = vmatprep.subr.mxu0 0.0
      %2821 = vmatpush1.xpose.msra.mxu0 0.0
      %2822 = vmatprep.subr.mxu0 0.0
      %2823 = vmatpush1.xpose.msra.mxu0 0.0
      %2824 = vmatprep.subr.mxu0 0.0
      %2825 = vmatpush1.xpose.msra.mxu0 0.0
      %2826 = vmatprep.subr.mxu0 0.0
      %2827 = vmatpush1.xpose.msra.mxu0 0.0
      %2828 = vmatprep.subr.mxu0 0.0
      %2829 = vmatpush1.xpose.msra.mxu0 0.0
      %2830 = vmatprep.subr.mxu0 0.0
      %2831 = vmatpush1.xpose.msra.mxu0 0.0
      %2832 = vmatprep.subr.mxu0 0.0
      %2833 = vmatpush1.xpose.msra.mxu0 0.0
      %2834 = vmatprep.subr.mxu0 0.0
      %2835 = vmatpush1.xpose.msra.mxu0 0.0
      %2836 = vmatprep.subr.mxu0 0.0
      %2837 = vmatpush1.xpose.msra.mxu0 0.0
      %2838 = vmatprep.subr.mxu0 0.0
      %2839 = vmatpush1.xpose.msra.mxu0 0.0
      %2840 = vmatprep.subr.mxu0 0.0
      %2841 = vmatpush1.xpose.msra.mxu0 0.0
      %2842 = vmatprep.subr.mxu0 0.0
      %2843 = vmatpush1.xpose.msra.mxu0 0.0
      %2844 = vmatprep.subr.mxu0 0.0
      %2845 = vmatpush1.xpose.msra.mxu0 0.0
      %2846 = vmatprep.subr.mxu0 0.0
      %2847 = vmatpush1.xpose.msra.mxu0 0.0
      %2848 = vmatprep.subr.mxu0 0.0
      %2849 = vmatpush1.xpose.msra.mxu0 0.0
      %2850 = vmatprep.subr.mxu0 0.0
      %2851 = vmatpush1.xpose.msra.mxu0 0.0
      %2852 = vmatprep.mubr.f32.mxu0 0.0
      %2853 = vmatmul.mubr.f32.gmra.mrb[0].mxu0 %v2776
      %v2854 = vpop.f32.mrb[0].mxu0
      %v2855 = vadd.f32 0.0, %v2854
      %v2856 = vpop.f32.mrb[0].mxu0
      %2857 = vmatprep.mubr.f32.mxu0 0.0
      %2858 = vmatmul.mubr.f32.gmra.mrb[0].mxu0 %v2778
      %v2859 = vpop.f32.mrb[0].mxu0
      %v2860 = vadd.f32 0.0, %v2859
      %v2861 = vpop.f32.mrb[0].mxu0
      %2862 = vmatprep.mubr.f32.mxu0 0.0
      %2863 = vmatmul.mubr.f32.gmra.mrb[0].mxu0 %v2780
      %v2864 = vpop.f32.mrb[0].mxu0
      %v2865 = vadd.f32 0.0, %v2864
      %v2866 = vpop.f32.mrb[0].mxu0
      %2867 = vdwg.mxu0
      %v2868 = vmul.f32 %v2855, 0.35355338
      %v2869 = vmul.f32 %v2860, 0.35355338
      %v2870 = vmul.f32 %v2865, 0.35355338
      %v2871 = vsel %vm616, %v2868, -inf
      %2872 = vmax.xlane.f32.xlu0 %v2871
      %v2873 = vpop.xlane.xlu0 %2872
      %v2874 = vsel %vm616, %v2869, -inf
      %2875 = vmax.xlane.f32.xlu0 %v2874
      %v2876 = vpop.xlane.xlu0 %2875
      %v2877 = vsel %vm616, %v2870, -inf
      %2878 = vmax.xlane.f32.xlu0 %v2877
      %v2879 = vpop.xlane.xlu0 %2878
      %v2880 = vsub.f32 %v2868, %v2873
      %v2881 = vsub.f32 %v2869, %v2876
      %v2882 = vsub.f32 %v2870, %v2879
      %v2883 = vmul.f32 %v2880, 1.442695
      %v2884 = vpow.pop %v2883
      %v2885 = vmul.f32 %v2881, 1.442695
      %v2886 = vpow.pop %v2885
      %v2887 = vmul.f32 %v2882, 1.442695
      %v2888 = vpow.pop %v2887
      %v2889 = vsel %vm616, %v2884, 0.0
      %2890 = vadd.xlane.f32.xlu0 %v2889
      %v2891 = vpop.xlane.xlu0 %2890
      %v2892 = vsel %vm616, %v2886, 0.0
      %2893 = vadd.xlane.f32.xlu0 %v2892
      %v2894 = vpop.xlane.xlu0 %2893
      %v2895 = vsel %vm616, %v2888, 0.0
      %2896 = vadd.xlane.f32.xlu0 %v2895
      %v2897 = vpop.xlane.xlu0 %2896
      %v2898 = vrcp.pop %v2891
      %v2899 = vmul.f32 %v2884, %v2898
      %v2900 = vrcp.pop %v2894
      %v2901 = vmul.f32 %v2886, %v2900
      %v2902 = vrcp.pop %v2897
      %v2903 = vmul.f32 %v2888, %v2902
      %2904 = vrot.lane.b32.xlu0 %v2037, 40
      %v2905 = vpop.permute.xlu0 %2904
      %2906 = vrot.lane.b32.xlu0 %v2042, 40
      %v2907 = vpop.permute.xlu0 %2906
      %2908 = vrot.lane.b32.xlu0 %v2047, 40
      %v2909 = vpop.permute.xlu0 %2908
      %v2913 = vsel %vm616, %v2899, 0
      %v2916 = vsel %vm616, %v2901, 0
      %v2919 = vsel %vm616, %v2903, 0
      %v2921 = vsel %vm274, %v2909, 0
      %2923 = vmatprep.subr.mxu0 0.0
      %2924 = vmatpush1.msra.mxu0 %v2905
      %2925 = vmatprep.subr.mxu0 0.0
      %2926 = vmatpush1.msra.mxu0 %v2907
      %2927 = vmatprep.subr.mxu0 0.0
      %2928 = vmatpush1.msra.mxu0 %v2921
      %2929 = vmatprep.subr.mxu0 0.0
      %2930 = vmatpush1.msra.mxu0 0.0
      %2931 = vmatprep.subr.mxu0 0.0
      %2932 = vmatpush1.msra.mxu0 0.0
      %2933 = vmatprep.subr.mxu0 0.0
      %2934 = vmatpush1.msra.mxu0 0.0
      %2935 = vmatprep.subr.mxu0 0.0
      %2936 = vmatpush1.msra.mxu0 0.0
      %2937 = vmatprep.subr.mxu0 0.0
      %2938 = vmatpush1.msra.mxu0 0.0
      %2939 = vmatprep.subr.mxu0 0.0
      %2940 = vmatpush1.msra.mxu0 0.0
      %2941 = vmatprep.subr.mxu0 0.0
      %2942 = vmatpush1.msra.mxu0 0.0
      %2943 = vmatprep.subr.mxu0 0.0
      %2944 = vmatpush1.msra.mxu0 0.0
      %2945 = vmatprep.subr.mxu0 0.0
      %2946 = vmatpush1.msra.mxu0 0.0
      %2947 = vmatprep.subr.mxu0 0.0
      %2948 = vmatpush1.msra.mxu0 0.0
      %2949 = vmatprep.subr.mxu0 0.0
      %2950 = vmatpush1.msra.mxu0 0.0
      %2951 = vmatprep.subr.mxu0 0.0
      %2952 = vmatpush1.msra.mxu0 0.0
      %2953 = vmatprep.subr.mxu0 0.0
      %2954 = vmatpush1.msra.mxu0 0.0
      %2955 = vmatprep.subr.mxu0 0.0
      %2956 = vmatpush1.msra.mxu0 0.0
      %2957 = vmatprep.subr.mxu0 0.0
      %2958 = vmatpush1.msra.mxu0 0.0
      %2959 = vmatprep.subr.mxu0 0.0
      %2960 = vmatpush1.msra.mxu0 0.0
      %2961 = vmatprep.subr.mxu0 0.0
      %2962 = vmatpush1.msra.mxu0 0.0
      %2963 = vmatprep.subr.mxu0 0.0
      %2964 = vmatpush1.msra.mxu0 0.0
      %2965 = vmatprep.subr.mxu0 0.0
      %2966 = vmatpush1.msra.mxu0 0.0
      %2967 = vmatprep.subr.mxu0 0.0
      %2968 = vmatpush1.msra.mxu0 0.0
      %2969 = vmatprep.subr.mxu0 0.0
      %2970 = vmatpush1.msra.mxu0 0.0
      %2971 = vmatprep.subr.mxu0 0.0
      %2972 = vmatpush1.msra.mxu0 0.0
      %2973 = vmatprep.subr.mxu0 0.0
      %2974 = vmatpush1.msra.mxu0 0.0
      %2975 = vmatprep.subr.mxu0 0.0
      %2976 = vmatpush1.msra.mxu0 0.0
      %2977 = vmatprep.subr.mxu0 0.0
      %2978 = vmatpush1.msra.mxu0 0.0
      %2979 = vmatprep.subr.mxu0 0.0
      %2980 = vmatpush1.msra.mxu0 0.0
      %2981 = vmatprep.subr.mxu0 0.0
      %2982 = vmatpush1.msra.mxu0 0.0
      %2983 = vmatprep.subr.mxu0 0.0
      %2984 = vmatpush1.msra.mxu0 0.0
      %2985 = vmatprep.subr.mxu0 0.0
      %2986 = vmatpush1.msra.mxu0 0.0
      %2987 = vmatprep.mubr.f32.mxu0 0.0
      %2988 = vmatmul.mubr.f32.gmra.mrb[0].mxu0 %v2913
      %v2989 = vpop.f32.mrb[0].mxu0
      %v2990 = vadd.f32 0.0, %v2989
      %v2991 = vpop.f32.mrb[0].mxu0
      %2992 = vmatprep.mubr.f32.mxu0 0.0
      %2993 = vmatmul.mubr.f32.gmra.mrb[0].mxu0 %v2916
      %v2994 = vpop.f32.mrb[0].mxu0
      %v2995 = vadd.f32 0.0, %v2994
      %v2996 = vpop.f32.mrb[0].mxu0
      %2997 = vmatprep.mubr.f32.mxu0 0.0
      %2998 = vmatmul.mubr.f32.gmra.mrb[0].mxu0 %v2919
      %v2999 = vpop.f32.mrb[0].mxu0
      %v3000 = vadd.f32 0.0, %v2999
      %v3001 = vpop.f32.mrb[0].mxu0
      %3002 = vdwg.mxu0
      %3006 = vrot.lane.b32.xlu0 %v2512, 8
      %v3007 = vpop.permute.xlu0 %3006
      %3008 = vrot.lane.b32.xlu0 %v2517, 8
      %v3009 = vpop.permute.xlu0 %3008
      %3010 = vrot.lane.b32.xlu0 %v2522, 8
      %v3011 = vpop.permute.xlu0 %3010
      %3018 = vrot.lane.b32.xlu0 %v2751, 16
      %v3019 = vpop.permute.xlu0 %3018
      %3020 = vrot.lane.b32.xlu0 %v2756, 16
      %v3021 = vpop.permute.xlu0 %3020
      %3022 = vrot.lane.b32.xlu0 %v2761, 16
      %v3023 = vpop.permute.xlu0 %3022
      %3030 = vrot.lane.b32.xlu0 %v2990, 24
      %v3031 = vpop.permute.xlu0 %3030
      %3032 = vrot.lane.b32.xlu0 %v2995, 24
      %v3033 = vpop.permute.xlu0 %3032
      %3034 = vrot.lane.b32.xlu0 %v3000, 24
      %v3035 = vpop.permute.xlu0 %3034
      %v3039 = vsel %vm520, %v2273, %v3007
      %v3040 = vsel %vm520, %v2278, %v3009
      %v3041 = vsel %vm520, %v2283, %v3011
      %v3042 = vsel %vm1505, %v3039, %v3019
      %v3043 = vsel %vm1505, %v3040, %v3021
      %v3044 = vsel %vm1505, %v3041, %v3023
      %v3045 = vsel %vm1509, %v3042, %v3031
      %v3046 = vsel %vm1509, %v3043, %v3033
      %v3047 = vsel %vm1509, %v3044, %v3035
      %3052 = vrot.lane.b32.xlu0 %v1898, 32
      %v3053 = vpop.permute.xlu0 %3052
      %3054 = vrot.lane.b32.xlu0 %v1900, 32
      %v3055 = vpop.permute.xlu0 %3054
      %3056 = vrot.lane.b32.xlu0 %v1902, 32
      %v3057 = vpop.permute.xlu0 %3056
      %3058 = vrot.lane.b32.xlu0 %v1904, 32
      %v3059 = vpop.permute.xlu0 %3058
      %v3065 = vsel %vm367, %v3045, 0
      %v3068 = vsel %vm367, %v3046, 0
      %v3071 = vsel %vm367, %v3047, 0
      %3073 = vmatprep.subr.mxu0 0.0
      %3074 = vmatpush1.msra.mxu0 %v3053
      %3075 = vmatprep.subr.mxu0 0.0
      %3076 = vmatpush1.msra.mxu0 %v3055
      %3077 = vmatprep.subr.mxu0 0.0
      %3078 = vmatpush1.msra.mxu0 %v3057
      %3079 = vmatprep.subr.mxu0 0.0
      %3080 = vmatpush1.msra.mxu0 %v3059
      %3081 = vmatprep.subr.mxu0 0.0
      %3082 = vmatpush1.msra.mxu0 0.0
      %3083 = vmatprep.subr.mxu0 0.0
      %3084 = vmatpush1.msra.mxu0 0.0
      %3085 = vmatprep.subr.mxu0 0.0
      %3086 = vmatpush1.msra.mxu0 0.0
      %3087 = vmatprep.subr.mxu0 0.0
      %3088 = vmatpush1.msra.mxu0 0.0
      %3089 = vmatprep.subr.mxu0 0.0
      %3090 = vmatpush1.msra.mxu0 0.0
      %3091 = vmatprep.subr.mxu0 0.0
      %3092 = vmatpush1.msra.mxu0 0.0
      %3093 = vmatprep.subr.mxu0 0.0
      %3094 = vmatpush1.msra.mxu0 0.0
      %3095 = vmatprep.subr.mxu0 0.0
      %3096 = vmatpush1.msra.mxu0 0.0
      %3097 = vmatprep.subr.mxu0 0.0
      %3098 = vmatpush1.msra.mxu0 0.0
      %3099 = vmatprep.subr.mxu0 0.0
      %3100 = vmatpush1.msra.mxu0 0.0
      %3101 = vmatprep.subr.mxu0 0.0
      %3102 = vmatpush1.msra.mxu0 0.0
      %3103 = vmatprep.subr.mxu0 0.0
      %3104 = vmatpush1.msra.mxu0 0.0
      %3105 = vmatprep.subr.mxu0 0.0
      %3106 = vmatpush1.msra.mxu0 0.0
      %3107 = vmatprep.subr.mxu0 0.0
      %3108 = vmatpush1.msra.mxu0 0.0
      %3109 = vmatprep.subr.mxu0 0.0
      %3110 = vmatpush1.msra.mxu0 0.0
      %3111 = vmatprep.subr.mxu0 0.0
      %3112 = vmatpush1.msra.mxu0 0.0
      %3113 = vmatprep.subr.mxu0 0.0
      %3114 = vmatpush1.msra.mxu0 0.0
      %3115 = vmatprep.subr.mxu0 0.0
      %3116 = vmatpush1.msra.mxu0 0.0
      %3117 = vmatprep.subr.mxu0 0.0
      %3118 = vmatpush1.msra.mxu0 0.0
      %3119 = vmatprep.subr.mxu0 0.0
      %3120 = vmatpush1.msra.mxu0 0.0
      %3121 = vmatprep.subr.mxu0 0.0
      %3122 = vmatpush1.msra.mxu0 0.0
      %3123 = vmatprep.subr.mxu0 0.0
      %3124 = vmatpush1.msra.mxu0 0.0
      %3125 = vmatprep.subr.mxu0 0.0
      %3126 = vmatpush1.msra.mxu0 0.0
      %3127 = vmatprep.subr.mxu0 0.0
      %3128 = vmatpush1.msra.mxu0 0.0
      %3129 = vmatprep.subr.mxu0 0.0
      %3130 = vmatpush1.msra.mxu0 0.0
      %3131 = vmatprep.subr.mxu0 0.0
      %3132 = vmatpush1.msra.mxu0 0.0
      %3133 = vmatprep.subr.mxu0 0.0
      %3134 = vmatpush1.msra.mxu0 0.0
      %3135 = vmatprep.subr.mxu0 0.0
      %3136 = vmatpush1.msra.mxu0 0.0
      %3137 = vmatprep.mubr.f32.mxu0 0.0
      %3138 = vmatmul.mubr.f32.gmra.mrb[0].mxu0 %v3065
      %v3139 = vpop.f32.mrb[0].mxu0
      %v3140 = vadd.f32 0.0, %v3139
      %v3141 = vpop.f32.mrb[0].mxu0
      %3142 = vmatprep.mubr.f32.mxu0 0.0
      %3143 = vmatmul.mubr.f32.gmra.mrb[0].mxu0 %v3068
      %v3144 = vpop.f32.mrb[0].mxu0
      %v3145 = vadd.f32 0.0, %v3144
      %v3146 = vpop.f32.mrb[0].mxu0
      %3147 = vmatprep.mubr.f32.mxu0 0.0
      %3148 = vmatmul.mubr.f32.gmra.mrb[0].mxu0 %v3071
      %v3149 = vpop.f32.mrb[0].mxu0
      %v3150 = vadd.f32 0.0, %v3149
      %v3151 = vpop.f32.mrb[0].mxu0
      %3152 = vdwg.mxu0
      %v3153 = vadd.f32 %v1894, %v3140
      %v3154 = vadd.f32 %v1895, %v3145
      %v3155 = vadd.f32 %v1896, %v3150
      %v3156 = vlaneseq
      %v3157 = vshrl.u32 %v3156, 7
      %v3158 = vsub.s32 4, %v3157
      %v3159 = vrot.slane %v1907, %v3158
      %v3160 = vadd.f32 %v3153, %v3159
      %v3161 = vadd.f32 %v3154, %v3159
      %v3162 = vadd.f32 %v3155, %v3159
      %v3163 = vsel %vm367, %v3160, 0.0
      %3164 = vadd.xlane.f32.xlu0 %v3163
      %v3165 = vpop.xlane.xlu0 %3164
      %v3166 = vsel %vm367, %v3161, 0.0
      %3167 = vadd.xlane.f32.xlu0 %v3166
      %v3168 = vpop.xlane.xlu0 %3167
      %v3169 = vsel %vm367, %v3162, 0.0
      %3170 = vadd.xlane.f32.xlu0 %v3169
      %v3171 = vpop.xlane.xlu0 %3170
      %v3172 = vmul.f32 %v3165, %v377
      %v3173 = vmul.f32 %v3168, %v377
      %v3174 = vmul.f32 %v3171, %v377
      %v3175 = vsub.f32 %v3160, %v3172
      %v3176 = vsub.f32 %v3161, %v3173
      %v3177 = vsub.f32 %v3162, %v3174
      %v3178 = vmul.f32 %v3175, %v3175
      %v3179 = vmul.f32 %v3176, %v3176
      %v3180 = vmul.f32 %v3177, %v3177
      %v3181 = vsel %vm367, %v3178, 0.0
      %3182 = vadd.xlane.f32.xlu0 %v3181
      %v3183 = vpop.xlane.xlu0 %3182
      %v3184 = vsel %vm367, %v3179, 0.0
      %3185 = vadd.xlane.f32.xlu0 %v3184
      %v3186 = vpop.xlane.xlu0 %3185
      %v3187 = vsel %vm367, %v3180, 0.0
      %3188 = vadd.xlane.f32.xlu0 %v3187
      %v3189 = vpop.xlane.xlu0 %3188
      %v3190 = vmul.f32 %v3183, %v377
      %v3191 = vmul.f32 %v3186, %v377
      %v3192 = vmul.f32 %v3189, %v377
      %v3193 = vadd.f32 %v3190, 1e-05
      %v3194 = vadd.f32 %v3191, 1e-05
      %v3195 = vadd.f32 %v3192, 1e-05
      %v3196 = vrsqrt.pop %v3193
      %v3197 = vrsqrt.pop %v3194
      %v3198 = vrsqrt.pop %v3195
      %v3199 = vmul.f32 %v3175, %v3196
      %v3200 = vmul.f32 %v3176, %v3197
      %v3201 = vmul.f32 %v3177, %v3198
      %v3202 = vlaneseq
      %v3203 = vshrl.u32 %v3202, 7
      %v3204 = vsub.s32 2, %v3203
      %v3205 = vrot.slane %v1907, %v3204
      %v3206 = vmul.f32 %v3199, %v3205
      %v3207 = vmul.f32 %v3200, %v3205
      %v3208 = vmul.f32 %v3201, %v3205
      %v3209 = vlaneseq
      %v3210 = vshrl.u32 %v3209, 7
      %v3211 = vsub.s32 3, %v3210
      %v3212 = vrot.slane %v1907, %v3211
      %v3213 = vadd.f32 %v3206, %v3212
      %v3214 = vadd.f32 %v3207, %v3212
      %v3215 = vadd.f32 %v3208, %v3212
      %v3216 = vlaneseq
      %v3217 = vshrl.u32 %v3216, 7
      %v3218 = vsub.s32 6, %v3217
      %v3219 = vrot.slane %v1907, %v3218
      %v3221 = vsel %vm367, %v3213, 0
      %v3224 = vsel %vm367, %v3214, 0
      %v3227 = vsel %vm367, %v3215, 0
      %3229 = vmatprep.subr.mxu0 0.0
      %3230 = vmatpush1.msra.mxu0 %v1899
      %3231 = vmatprep.subr.mxu0 0.0
      %3232 = vmatpush1.msra.mxu0 %v1901
      %3233 = vmatprep.subr.mxu0 0.0
      %3234 = vmatpush1.msra.mxu0 %v1903
      %3235 = vmatprep.subr.mxu0 0.0
      %3236 = vmatpush1.msra.mxu0 %v1905
      %3237 = vmatprep.subr.mxu0 0.0
      %3238 = vmatpush1.msra.mxu0 0.0
      %3239 = vmatprep.subr.mxu0 0.0
      %3240 = vmatpush1.msra.mxu0 0.0
      %3241 = vmatprep.subr.mxu0 0.0
      %3242 = vmatpush1.msra.mxu0 0.0
      %3243 = vmatprep.subr.mxu0 0.0
      %3244 = vmatpush1.msra.mxu0 0.0
      %3245 = vmatprep.subr.mxu0 0.0
      %3246 = vmatpush1.msra.mxu0 0.0
      %3247 = vmatprep.subr.mxu0 0.0
      %3248 = vmatpush1.msra.mxu0 0.0
      %3249 = vmatprep.subr.mxu0 0.0
      %3250 = vmatpush1.msra.mxu0 0.0
      %3251 = vmatprep.subr.mxu0 0.0
      %3252 = vmatpush1.msra.mxu0 0.0
      %3253 = vmatprep.subr.mxu0 0.0
      %3254 = vmatpush1.msra.mxu0 0.0
      %3255 = vmatprep.subr.mxu0 0.0
      %3256 = vmatpush1.msra.mxu0 0.0
      %3257 = vmatprep.subr.mxu0 0.0
      %3258 = vmatpush1.msra.mxu0 0.0
      %3259 = vmatprep.subr.mxu0 0.0
      %3260 = vmatpush1.msra.mxu0 0.0
      %3261 = vmatprep.subr.mxu0 0.0
      %3262 = vmatpush1.msra.mxu0 0.0
      %3263 = vmatprep.subr.mxu0 0.0
      %3264 = vmatpush1.msra.mxu0 0.0
      %3265 = vmatprep.subr.mxu0 0.0
      %3266 = vmatpush1.msra.mxu0 0.0
      %3267 = vmatprep.subr.mxu0 0.0
      %3268 = vmatpush1.msra.mxu0 0.0
      %3269 = vmatprep.subr.mxu0 0.0
      %3270 = vmatpush1.msra.mxu0 0.0
      %3271 = vmatprep.subr.mxu0 0.0
      %3272 = vmatpush1.msra.mxu0 0.0
      %3273 = vmatprep.subr.mxu0 0.0
      %3274 = vmatpush1.msra.mxu0 0.0
      %3275 = vmatprep.subr.mxu0 0.0
      %3276 = vmatpush1.msra.mxu0 0.0
      %3277 = vmatprep.subr.mxu0 0.0
      %3278 = vmatpush1.msra.mxu0 0.0
      %3279 = vmatprep.subr.mxu0 0.0
      %3280 = vmatpush1.msra.mxu0 0.0
      %3281 = vmatprep.subr.mxu0 0.0
      %3282 = vmatpush1.msra.mxu0 0.0
      %3283 = vmatprep.subr.mxu0 0.0
      %3284 = vmatpush1.msra.mxu0 0.0
      %3285 = vmatprep.subr.mxu0 0.0
      %3286 = vmatpush1.msra.mxu0 0.0
      %3287 = vmatprep.subr.mxu0 0.0
      %3288 = vmatpush1.msra.mxu0 0.0
      %3289 = vmatprep.subr.mxu0 0.0
      %3290 = vmatpush1.msra.mxu0 0.0
      %3291 = vmatprep.subr.mxu0 0.0
      %3292 = vmatpush1.msra.mxu0 0.0
      %3293 = vmatprep.mubr.f32.mxu0 0.0
      %3294 = vmatmul.mubr.f32.gmra.mrb[0].mxu0 %v3221
      %v3295 = vpop.f32.mrb[0].mxu0
      %v3296 = vadd.f32 %v3219, %v3295
      %v3297 = vpop.f32.mrb[0].mxu0
      %3298 = vmatprep.mubr.f32.mxu0 0.0
      %3299 = vmatmul.mubr.f32.gmra.mrb[0].mxu0 %v3224
      %v3300 = vpop.f32.mrb[0].mxu0
      %v3301 = vadd.f32 %v3219, %v3300
      %v3302 = vpop.f32.mrb[0].mxu0
      %3303 = vmatprep.mubr.f32.mxu0 0.0
      %3304 = vmatmul.mubr.f32.gmra.mrb[0].mxu0 %v3227
      %v3305 = vpop.f32.mrb[0].mxu0
      %v3306 = vadd.f32 %v3219, %v3305
      %v3307 = vpop.f32.mrb[0].mxu0
      %3308 = vdwg.mxu0
      %v3309 = vmul.f32 %v3296, 0.5
      %v3310 = vmul.f32 %v3301, 0.5
      %v3311 = vmul.f32 %v3306, 0.5
      %v3312 = vmul.f32 %v3296, 0.70710677
      %v3313 = vmul.f32 %v3301, 0.70710677
      %v3314 = vmul.f32 %v3306, 0.70710677
      %v3315 = verf.f32.pop %v3312
      %v3316 = verf.f32.pop %v3313
      %v3317 = verf.f32.pop %v3314
      %v3318 = vadd.f32 %v3315, 1.0
      %v3319 = vadd.f32 %v3316, 1.0
      %v3320 = vadd.f32 %v3317, 1.0
      %v3321 = vmul.f32 %v3309, %v3318
      %v3322 = vmul.f32 %v3310, %v3319
      %v3323 = vmul.f32 %v3311, %v3320
      %s3324 = scalar_lea.vmem %s3, 64
      %v3325 = vld [vmem:[%s3324] sm:$0xff]
      %v3326 = vld [vmem:[%s3324 + $0x8] sm:$0xff]
      %v3327 = vld [vmem:[%s3324 + $0x10] sm:$0xff]
      %v3328 = vld [vmem:[%s3324 + $0x18] sm:$0xff]
      %v3329 = vld [vmem:[%s3324 + $0x20] sm:$0xff]
      %v3330 = vld [vmem:[%s3324 + $0x28] sm:$0xff]
      %v3331 = vld [vmem:[%s3324 + $0x30] sm:$0xff]
      %v3332 = vld [vmem:[%s3324 + $0x38] sm:$0xff]
      %v3334 = vsel %vm1797, %v3321, 0
      %v3337 = vsel %vm1797, %v3322, 0
      %v3340 = vsel %vm1797, %v3323, 0
      %3342 = vmatprep.subr.mxu0 0.0
      %3343 = vmatpush1.msra.mxu0 %v3325
      %3344 = vmatprep.subr.mxu0 0.0
      %3345 = vmatpush1.msra.mxu0 %v3326
      %3346 = vmatprep.subr.mxu0 0.0
      %3347 = vmatpush1.msra.mxu0 %v3327
      %3348 = vmatprep.subr.mxu0 0.0
      %3349 = vmatpush1.msra.mxu0 %v3328
      %3350 = vmatprep.subr.mxu0 0.0
      %3351 = vmatpush1.msra.mxu0 %v3329
      %3352 = vmatprep.subr.mxu0 0.0
      %3353 = vmatpush1.msra.mxu0 %v3330
      %3354 = vmatprep.subr.mxu0 0.0
      %3355 = vmatpush1.msra.mxu0 %v3331
      %3356 = vmatprep.subr.mxu0 0.0
      %3357 = vmatpush1.msra.mxu0 %v3332
      %3358 = vmatprep.subr.mxu0 0.0
      %3359 = vmatpush1.msra.mxu0 0.0
      %3360 = vmatprep.subr.mxu0 0.0
      %3361 = vmatpush1.msra.mxu0 0.0
      %3362 = vmatprep.subr.mxu0 0.0
      %3363 = vmatpush1.msra.mxu0 0.0
      %3364 = vmatprep.subr.mxu0 0.0
      %3365 = vmatpush1.msra.mxu0 0.0
      %3366 = vmatprep.subr.mxu0 0.0
      %3367 = vmatpush1.msra.mxu0 0.0
      %3368 = vmatprep.subr.mxu0 0.0
      %3369 = vmatpush1.msra.mxu0 0.0
      %3370 = vmatprep.subr.mxu0 0.0
      %3371 = vmatpush1.msra.mxu0 0.0
      %3372 = vmatprep.subr.mxu0 0.0
      %3373 = vmatpush1.msra.mxu0 0.0
      %3374 = vmatprep.subr.mxu0 0.0
      %3375 = vmatpush1.msra.mxu0 0.0
      %3376 = vmatprep.subr.mxu0 0.0
      %3377 = vmatpush1.msra.mxu0 0.0
      %3378 = vmatprep.subr.mxu0 0.0
      %3379 = vmatpush1.msra.mxu0 0.0
      %3380 = vmatprep.subr.mxu0 0.0
      %3381 = vmatpush1.msra.mxu0 0.0
      %3382 = vmatprep.subr.mxu0 0.0
      %3383 = vmatpush1.msra.mxu0 0.0
      %3384 = vmatprep.subr.mxu0 0.0
      %3385 = vmatpush1.msra.mxu0 0.0
      %3386 = vmatprep.subr.mxu0 0.0
      %3387 = vmatpush1.msra.mxu0 0.0
      %3388 = vmatprep.subr.mxu0 0.0
      %3389 = vmatpush1.msra.mxu0 0.0
      %3390 = vmatprep.subr.mxu0 0.0
      %3391 = vmatpush1.msra.mxu0 0.0
      %3392 = vmatprep.subr.mxu0 0.0
      %3393 = vmatpush1.msra.mxu0 0.0
      %3394 = vmatprep.subr.mxu0 0.0
      %3395 = vmatpush1.msra.mxu0 0.0
      %3396 = vmatprep.subr.mxu0 0.0
      %3397 = vmatpush1.msra.mxu0 0.0
      %3398 = vmatprep.subr.mxu0 0.0
      %3399 = vmatpush1.msra.mxu0 0.0
      %3400 = vmatprep.subr.mxu0 0.0
      %3401 = vmatpush1.msra.mxu0 0.0
      %3402 = vmatprep.subr.mxu0 0.0
      %3403 = vmatpush1.msra.mxu0 0.0
      %3404 = vmatprep.subr.mxu0 0.0
      %3405 = vmatpush1.msra.mxu0 0.0
      %3406 = vmatprep.mubr.f32.mxu0 0.0
      %3407 = vmatmul.mubr.f32.gmra.mrb[0].mxu0 %v3334
      %v3408 = vpop.f32.mrb[0].mxu0
      %v3409 = vadd.f32 0.0, %v3408
      %v3410 = vpop.f32.mrb[0].mxu0
      %3411 = vmatprep.mubr.f32.mxu0 0.0
      %3412 = vmatmul.mubr.f32.gmra.mrb[0].mxu0 %v3337
      %v3413 = vpop.f32.mrb[0].mxu0
      %v3414 = vadd.f32 0.0, %v3413
      %v3415 = vpop.f32.mrb[0].mxu0
      %3416 = vmatprep.mubr.f32.mxu0 0.0
      %3417 = vmatmul.mubr.f32.gmra.mrb[0].mxu0 %v3340
      %v3418 = vpop.f32.mrb[0].mxu0
      %v3419 = vadd.f32 0.0, %v3418
      %v3420 = vpop.f32.mrb[0].mxu0
      %3421 = vdwg.mxu0
      %v3422 = vadd.f32 %v3160, %v3409
      %v3423 = vadd.f32 %v3161, %v3414
      %v3424 = vadd.f32 %v3162, %v3419
      %v3425 = vlaneseq
      %v3426 = vshrl.u32 %v3425, 7
      %v3427 = vsub.s32 5, %v3426
      %v3428 = vrot.slane %v1907, %v3427
      %v3429 = vadd.f32 %v3422, %v3428
      %v3430 = vadd.f32 %v3423, %v3428
      %v3431 = vadd.f32 %v3424, %v3428
      %s3432 = scalar_lea.vmem %s4, 16
      %v3433 = vld [vmem:[%s3432] sm:$0xff]
      %v3434 = vld [vmem:[%s5] sm:$0xff]
      %v3435 = vld [vmem:[%s5 + $0x8] sm:$0xff]
      %v3436 = vld [vmem:[%s5 + $0x10] sm:$0xff]
      %v3437 = vld [vmem:[%s5 + $0x18] sm:$0xff]
      %v3438 = vld [vmem:[%s5 + $0x20] sm:$0xff]
      %v3439 = vld [vmem:[%s5 + $0x28] sm:$0xff]
      %v3440 = vld [vmem:[%s5 + $0x30] sm:$0xff]
      %v3441 = vld [vmem:[%s5 + $0x38] sm:$0xff]
      %v3442 = vld [vmem:[%s5 + $0x40] sm:$0xff]
      %v3443 = vld [vmem:[%s5 + $0x48] sm:$0xff]
      %v3444 = vld [vmem:[%s5 + $0x50] sm:$0xff]
      %v3445 = vld [vmem:[%s5 + $0x58] sm:$0xff]
      %v3446 = vld [vmem:[%s5 + $0x60] sm:$0xf]
      %v3448 = vsel %vm1509, %v3434, 0
      %v3451 = vsel %vm1509, %v3435, 0
      %v3454 = vsel %vm1509, %v3436, 0
      %v3457 = vsel %vm1509, %v3437, 0
      %v3460 = vsel %vm1509, %v3438, 0
      %v3463 = vsel %vm1509, %v3439, 0
      %v3466 = vsel %vm1509, %v3440, 0
      %v3469 = vsel %vm1509, %v3441, 0
      %v3472 = vsel %vm1509, %v3442, 0
      %v3475 = vsel %vm1509, %v3443, 0
      %v3478 = vsel %vm1509, %v3444, 0
      %v3481 = vsel %vm1509, %v3445, 0
      %v3484 = vsel %vm1509, %v3446, 0
      %3486 = vmatprep.subr.mxu0 0.0
      %3487 = vmatpush1.msra.mxu0 %v3429
      %3488 = vmatprep.subr.mxu0 0.0
      %3489 = vmatpush1.msra.mxu0 %v3430
      %3490 = vmatprep.subr.mxu0 0.0
      %3491 = vmatpush1.msra.mxu0 %v3431
      %3492 = vmatprep.subr.mxu0 0.0
      %3493 = vmatpush1.msra.mxu0 0.0
      %3494 = vmatprep.subr.mxu0 0.0
      %3495 = vmatpush1.msra.mxu0 0.0
      %3496 = vmatprep.subr.mxu0 0.0
      %3497 = vmatpush1.msra.mxu0 0.0
      %3498 = vmatprep.subr.mxu0 0.0
      %3499 = vmatpush1.msra.mxu0 0.0
      %3500 = vmatprep.subr.mxu0 0.0
      %3501 = vmatpush1.msra.mxu0 0.0
      %3502 = vmatprep.subr.mxu0 0.0
      %3503 = vmatpush1.msra.mxu0 0.0
      %3504 = vmatprep.subr.mxu0 0.0
      %3505 = vmatpush1.msra.mxu0 0.0
      %3506 = vmatprep.subr.mxu0 0.0
      %3507 = vmatpush1.msra.mxu0 0.0
      %3508 = vmatprep.subr.mxu0 0.0
      %3509 = vmatpush1.msra.mxu0 0.0
      %3510 = vmatprep.subr.mxu0 0.0
      %3511 = vmatpush1.msra.mxu0 0.0
      %3512 = vmatprep.subr.mxu0 0.0
      %3513 = vmatpush1.msra.mxu0 0.0
      %3514 = vmatprep.subr.mxu0 0.0
      %3515 = vmatpush1.msra.mxu0 0.0
      %3516 = vmatprep.subr.mxu0 0.0
      %3517 = vmatpush1.msra.mxu0 0.0
      %3518 = vmatprep.subr.mxu0 0.0
      %3519 = vmatpush1.msra.mxu0 0.0
      %3520 = vmatprep.subr.mxu0 0.0
      %3521 = vmatpush1.msra.mxu0 0.0
      %3522 = vmatprep.subr.mxu0 0.0
      %3523 = vmatpush1.msra.mxu0 0.0
      %3524 = vmatprep.subr.mxu0 0.0
      %3525 = vmatpush1.msra.mxu0 0.0
      %3526 = vmatprep.subr.mxu0 0.0
      %3527 = vmatpush1.msra.mxu0 0.0
      %3528 = vmatprep.subr.mxu0 0.0
      %3529 = vmatpush1.msra.mxu0 0.0
      %3530 = vmatprep.subr.mxu0 0.0
      %3531 = vmatpush1.msra.mxu0 0.0
      %3532 = vmatprep.subr.mxu0 0.0
      %3533 = vmatpush1.msra.mxu0 0.0
      %3534 = vmatprep.subr.mxu0 0.0
      %3535 = vmatpush1.msra.mxu0 0.0
      %3536 = vmatprep.subr.mxu0 0.0
      %3537 = vmatpush1.msra.mxu0 0.0
      %3538 = vmatprep.subr.mxu0 0.0
      %3539 = vmatpush1.msra.mxu0 0.0
      %3540 = vmatprep.subr.mxu0 0.0
      %3541 = vmatpush1.msra.mxu0 0.0
      %3542 = vmatprep.subr.mxu0 0.0
      %3543 = vmatpush1.msra.mxu0 0.0
      %3544 = vmatprep.subr.mxu0 0.0
      %3545 = vmatpush1.msra.mxu0 0.0
      %3546 = vmatprep.subr.mxu0 0.0
      %3547 = vmatpush1.msra.mxu0 0.0
      %3548 = vmatprep.subr.mxu0 0.0
      %3549 = vmatpush1.msra.mxu0 0.0
      %3550 = vmatprep.mubr.f32.mxu0 0.0
      %3551 = vmatmul.mubr.f32.gmra.mrb[0].mxu0 %v3448
      %v3552 = vpop.f32.mrb[0].mxu0
      %v3553 = vadd.f32 0.0, %v3552
      %v3554 = vpop.f32.mrb[0].mxu0
      %3555 = vmatprep.mubr.f32.mxu0 0.0
      %3556 = vmatmul.mubr.f32.gmra.mrb[0].mxu0 %v3451
      %v3557 = vpop.f32.mrb[0].mxu0
      %v3558 = vadd.f32 0.0, %v3557
      %v3559 = vpop.f32.mrb[0].mxu0
      %3560 = vmatprep.mubr.f32.mxu0 0.0
      %3561 = vmatmul.mubr.f32.gmra.mrb[0].mxu0 %v3454
      %v3562 = vpop.f32.mrb[0].mxu0
      %v3563 = vadd.f32 0.0, %v3562
      %v3564 = vpop.f32.mrb[0].mxu0
      %3565 = vmatprep.mubr.f32.mxu0 0.0
      %3566 = vmatmul.mubr.f32.gmra.mrb[0].mxu0 %v3457
      %v3567 = vpop.f32.mrb[0].mxu0
      %v3568 = vadd.f32 0.0, %v3567
      %v3569 = vpop.f32.mrb[0].mxu0
      %3570 = vmatprep.mubr.f32.mxu0 0.0
      %3571 = vmatmul.mubr.f32.gmra.mrb[0].mxu0 %v3460
      %v3572 = vpop.f32.mrb[0].mxu0
      %v3573 = vadd.f32 0.0, %v3572
      %v3574 = vpop.f32.mrb[0].mxu0
      %3575 = vmatprep.mubr.f32.mxu0 0.0
      %3576 = vmatmul.mubr.f32.gmra.mrb[0].mxu0 %v3463
      %v3577 = vpop.f32.mrb[0].mxu0
      %v3578 = vadd.f32 0.0, %v3577
      %v3579 = vpop.f32.mrb[0].mxu0
      %3580 = vmatprep.mubr.f32.mxu0 0.0
      %3581 = vmatmul.mubr.f32.gmra.mrb[0].mxu0 %v3466
      %v3582 = vpop.f32.mrb[0].mxu0
      %v3583 = vadd.f32 0.0, %v3582
      %v3584 = vpop.f32.mrb[0].mxu0
      %3585 = vmatprep.mubr.f32.mxu0 0.0
      %3586 = vmatmul.mubr.f32.gmra.mrb[0].mxu0 %v3469
      %v3587 = vpop.f32.mrb[0].mxu0
      %v3588 = vadd.f32 0.0, %v3587
      %v3589 = vpop.f32.mrb[0].mxu0
      %3590 = vmatprep.mubr.f32.mxu0 0.0
      %3591 = vmatmul.mubr.f32.gmra.mrb[0].mxu0 %v3472
      %v3592 = vpop.f32.mrb[0].mxu0
      %v3593 = vadd.f32 0.0, %v3592
      %v3594 = vpop.f32.mrb[0].mxu0
      %3595 = vmatprep.mubr.f32.mxu0 0.0
      %3596 = vmatmul.mubr.f32.gmra.mrb[0].mxu0 %v3475
      %v3597 = vpop.f32.mrb[0].mxu0
      %v3598 = vadd.f32 0.0, %v3597
      %v3599 = vpop.f32.mrb[0].mxu0
      %3600 = vmatprep.mubr.f32.mxu0 0.0
      %3601 = vmatmul.mubr.f32.gmra.mrb[0].mxu0 %v3478
      %v3602 = vpop.f32.mrb[0].mxu0
      %v3603 = vadd.f32 0.0, %v3602
      %v3604 = vpop.f32.mrb[0].mxu0
      %3605 = vmatprep.mubr.f32.mxu0 0.0
      %3606 = vmatmul.mubr.f32.gmra.mrb[0].mxu0 %v3481
      %v3607 = vpop.f32.mrb[0].mxu0
      %v3608 = vadd.f32 0.0, %v3607
      %v3609 = vpop.f32.mrb[0].mxu0
      %3610 = vmatprep.mubr.f32.mxu0 0.0
      %3611 = vmatmul.mubr.f32.gmra.mrb[0].mxu0 %v3484
      %v3612 = vpop.f32.mrb[0].mxu0
      %v3613 = vadd.f32 0.0, %v3612
      %v3614 = vpop.f32.mrb[0].mxu0
      %3615 = vdwg.mxu0
      %v3616 = vsel %vm367, %v3553, 0.0
      %3617 = vadd.xlane.f32.xlu0 %v3616
      %v3618 = vpop.xlane.xlu0 %3617
      %v3619 = vsel %vm367, %v3558, 0.0
      %3620 = vadd.xlane.f32.xlu0 %v3619
      %v3621 = vpop.xlane.xlu0 %3620
      %v3622 = vsel %vm367, %v3563, 0.0
      %3623 = vadd.xlane.f32.xlu0 %v3622
      %v3624 = vpop.xlane.xlu0 %3623
      %v3625 = vsel %vm367, %v3568, 0.0
      %3626 = vadd.xlane.f32.xlu0 %v3625
      %v3627 = vpop.xlane.xlu0 %3626
      %v3628 = vsel %vm367, %v3573, 0.0
      %3629 = vadd.xlane.f32.xlu0 %v3628
      %v3630 = vpop.xlane.xlu0 %3629
      %v3631 = vsel %vm367, %v3578, 0.0
      %3632 = vadd.xlane.f32.xlu0 %v3631
      %v3633 = vpop.xlane.xlu0 %3632
      %v3634 = vsel %vm367, %v3583, 0.0
      %3635 = vadd.xlane.f32.xlu0 %v3634
      %v3636 = vpop.xlane.xlu0 %3635
      %v3637 = vsel %vm367, %v3588, 0.0
      %3638 = vadd.xlane.f32.xlu0 %v3637
      %v3639 = vpop.xlane.xlu0 %3638
      %v3640 = vsel %vm367, %v3593, 0.0
      %3641 = vadd.xlane.f32.xlu0 %v3640
      %v3642 = vpop.xlane.xlu0 %3641
      %v3643 = vsel %vm367, %v3598, 0.0
      %3644 = vadd.xlane.f32.xlu0 %v3643
      %v3645 = vpop.xlane.xlu0 %3644
      %v3646 = vsel %vm367, %v3603, 0.0
      %3647 = vadd.xlane.f32.xlu0 %v3646
      %v3648 = vpop.xlane.xlu0 %3647
      %v3649 = vsel %vm367, %v3608, 0.0
      %3650 = vadd.xlane.f32.xlu0 %v3649
      %v3651 = vpop.xlane.xlu0 %3650
      %vm3652 = vcmask 257024
      %v3653 = vsel %vm3652, %v3613, 0.0
      %3654 = vadd.xlane.f32.xlu0 %v3653
      %v3655 = vpop.xlane.xlu0 %3654
      %v3656 = vmul.f32 %v3618, %v377
      %v3657 = vmul.f32 %v3621, %v377
      %v3658 = vmul.f32 %v3624, %v377
      %v3659 = vmul.f32 %v3627, %v377
      %v3660 = vmul.f32 %v3630, %v377
      %v3661 = vmul.f32 %v3633, %v377
      %v3662 = vmul.f32 %v3636, %v377
      %v3663 = vmul.f32 %v3639, %v377
      %v3664 = vmul.f32 %v3642, %v377
      %v3665 = vmul.f32 %v3645, %v377
      %v3666 = vmul.f32 %v3648, %v377
      %v3667 = vmul.f32 %v3651, %v377
      %v3668 = vmul.f32 %v3655, %v377
      %v3669 = vsub.f32 %v3553, %v3656
      %v3670 = vsub.f32 %v3558, %v3657
      %v3671 = vsub.f32 %v3563, %v3658
      %v3672 = vsub.f32 %v3568, %v3659
      %v3673 = vsub.f32 %v3573, %v3660
      %v3674 = vsub.f32 %v3578, %v3661
      %v3675 = vsub.f32 %v3583, %v3662
      %v3676 = vsub.f32 %v3588, %v3663
      %v3677 = vsub.f32 %v3593, %v3664
      %v3678 = vsub.f32 %v3598, %v3665
      %v3679 = vsub.f32 %v3603, %v3666
      %v3680 = vsub.f32 %v3608, %v3667
      %v3681 = vsub.f32 %v3613, %v3668
      %v3682 = vmul.f32 %v3669, %v3669
      %v3683 = vmul.f32 %v3670, %v3670
      %v3684 = vmul.f32 %v3671, %v3671
      %v3685 = vmul.f32 %v3672, %v3672
      %v3686 = vmul.f32 %v3673, %v3673
      %v3687 = vmul.f32 %v3674, %v3674
      %v3688 = vmul.f32 %v3675, %v3675
      %v3689 = vmul.f32 %v3676, %v3676
      %v3690 = vmul.f32 %v3677, %v3677
      %v3691 = vmul.f32 %v3678, %v3678
      %v3692 = vmul.f32 %v3679, %v3679
      %v3693 = vmul.f32 %v3680, %v3680
      %v3694 = vmul.f32 %v3681, %v3681
      %v3695 = vsel %vm367, %v3682, 0.0
      %3696 = vadd.xlane.f32.xlu0 %v3695
      %v3697 = vpop.xlane.xlu0 %3696
      %v3698 = vsel %vm367, %v3683, 0.0
      %3699 = vadd.xlane.f32.xlu0 %v3698
      %v3700 = vpop.xlane.xlu0 %3699
      %v3701 = vsel %vm367, %v3684, 0.0
      %3702 = vadd.xlane.f32.xlu0 %v3701
      %v3703 = vpop.xlane.xlu0 %3702
      %v3704 = vsel %vm367, %v3685, 0.0
      %3705 = vadd.xlane.f32.xlu0 %v3704
      %v3706 = vpop.xlane.xlu0 %3705
      %v3707 = vsel %vm367, %v3686, 0.0
      %3708 = vadd.xlane.f32.xlu0 %v3707
      %v3709 = vpop.xlane.xlu0 %3708
      %v3710 = vsel %vm367, %v3687, 0.0
      %3711 = vadd.xlane.f32.xlu0 %v3710
      %v3712 = vpop.xlane.xlu0 %3711
      %v3713 = vsel %vm367, %v3688, 0.0
      %3714 = vadd.xlane.f32.xlu0 %v3713
      %v3715 = vpop.xlane.xlu0 %3714
      %v3716 = vsel %vm367, %v3689, 0.0
      %3717 = vadd.xlane.f32.xlu0 %v3716
      %v3718 = vpop.xlane.xlu0 %3717
      %v3719 = vsel %vm367, %v3690, 0.0
      %3720 = vadd.xlane.f32.xlu0 %v3719
      %v3721 = vpop.xlane.xlu0 %3720
      %v3722 = vsel %vm367, %v3691, 0.0
      %3723 = vadd.xlane.f32.xlu0 %v3722
      %v3724 = vpop.xlane.xlu0 %3723
      %v3725 = vsel %vm367, %v3692, 0.0
      %3726 = vadd.xlane.f32.xlu0 %v3725
      %v3727 = vpop.xlane.xlu0 %3726
      %v3728 = vsel %vm367, %v3693, 0.0
      %3729 = vadd.xlane.f32.xlu0 %v3728
      %v3730 = vpop.xlane.xlu0 %3729
      %v3731 = vsel %vm3652, %v3694, 0.0
      %3732 = vadd.xlane.f32.xlu0 %v3731
      %v3733 = vpop.xlane.xlu0 %3732
      %v3734 = vmul.f32 %v3697, %v377
      %v3735 = vmul.f32 %v3700, %v377
      %v3736 = vmul.f32 %v3703, %v377
      %v3737 = vmul.f32 %v3706, %v377
      %v3738 = vmul.f32 %v3709, %v377
      %v3739 = vmul.f32 %v3712, %v377
      %v3740 = vmul.f32 %v3715, %v377
      %v3741 = vmul.f32 %v3718, %v377
      %v3742 = vmul.f32 %v3721, %v377
      %v3743 = vmul.f32 %v3724, %v377
      %v3744 = vmul.f32 %v3727, %v377
      %v3745 = vmul.f32 %v3730, %v377
      %v3746 = vmul.f32 %v3733, %v377
      %v3747 = vadd.f32 %v3734, 1e-05
      %v3748 = vadd.f32 %v3735, 1e-05
      %v3749 = vadd.f32 %v3736, 1e-05
      %v3750 = vadd.f32 %v3737, 1e-05
      %v3751 = vadd.f32 %v3738, 1e-05
      %v3752 = vadd.f32 %v3739, 1e-05
      %v3753 = vadd.f32 %v3740, 1e-05
      %v3754 = vadd.f32 %v3741, 1e-05
      %v3755 = vadd.f32 %v3742, 1e-05
      %v3756 = vadd.f32 %v3743, 1e-05
      %v3757 = vadd.f32 %v3744, 1e-05
      %v3758 = vadd.f32 %v3745, 1e-05
      %v3759 = vadd.f32 %v3746, 1e-05
      %v3760 = vrsqrt.pop %v3747
      %v3761 = vrsqrt.pop %v3748
      %v3762 = vrsqrt.pop %v3749
      %v3763 = vrsqrt.pop %v3750
      %v3764 = vrsqrt.pop %v3751
      %v3765 = vrsqrt.pop %v3752
      %v3766 = vrsqrt.pop %v3753
      %v3767 = vrsqrt.pop %v3754
      %v3768 = vrsqrt.pop %v3755
      %v3769 = vrsqrt.pop %v3756
      %v3770 = vrsqrt.pop %v3757
      %v3771 = vrsqrt.pop %v3758
      %v3772 = vrsqrt.pop %v3759
      %v3773 = vmul.f32 %v3669, %v3760
      %v3774 = vmul.f32 %v3670, %v3761
      %v3775 = vmul.f32 %v3671, %v3762
      %v3776 = vmul.f32 %v3672, %v3763
      %v3777 = vmul.f32 %v3673, %v3764
      %v3778 = vmul.f32 %v3674, %v3765
      %v3779 = vmul.f32 %v3675, %v3766
      %v3780 = vmul.f32 %v3676, %v3767
      %v3781 = vmul.f32 %v3677, %v3768
      %v3782 = vmul.f32 %v3678, %v3769
      %v3783 = vmul.f32 %v3679, %v3770
      %v3784 = vmul.f32 %v3680, %v3771
      %v3785 = vmul.f32 %v3681, %v3772
      %v3786 = vlaneseq
      %v3787 = vshrl.u32 %v3786, 7
      %v3788 = vsub.s32 0, %v3787
      %v3789 = vrot.slane %v3433, %v3788
      %v3790 = vmul.f32 %v3773, %v3789
      %v3791 = vmul.f32 %v3774, %v3789
      %v3792 = vmul.f32 %v3775, %v3789
      %v3793 = vmul.f32 %v3776, %v3789
      %v3794 = vmul.f32 %v3777, %v3789
      %v3795 = vmul.f32 %v3778, %v3789
      %v3796 = vmul.f32 %v3779, %v3789
      %v3797 = vmul.f32 %v3780, %v3789
      %v3798 = vmul.f32 %v3781, %v3789
      %v3799 = vmul.f32 %v3782, %v3789
      %v3800 = vmul.f32 %v3783, %v3789
      %v3801 = vmul.f32 %v3784, %v3789
      %v3802 = vmul.f32 %v3785, %v3789
      %v3803 = vlaneseq
      %v3804 = vshrl.u32 %v3803, 7
      %v3805 = vsub.s32 1, %v3804
      %v3806 = vrot.slane %v3433, %v3805
      %v3807 = vadd.f32 %v3790, %v3806
      %v3808 = vadd.f32 %v3791, %v3806
      %v3809 = vadd.f32 %v3792, %v3806
      %v3810 = vadd.f32 %v3793, %v3806
      %v3811 = vadd.f32 %v3794, %v3806
      %v3812 = vadd.f32 %v3795, %v3806
      %v3813 = vadd.f32 %v3796, %v3806
      %v3814 = vadd.f32 %v3797, %v3806
      %v3815 = vadd.f32 %v3798, %v3806
      %v3816 = vadd.f32 %v3799, %v3806
      %v3817 = vadd.f32 %v3800, %v3806
      %v3818 = vadd.f32 %v3801, %v3806
      %v3819 = vadd.f32 %v3802, %v3806
      %3820 = vst.msk [vmem:[%s251] sm:$0xff] %vm367, %v3807
      %3821 = vst.msk [vmem:[%s251 + $0x8] sm:$0xff] %vm367, %v3808
      %3822 = vst.msk [vmem:[%s251 + $0x10] sm:$0xff] %vm367, %v3809
      %3823 = vst.msk [vmem:[%s251 + $0x18] sm:$0xff] %vm367, %v3810
      %3824 = vst.msk [vmem:[%s251 + $0x20] sm:$0xff] %vm367, %v3811
      %3825 = vst.msk [vmem:[%s251 + $0x28] sm:$0xff] %vm367, %v3812
      %3826 = vst.msk [vmem:[%s251 + $0x30] sm:$0xff] %vm367, %v3813
      %3827 = vst.msk [vmem:[%s251 + $0x38] sm:$0xff] %vm367, %v3814
      %3828 = vst.msk [vmem:[%s251 + $0x40] sm:$0xff] %vm367, %v3815
      %3829 = vst.msk [vmem:[%s251 + $0x48] sm:$0xff] %vm367, %v3816
      %3830 = vst.msk [vmem:[%s251 + $0x50] sm:$0xff] %vm367, %v3817
      %3831 = vst.msk [vmem:[%s251 + $0x58] sm:$0xff] %vm367, %v3818
      %3832 = vst.msk [vmem:[%s251 + $0x60] sm:$0xf] %vm3652, %v3819
      %p3833 = scmp.lt.s32.totalorder %s17, 1
      %s3834 = scalar_select %p3833, %s17, 1
      %s3835 = smul.addr %s3834, 13
      %s3836 = smul.addr %s3835, 8
      %s3837 = scalar_lea.vmem %s6, %s3836
      // Predicated region
      $region45: #{_lambda_.1} parent=43 // pred_check
        %p3838 = pneg %p166
      $region46: #{_lambda_.1} parent=43 // pred_check_branch
        %3840 = sbr.rel (%p3838) target = $region48
      $region47: #{_lambda_.1} parent=43 // pred_region
        _
      $region48: #{_lambda_.1} parent=43 // pred_fallthru
        _
    $region44: #{_lambda_.1} parent=5 // pred_fallthru
      _
    %p3841 = scmp.le.s32.totalorder 2, %s12
    // Predicated region
    $region49: #{_lambda_.1} parent=5 // pred_check
      %p3842 = pneg %p3841
    $region50: #{_lambda_.1} parent=5 // pred_check_branch
      %3844 = sbr.rel (%p3842) target = $region52
    $region51: #{_lambda_.1} parent=5 // pred_region
      %s3845 = ssub.s32 %s12, 2
      // Predicated region
      $region53: #{_lambda_.1} parent=51 // pred_check
        %p3846 = pneg %p172
      $region54: #{_lambda_.1} parent=51 // pred_check_branch
        %3848 = sbr.rel (%p3846) target = $region56
      $region55: #{_lambda_.1} parent=51 // pred_region
        %p3849 = scmp.lt.s32.totalorder %s18, 1
        %s3850 = scalar_select %p3849, %s18, 1
        %s3851 = smul.addr %s3850, 13
        %s3852 = smul.addr %s3851, 8
        %s3853 = scalar_lea.vmem %s6, %s3852
      $region56: #{_lambda_.1} parent=51 // pred_fallthru
        _
    $region52: #{_lambda_.1} parent=5 // pred_fallthru
      _
  $region6: #{_lambda_.1} parent=0 // loop_footer
    %s16 = sadd.s32 1, %s12
  $region7: #{_lambda_.1} parent=0 // loop_footer_branch
    %11 = sbr.rel target = $region3
  $region8: #{_lambda_.1} parent=0 // loop_exit
    _

</llo_original>
